<compile_context>
chip_gen: v6e
topology: v6e:2x2x1
jax: 0.10.0
libtpu: 0.0.40
codegen_flags: <defaults>
</compile_context>

<pallas_src>
from functools import partial

import jax
import jax.numpy as jnp
from jax.experimental import pallas as pl
from jax.experimental.pallas import tpu as pltpu

_BN_EPS = 1e-5


# ---------------------------------------------------------------------------
# Fused kernel: one batch element per grid step, row-tiled inside.
# ---------------------------------------------------------------------------
def _bottleneck_kernel(x_ref, w1_ref, b1_ref, w2_ref, b2_ref, w3_ref, b3_ref,
                       o_ref, h1pad_ref, *, row_tile, compute_dtype):
    f32 = jnp.float32
    _, H, W, cin = x_ref.shape
    P = w1_ref.shape[1]
    Hp, Wp = H + 2, W + 2

    # Zero only the halo border of the padded-h1 scratch (interior is fully
    # overwritten below).  Done every grid step so it stays correct when the
    # batch axis is sharded across TensorCores (scratch is per-core).
    h1pad_ref[0:1, :, :] = jnp.zeros((1, Wp, P), f32)
    h1pad_ref[Hp - 1:Hp, :, :] = jnp.zeros((1, Wp, P), f32)
    h1pad_ref[:, 0:1, :] = jnp.zeros((Hp, 1, P), f32)
    h1pad_ref[:, Wp - 1:Wp, :] = jnp.zeros((Hp, 1, P), f32)

    # ---- conv1 (1x1, scale-folded) + bias + relu -> interior of padded scratch
    for r0 in range(0, H, row_tile):
        th = min(row_tile, H - r0)
        xr = x_ref[0, r0:r0 + th, :, :].astype(compute_dtype).reshape(th * W, cin)
        h1 = jnp.dot(xr, w1_ref[...], preferred_element_type=f32)
        h1 = jnp.maximum(h1 + b1_ref[...], 0.0)
        h1pad_ref[1 + r0:1 + r0 + th, 1:W + 1, :] = h1.reshape(th, W, P)

    # ---- conv2 (3x3, pad=1) + bias + relu, then conv3 (1x1) + bias + add + relu
    for r0 in range(0, H, row_tile):
        th = min(row_tile, H - r0)
        tile = h1pad_ref[r0:r0 + th + 2, :, :]                 # (th+2, Wp, P) f32
        acc = jnp.zeros((th * W, P), f32)
        for dx in range(3):
            # dx-shifted view built ONCE per row tile, reused for all three dy taps.
            view = tile[:, dx:dx + W, :].astype(compute_dtype)  # (th+2, W, P)
            for dy in range(3):
                lhs = view[dy:dy + th].reshape(th * W, P)
                acc = acc + jnp.dot(lhs, w2_ref[3 * dy + dx],
                                    preferred_element_type=f32)
        h2 = jnp.maximum(acc + b2_ref[...], 0.0)                # (th*W, P) f32

        y = jnp.dot(h2.astype(compute_dtype), w3_ref[...],
                    preferred_element_type=f32)                 # (th*W, cin)
        res = x_ref[0, r0:r0 + th, :, :].astype(f32).reshape(th * W, cin)
        y = jnp.maximum(y + b3_ref[...] + res, 0.0)
        o_ref[0, r0:r0 + th, :, :] = y.reshape(th, W, cin).astype(o_ref.dtype)


# ---------------------------------------------------------------------------
# Wrappers
# ---------------------------------------------------------------------------
def _fold_bn(bn):
    scale = bn["gamma"] / jnp.sqrt(bn["var"] + _BN_EPS)
    bias = bn["beta"] - bn["mean"] * scale
    return scale, bias


def bottleneck_forward_nhwc(x, p, *, compute_dtype=jnp.bfloat16, row_tile=8):
    """Fused Bottleneck forward in NHWC (stride=1, downsample=None)."""
    n, h, w, cin = x.shape
    planes = p["w1"].shape[1]
    if p["w3"].shape[1] != cin:
        raise ValueError("identity residual requires inplanes == planes * 4")

    s1, b1 = _fold_bn(p["bn1"])
    s2, b2 = _fold_bn(p["bn2"])
    s3, b3 = _fold_bn(p["bn3"])

    # Fold the BN scale into the conv weights (one-time transform, outside the
    # hot loop).  Kernels then only add the per-channel bias.
    w1 = (p["w1"] * s1[None, :]).astype(compute_dtype)
    w2 = (p["w2"] * s2[None, None, None, :]).reshape(9, planes, planes).astype(compute_dtype)
    w3 = (p["w3"] * s3[None, :]).astype(compute_dtype)
    b1 = b1.reshape(1, planes).astype(jnp.float32)
    b2 = b2.reshape(1, planes).astype(jnp.float32)
    b3 = b3.reshape(1, cin).astype(jnp.float32)

    kernel = partial(_bottleneck_kernel, row_tile=row_tile,
                     compute_dtype=compute_dtype)

    return pl.pallas_call(
        kernel,
        out_shape=jax.ShapeDtypeStruct((n, h, w, cin), x.dtype),
        grid=(n,),
        in_specs=[
            pl.BlockSpec((1, h, w, cin), lambda b: (b, 0, 0, 0)),
            pl.BlockSpec((cin, planes), lambda b: (0, 0)),
            pl.BlockSpec((1, planes), lambda b: (0, 0)),
            pl.BlockSpec((9, planes, planes), lambda b: (0, 0, 0)),
            pl.BlockSpec((1, planes), lambda b: (0, 0)),
            pl.BlockSpec((planes, cin), lambda b: (0, 0)),
            pl.BlockSpec((1, cin), lambda b: (0, 0)),
        ],
        out_specs=pl.BlockSpec((1, h, w, cin), lambda b: (b, 0, 0, 0)),
        scratch_shapes=[pltpu.VMEM((h + 2, w + 2, planes), jnp.float32)],
        compiler_params=pltpu.CompilerParams(
            dimension_semantics=("parallel",)),
    )(x, w1, b1, w2, b2, w3, b3)


def bottleneck_forward(x_nchw, p, **kwargs):
    """NCHW wrapper matching the PyTorch module interface (layout conversion
    only at the boundary; use bottleneck_forward_nhwc for NHWC networks)."""
    x = jnp.transpose(x_nchw, (0, 2, 3, 1))
    out = bottleneck_forward_nhwc(x, p, **kwargs)
    return jnp.transpose(out, (0, 3, 1, 2))


# ---------------------------------------------------------------------------
# Pure-JAX reference for validation
# ---------------------------------------------------------------------------
def reference_forward(x_nchw, p):
    x = jnp.transpose(x_nchw, (0, 2, 3, 1))

    def bn(y, d):
        return (y - d["mean"]) / jnp.sqrt(d["var"] + _BN_EPS) * d["gamma"] + d["beta"]

    h1 = jnp.maximum(bn(jnp.einsum("nhwc,cd->nhwd", x, p["w1"]), p["bn1"]), 0.0)
    h2 = jax.lax.conv_general_dilated(
        h1, p["w2"], (1, 1), ((1, 1), (1, 1)),
        dimension_numbers=("NHWC", "HWIO", "NHWC"))
    h2 = jnp.maximum(bn(h2, p["bn2"]), 0.0)
    h3 = bn(jnp.einsum("nhwc,cd->nhwd", h2, p["w3"]), p["bn3"])
    out = jnp.maximum(h3 + x, 0.0)
    return jnp.transpose(out, (0, 3, 1, 2))


# ---------------------------------------------------------------------------
if __name__ == "__main__":
    key = jax.random.PRNGKey(0)
    keys = jax.random.split(key, 8)

    N, planes, H, W = 2, 8, 16, 16
    inplanes = planes * 4                              # identity residual requirement
    x = jax.random.normal(keys[0], (N, inplanes, H, W), jnp.float32)

    w1 = jax.random.normal(keys[1], (inplanes, planes), jnp.float32) * (2.0 / inplanes) ** 0.5
    w2 = jax.random.normal(keys[2], (3, 3, planes, planes), jnp.float32) * (2.0 / (9 * planes)) ** 0.5
    w3 = jax.random.normal(keys[3], (planes, planes * 4), jnp.float32) * (2.0 / planes) ** 0.5

    def bn_params(k, c):
        k1, k2, k3, k4 = jax.random.split(k, 4)
        return dict(
            gamma=jax.random.uniform(k1, (c,), jnp.float32, 0.8, 1.2),
            beta=jax.random.normal(k2, (c,), jnp.float32) * 0.1,
            mean=jax.random.normal(k3, (c,), jnp.float32) * 0.1,
            var=jax.random.uniform(k4, (c,), jnp.float32, 0.8, 1.2),
        )

    params = dict(
        w1=w1, w2=w2, w3=w3,
        bn1=bn_params(keys[4], planes),
        bn2=bn_params(keys[5], planes),
        bn3=bn_params(keys[6], planes * 4),
    )

    ref = reference_forward(x, params)

    # Exact path (f32 MXU operands).
    out_f32 = jax.block_until_ready(
        bottleneck_forward(x, params, compute_dtype=jnp.float32))
    assert out_f32.shape == x.shape, (out_f32.shape, x.shape)
    err_f32 = float(jnp.max(jnp.abs(out_f32 - ref)))
    assert err_f32 < 1e-3, f"f32 max abs err vs reference: {err_f32}"

    # Default path: bf16 MXU operands, f32 accumulation / epilogue.
    out_bf16 = jax.block_until_ready(bottleneck_forward(x, params))
    err_bf16 = float(jnp.max(jnp.abs(out_bf16 - ref)))
    assert err_bf16 < 1.5e-1, f"bf16 max abs err vs reference: {err_bf16}"

    print("KERNEL_OK")
</pallas_src>

<mosaic_0001>
module attributes {stable_mosaic.version = 11 : i64} {
  func.func @_bottleneck_kernel(%arg0: i32, %arg1: memref<1x16x16x32xf32, #tpu.memory_space<vmem>>, %arg2: memref<32x8xf32, #tpu.memory_space<vmem>>, %arg3: memref<1x8xf32, #tpu.memory_space<vmem>>, %arg4: memref<9x8x8xf32, #tpu.memory_space<vmem>>, %arg5: memref<1x8xf32, #tpu.memory_space<vmem>>, %arg6: memref<8x32xf32, #tpu.memory_space<vmem>>, %arg7: memref<1x32xf32, #tpu.memory_space<vmem>>, %arg8: memref<1x16x16x32xf32, #tpu.memory_space<vmem>>, %arg9: memref<18x18x8xf32, #tpu.memory_space<vmem>>) attributes {dimension_semantics = [#tpu.dimension_semantics<parallel>], iteration_bounds = array<i64: 2>, scalar_prefetch = 0 : i64, scratch_operands = 1 : i64, tpu.core_type = #tpu.core_type<tc>, window_params = [{transform_indices = @transform_0, window_bounds = array<i64: 1, 16, 16, 32>}, {pipeline_mode = #tpu.pipeline_mode<synchronous>, transform_indices = @transform_1, window_bounds = array<i64: 32, 8>}, {pipeline_mode = #tpu.pipeline_mode<synchronous>, transform_indices = @transform_2, window_bounds = array<i64: 1, 8>}, {pipeline_mode = #tpu.pipeline_mode<synchronous>, transform_indices = @transform_3, window_bounds = array<i64: 9, 8, 8>}, {pipeline_mode = #tpu.pipeline_mode<synchronous>, transform_indices = @transform_4, window_bounds = array<i64: 1, 8>}, {pipeline_mode = #tpu.pipeline_mode<synchronous>, transform_indices = @transform_5, window_bounds = array<i64: 8, 32>}, {pipeline_mode = #tpu.pipeline_mode<synchronous>, transform_indices = @transform_6, window_bounds = array<i64: 1, 32>}, {transform_indices = @transform_7, window_bounds = array<i64: 1, 16, 16, 32>}]} {
    %cst = arith.constant 0.000000e+00 : f32
    %0 = vector.broadcast %cst : f32 to vector<1x18x8xf32>
    %c0 = arith.constant 0 : index
    %c0_0 = arith.constant 0 : index
    %c0_1 = arith.constant 0 : index
    %1 = vector.load %arg9[%c0, %c0_0, %c0_1] : memref<18x18x8xf32, #tpu.memory_space<vmem>>, vector<1x18x8xf32>
    tpu.vector_store %arg9[%c0, %c0_0, %c0_1], %0 {strides = array<i32>} : memref<18x18x8xf32, #tpu.memory_space<vmem>>, vector<1x18x8xf32>,
    %cst_2 = arith.constant 0.000000e+00 : f32
    %2 = vector.broadcast %cst_2 : f32 to vector<1x18x8xf32>
    %c17 = arith.constant 17 : index
    %c0_3 = arith.constant 0 : index
    %c0_4 = arith.constant 0 : index
    %3 = vector.load %arg9[%c17, %c0_3, %c0_4] : memref<18x18x8xf32, #tpu.memory_space<vmem>>, vector<1x18x8xf32>
    tpu.vector_store %arg9[%c17, %c0_3, %c0_4], %2 {strides = array<i32>} : memref<18x18x8xf32, #tpu.memory_space<vmem>>, vector<1x18x8xf32>,
    %cst_5 = arith.constant 0.000000e+00 : f32
    %4 = vector.broadcast %cst_5 : f32 to vector<18x1x8xf32>
    %c0_6 = arith.constant 0 : index
    %c0_7 = arith.constant 0 : index
    %c0_8 = arith.constant 0 : index
    %5 = vector.load %arg9[%c0_6, %c0_7, %c0_8] : memref<18x18x8xf32, #tpu.memory_space<vmem>>, vector<18x1x8xf32>
    tpu.vector_store %arg9[%c0_6, %c0_7, %c0_8], %4 {strides = array<i32>} : memref<18x18x8xf32, #tpu.memory_space<vmem>>, vector<18x1x8xf32>,
    %cst_9 = arith.constant 0.000000e+00 : f32
    %6 = vector.broadcast %cst_9 : f32 to vector<18x1x8xf32>
    %c0_10 = arith.constant 0 : index
    %c17_11 = arith.constant 17 : index
    %c0_12 = arith.constant 0 : index
    %7 = vector.load %arg9[%c0_10, %c17_11, %c0_12] : memref<18x18x8xf32, #tpu.memory_space<vmem>>, vector<18x1x8xf32>
    tpu.vector_store %arg9[%c0_10, %c17_11, %c0_12], %6 {strides = array<i32>} : memref<18x18x8xf32, #tpu.memory_space<vmem>>, vector<18x1x8xf32>,
    %c0_13 = arith.constant 0 : index
    %c0_14 = arith.constant 0 : index
    %c0_15 = arith.constant 0 : index
    %c0_16 = arith.constant 0 : index
    %8 = vector.load %arg1[%c0_13, %c0_14, %c0_15, %c0_16] : memref<1x16x16x32xf32, #tpu.memory_space<vmem>>, vector<1x8x16x32xf32>
    %9 = vector.shape_cast %8 : vector<1x8x16x32xf32> to vector<8x16x32xf32>
    %10 = vector.shape_cast %9 : vector<8x16x32xf32> to vector<128x32xf32>
    %c0_17 = arith.constant 0 : index
    %c0_18 = arith.constant 0 : index
    %11 = vector.load %arg2[%c0_17, %c0_18] : memref<32x8xf32, #tpu.memory_space<vmem>>, vector<32x8xf32>
    %cst_19 = arith.constant dense<0.000000e+00> : vector<128x8xf32>
    %12 = tpu.matmul %10, %11, %cst_19 {dimension_numbers = #tpu.dot_dimension_numbers<[1], [0], [0], [1], [0, 0, 1, 1], [], []>} : vector<128x32xf32>, vector<32x8xf32>, vector<128x8xf32> -> vector<128x8xf32>
    %c0_20 = arith.constant 0 : index
    %c0_21 = arith.constant 0 : index
    %13 = vector.load %arg3[%c0_20, %c0_21] : memref<1x8xf32, #tpu.memory_space<vmem>>, vector<1x8xf32>
    %14 = vector.broadcast %13 : vector<1x8xf32> to vector<128x8xf32>
    %15 = arith.addf %12, %14 : vector<128x8xf32>
    %cst_22 = arith.constant 0.000000e+00 : f32
    %16 = vector.broadcast %cst_22 : f32 to vector<128x8xf32>
    %17 = arith.maximumf %15, %16 : vector<128x8xf32>
    %18 = vector.shape_cast %17 : vector<128x8xf32> to vector<8x16x8xf32>
    %c1 = arith.constant 1 : index
    %c1_23 = arith.constant 1 : index
    %c0_24 = arith.constant 0 : index
    %19 = vector.load %arg9[%c1, %c1_23, %c0_24] : memref<18x18x8xf32, #tpu.memory_space<vmem>>, vector<8x16x8xf32>
    tpu.vector_store %arg9[%c1, %c1_23, %c0_24], %18 {strides = array<i32>} : memref<18x18x8xf32, #tpu.memory_space<vmem>>, vector<8x16x8xf32>,
    %c0_25 = arith.constant 0 : index
    %c8 = arith.constant 8 : index
    %c0_26 = arith.constant 0 : index
    %c0_27 = arith.constant 0 : index
    %20 = vector.load %arg1[%c0_25, %c8, %c0_26, %c0_27] : memref<1x16x16x32xf32, #tpu.memory_space<vmem>>, vector<1x8x16x32xf32>
    %21 = vector.shape_cast %20 : vector<1x8x16x32xf32> to vector<8x16x32xf32>
    %22 = vector.shape_cast %21 : vector<8x16x32xf32> to vector<128x32xf32>
    %c0_28 = arith.constant 0 : index
    %c0_29 = arith.constant 0 : index
    %23 = vector.load %arg2[%c0_28, %c0_29] : memref<32x8xf32, #tpu.memory_space<vmem>>, vector<32x8xf32>
    %cst_30 = arith.constant dense<0.000000e+00> : vector<128x8xf32>
    %24 = tpu.matmul %22, %23, %cst_30 {dimension_numbers = #tpu.dot_dimension_numbers<[1], [0], [0], [1], [0, 0, 1, 1], [], []>} : vector<128x32xf32>, vector<32x8xf32>, vector<128x8xf32> -> vector<128x8xf32>
    %c0_31 = arith.constant 0 : index
    %c0_32 = arith.constant 0 : index
    %25 = vector.load %arg3[%c0_31, %c0_32] : memref<1x8xf32, #tpu.memory_space<vmem>>, vector<1x8xf32>
    %26 = vector.broadcast %25 : vector<1x8xf32> to vector<128x8xf32>
    %27 = arith.addf %24, %26 : vector<128x8xf32>
    %cst_33 = arith.constant 0.000000e+00 : f32
    %28 = vector.broadcast %cst_33 : f32 to vector<128x8xf32>
    %29 = arith.maximumf %27, %28 : vector<128x8xf32>
    %30 = vector.shape_cast %29 : vector<128x8xf32> to vector<8x16x8xf32>
    %c9 = arith.constant 9 : index
    %c1_34 = arith.constant 1 : index
    %c0_35 = arith.constant 0 : index
    %31 = vector.load %arg9[%c9, %c1_34, %c0_35] : memref<18x18x8xf32, #tpu.memory_space<vmem>>, vector<8x16x8xf32>
    tpu.vector_store %arg9[%c9, %c1_34, %c0_35], %30 {strides = array<i32>} : memref<18x18x8xf32, #tpu.memory_space<vmem>>, vector<8x16x8xf32>,
    %c0_36 = arith.constant 0 : index
    %c0_37 = arith.constant 0 : index
    %c0_38 = arith.constant 0 : index
    %32 = vector.load %arg9[%c0_36, %c0_37, %c0_38] : memref<18x18x8xf32, #tpu.memory_space<vmem>>, vector<10x18x8xf32>
    %cst_39 = arith.constant 0.000000e+00 : f32
    %33 = vector.broadcast %cst_39 : f32 to vector<128x8xf32>
    %34 = vector.extract_strided_slice %32 {offsets = [0, 0, 0], sizes = [10, 16, 8], strides = [1, 1, 1]} : vector<10x18x8xf32> to vector<10x16x8xf32>
    %35 = vector.extract_strided_slice %34 {offsets = [0, 0, 0], sizes = [8, 16, 8], strides = [1, 1, 1]} : vector<10x16x8xf32> to vector<8x16x8xf32>
    %36 = vector.shape_cast %35 : vector<8x16x8xf32> to vector<128x8xf32>
    %c0_40 = arith.constant 0 : index
    %c0_41 = arith.constant 0 : index
    %c0_42 = arith.constant 0 : index
    %37 = vector.load %arg4[%c0_40, %c0_41, %c0_42] : memref<9x8x8xf32, #tpu.memory_space<vmem>>, vector<1x8x8xf32>
    %38 = vector.shape_cast %37 : vector<1x8x8xf32> to vector<8x8xf32>
    %cst_43 = arith.constant dense<0.000000e+00> : vector<128x8xf32>
    %39 = tpu.matmul %36, %38, %cst_43 {dimension_numbers = #tpu.dot_dimension_numbers<[1], [0], [0], [1], [0, 0, 1, 1], [], []>} : vector<128x8xf32>, vector<8x8xf32>, vector<128x8xf32> -> vector<128x8xf32>
    %40 = arith.addf %33, %39 : vector<128x8xf32>
    %41 = vector.extract_strided_slice %34 {offsets = [1, 0, 0], sizes = [8, 16, 8], strides = [1, 1, 1]} : vector<10x16x8xf32> to vector<8x16x8xf32>
    %42 = vector.shape_cast %41 : vector<8x16x8xf32> to vector<128x8xf32>
    %c3 = arith.constant 3 : index
    %c0_44 = arith.constant 0 : index
    %c0_45 = arith.constant 0 : index
    %43 = vector.load %arg4[%c3, %c0_44, %c0_45] : memref<9x8x8xf32, #tpu.memory_space<vmem>>, vector<1x8x8xf32>
    %44 = vector.shape_cast %43 : vector<1x8x8xf32> to vector<8x8xf32>
    %cst_46 = arith.constant dense<0.000000e+00> : vector<128x8xf32>
    %45 = tpu.matmul %42, %44, %cst_46 {dimension_numbers = #tpu.dot_dimension_numbers<[1], [0], [0], [1], [0, 0, 1, 1], [], []>} : vector<128x8xf32>, vector<8x8xf32>, vector<128x8xf32> -> vector<128x8xf32>
    %46 = arith.addf %40, %45 : vector<128x8xf32>
    %47 = vector.extract_strided_slice %34 {offsets = [2, 0, 0], sizes = [8, 16, 8], strides = [1, 1, 1]} : vector<10x16x8xf32> to vector<8x16x8xf32>
    %48 = vector.shape_cast %47 : vector<8x16x8xf32> to vector<128x8xf32>
    %c6 = arith.constant 6 : index
    %c0_47 = arith.constant 0 : index
    %c0_48 = arith.constant 0 : index
    %49 = vector.load %arg4[%c6, %c0_47, %c0_48] : memref<9x8x8xf32, #tpu.memory_space<vmem>>, vector<1x8x8xf32>
    %50 = vector.shape_cast %49 : vector<1x8x8xf32> to vector<8x8xf32>
    %cst_49 = arith.constant dense<0.000000e+00> : vector<128x8xf32>
    %51 = tpu.matmul %48, %50, %cst_49 {dimension_numbers = #tpu.dot_dimension_numbers<[1], [0], [0], [1], [0, 0, 1, 1], [], []>} : vector<128x8xf32>, vector<8x8xf32>, vector<128x8xf32> -> vector<128x8xf32>
    %52 = arith.addf %46, %51 : vector<128x8xf32>
    %53 = vector.extract_strided_slice %32 {offsets = [0, 1, 0], sizes = [10, 16, 8], strides = [1, 1, 1]} : vector<10x18x8xf32> to vector<10x16x8xf32>
    %54 = vector.extract_strided_slice %53 {offsets = [0, 0, 0], sizes = [8, 16, 8], strides = [1, 1, 1]} : vector<10x16x8xf32> to vector<8x16x8xf32>
    %55 = vector.shape_cast %54 : vector<8x16x8xf32> to vector<128x8xf32>
    %c1_50 = arith.constant 1 : index
    %c0_51 = arith.constant 0 : index
    %c0_52 = arith.constant 0 : index
    %56 = vector.load %arg4[%c1_50, %c0_51, %c0_52] : memref<9x8x8xf32, #tpu.memory_space<vmem>>, vector<1x8x8xf32>
    %57 = vector.shape_cast %56 : vector<1x8x8xf32> to vector<8x8xf32>
    %cst_53 = arith.constant dense<0.000000e+00> : vector<128x8xf32>
    %58 = tpu.matmul %55, %57, %cst_53 {dimension_numbers = #tpu.dot_dimension_numbers<[1], [0], [0], [1], [0, 0, 1, 1], [], []>} : vector<128x8xf32>, vector<8x8xf32>, vector<128x8xf32> -> vector<128x8xf32>
    %59 = arith.addf %52, %58 : vector<128x8xf32>
    %60 = vector.extract_strided_slice %53 {offsets = [1, 0, 0], sizes = [8, 16, 8], strides = [1, 1, 1]} : vector<10x16x8xf32> to vector<8x16x8xf32>
    %61 = vector.shape_cast %60 : vector<8x16x8xf32> to vector<128x8xf32>
    %c4 = arith.constant 4 : index
    %c0_54 = arith.constant 0 : index
    %c0_55 = arith.constant 0 : index
    %62 = vector.load %arg4[%c4, %c0_54, %c0_55] : memref<9x8x8xf32, #tpu.memory_space<vmem>>, vector<1x8x8xf32>
    %63 = vector.shape_cast %62 : vector<1x8x8xf32> to vector<8x8xf32>
    %cst_56 = arith.constant dense<0.000000e+00> : vector<128x8xf32>
    %64 = tpu.matmul %61, %63, %cst_56 {dimension_numbers = #tpu.dot_dimension_numbers<[1], [0], [0], [1], [0, 0, 1, 1], [], []>} : vector<128x8xf32>, vector<8x8xf32>, vector<128x8xf32> -> vector<128x8xf32>
    %65 = arith.addf %59, %64 : vector<128x8xf32>
    %66 = vector.extract_strided_slice %53 {offsets = [2, 0, 0], sizes = [8, 16, 8], strides = [1, 1, 1]} : vector<10x16x8xf32> to vector<8x16x8xf32>
    %67 = vector.shape_cast %66 : vector<8x16x8xf32> to vector<128x8xf32>
    %c7 = arith.constant 7 : index
    %c0_57 = arith.constant 0 : index
    %c0_58 = arith.constant 0 : index
    %68 = vector.load %arg4[%c7, %c0_57, %c0_58] : memref<9x8x8xf32, #tpu.memory_space<vmem>>, vector<1x8x8xf32>
    %69 = vector.shape_cast %68 : vector<1x8x8xf32> to vector<8x8xf32>
    %cst_59 = arith.constant dense<0.000000e+00> : vector<128x8xf32>
    %70 = tpu.matmul %67, %69, %cst_59 {dimension_numbers = #tpu.dot_dimension_numbers<[1], [0], [0], [1], [0, 0, 1, 1], [], []>} : vector<128x8xf32>, vector<8x8xf32>, vector<128x8xf32> -> vector<128x8xf32>
    %71 = arith.addf %65, %70 : vector<128x8xf32>
    %72 = vector.extract_strided_slice %32 {offsets = [0, 2, 0], sizes = [10, 16, 8], strides = [1, 1, 1]} : vector<10x18x8xf32> to vector<10x16x8xf32>
    %73 = vector.extract_strided_slice %72 {offsets = [0, 0, 0], sizes = [8, 16, 8], strides = [1, 1, 1]} : vector<10x16x8xf32> to vector<8x16x8xf32>
    %74 = vector.shape_cast %73 : vector<8x16x8xf32> to vector<128x8xf32>
    %c2 = arith.constant 2 : index
    %c0_60 = arith.constant 0 : index
    %c0_61 = arith.constant 0 : index
    %75 = vector.load %arg4[%c2, %c0_60, %c0_61] : memref<9x8x8xf32, #tpu.memory_space<vmem>>, vector<1x8x8xf32>
    %76 = vector.shape_cast %75 : vector<1x8x8xf32> to vector<8x8xf32>
    %cst_62 = arith.constant dense<0.000000e+00> : vector<128x8xf32>
    %77 = tpu.matmul %74, %76, %cst_62 {dimension_numbers = #tpu.dot_dimension_numbers<[1], [0], [0], [1], [0, 0, 1, 1], [], []>} : vector<128x8xf32>, vector<8x8xf32>, vector<128x8xf32> -> vector<128x8xf32>
    %78 = arith.addf %71, %77 : vector<128x8xf32>
    %79 = vector.extract_strided_slice %72 {offsets = [1, 0, 0], sizes = [8, 16, 8], strides = [1, 1, 1]} : vector<10x16x8xf32> to vector<8x16x8xf32>
    %80 = vector.shape_cast %79 : vector<8x16x8xf32> to vector<128x8xf32>
    %c5 = arith.constant 5 : index
    %c0_63 = arith.constant 0 : index
    %c0_64 = arith.constant 0 : index
    %81 = vector.load %arg4[%c5, %c0_63, %c0_64] : memref<9x8x8xf32, #tpu.memory_space<vmem>>, vector<1x8x8xf32>
    %82 = vector.shape_cast %81 : vector<1x8x8xf32> to vector<8x8xf32>
    %cst_65 = arith.constant dense<0.000000e+00> : vector<128x8xf32>
    %83 = tpu.matmul %80, %82, %cst_65 {dimension_numbers = #tpu.dot_dimension_numbers<[1], [0], [0], [1], [0, 0, 1, 1], [], []>} : vector<128x8xf32>, vector<8x8xf32>, vector<128x8xf32> -> vector<128x8xf32>
    %84 = arith.addf %78, %83 : vector<128x8xf32>
    %85 = vector.extract_strided_slice %72 {offsets = [2, 0, 0], sizes = [8, 16, 8], strides = [1, 1, 1]} : vector<10x16x8xf32> to vector<8x16x8xf32>
    %86 = vector.shape_cast %85 : vector<8x16x8xf32> to vector<128x8xf32>
    %c8_66 = arith.constant 8 : index
    %c0_67 = arith.constant 0 : index
    %c0_68 = arith.constant 0 : index
    %87 = vector.load %arg4[%c8_66, %c0_67, %c0_68] : memref<9x8x8xf32, #tpu.memory_space<vmem>>, vector<1x8x8xf32>
    %88 = vector.shape_cast %87 : vector<1x8x8xf32> to vector<8x8xf32>
    %cst_69 = arith.constant dense<0.000000e+00> : vector<128x8xf32>
    %89 = tpu.matmul %86, %88, %cst_69 {dimension_numbers = #tpu.dot_dimension_numbers<[1], [0], [0], [1], [0, 0, 1, 1], [], []>} : vector<128x8xf32>, vector<8x8xf32>, vector<128x8xf32> -> vector<128x8xf32>
    %90 = arith.addf %84, %89 : vector<128x8xf32>
    %c0_70 = arith.constant 0 : index
    %c0_71 = arith.constant 0 : index
    %91 = vector.load %arg5[%c0_70, %c0_71] : memref<1x8xf32, #tpu.memory_space<vmem>>, vector<1x8xf32>
    %92 = vector.broadcast %91 : vector<1x8xf32> to vector<128x8xf32>
    %93 = arith.addf %90, %92 : vector<128x8xf32>
    %cst_72 = arith.constant 0.000000e+00 : f32
    %94 = vector.broadcast %cst_72 : f32 to vector<128x8xf32>
    %95 = arith.maximumf %93, %94 : vector<128x8xf32>
    %c0_73 = arith.constant 0 : index
    %c0_74 = arith.constant 0 : index
    %96 = vector.load %arg6[%c0_73, %c0_74] : memref<8x32xf32, #tpu.memory_space<vmem>>, vector<8x32xf32>
    %cst_75 = arith.constant dense<0.000000e+00> : vector<128x32xf32>
    %97 = tpu.matmul %95, %96, %cst_75 {dimension_numbers = #tpu.dot_dimension_numbers<[1], [0], [0], [1], [0, 0, 1, 1], [], []>} : vector<128x8xf32>, vector<8x32xf32>, vector<128x32xf32> -> vector<128x32xf32>
    %c0_76 = arith.constant 0 : index
    %c0_77 = arith.constant 0 : index
    %c0_78 = arith.constant 0 : index
    %c0_79 = arith.constant 0 : index
    %98 = vector.load %arg1[%c0_76, %c0_77, %c0_78, %c0_79] : memref<1x16x16x32xf32, #tpu.memory_space<vmem>>, vector<1x8x16x32xf32>
    %99 = vector.shape_cast %98 : vector<1x8x16x32xf32> to vector<8x16x32xf32>
    %100 = vector.shape_cast %99 : vector<8x16x32xf32> to vector<128x32xf32>
    %c0_80 = arith.constant 0 : index
    %c0_81 = arith.constant 0 : index
    %101 = vector.load %arg7[%c0_80, %c0_81] : memref<1x32xf32, #tpu.memory_space<vmem>>, vector<1x32xf32>
    %102 = vector.broadcast %101 : vector<1x32xf32> to vector<128x32xf32>
    %103 = arith.addf %97, %102 : vector<128x32xf32>
    %104 = arith.addf %103, %100 : vector<128x32xf32>
    %cst_82 = arith.constant 0.000000e+00 : f32
    %105 = vector.broadcast %cst_82 : f32 to vector<128x32xf32>
    %106 = arith.maximumf %104, %105 : vector<128x32xf32>
    %107 = vector.shape_cast %106 : vector<128x32xf32> to vector<8x16x32xf32>
    %c0_83 = arith.constant 0 : index
    %c0_84 = arith.constant 0 : index
    %c0_85 = arith.constant 0 : index
    %c0_86 = arith.constant 0 : index
    %108 = vector.load %arg8[%c0_83, %c0_84, %c0_85, %c0_86] : memref<1x16x16x32xf32, #tpu.memory_space<vmem>>, vector<1x8x16x32xf32>
    %109 = vector.shape_cast %108 : vector<1x8x16x32xf32> to vector<8x16x32xf32>
    %110 = vector.shape_cast %107 : vector<8x16x32xf32> to vector<1x8x16x32xf32>
    tpu.vector_store %arg8[%c0_83, %c0_84, %c0_85, %c0_86], %110 {strides = array<i32>} : memref<1x16x16x32xf32, #tpu.memory_space<vmem>>, vector<1x8x16x32xf32>,
    %c8_87 = arith.constant 8 : index
    %c0_88 = arith.constant 0 : index
    %c0_89 = arith.constant 0 : index
    %111 = vector.load %arg9[%c8_87, %c0_88, %c0_89] : memref<18x18x8xf32, #tpu.memory_space<vmem>>, vector<10x18x8xf32>
    %cst_90 = arith.constant 0.000000e+00 : f32
    %112 = vector.broadcast %cst_90 : f32 to vector<128x8xf32>
    %113 = vector.extract_strided_slice %111 {offsets = [0, 0, 0], sizes = [10, 16, 8], strides = [1, 1, 1]} : vector<10x18x8xf32> to vector<10x16x8xf32>
    %114 = vector.extract_strided_slice %113 {offsets = [0, 0, 0], sizes = [8, 16, 8], strides = [1, 1, 1]} : vector<10x16x8xf32> to vector<8x16x8xf32>
    %115 = vector.shape_cast %114 : vector<8x16x8xf32> to vector<128x8xf32>
    %c0_91 = arith.constant 0 : index
    %c0_92 = arith.constant 0 : index
    %c0_93 = arith.constant 0 : index
    %116 = vector.load %arg4[%c0_91, %c0_92, %c0_93] : memref<9x8x8xf32, #tpu.memory_space<vmem>>, vector<1x8x8xf32>
    %117 = vector.shape_cast %116 : vector<1x8x8xf32> to vector<8x8xf32>
    %cst_94 = arith.constant dense<0.000000e+00> : vector<128x8xf32>
    %118 = tpu.matmul %115, %117, %cst_94 {dimension_numbers = #tpu.dot_dimension_numbers<[1], [0], [0], [1], [0, 0, 1, 1], [], []>} : vector<128x8xf32>, vector<8x8xf32>, vector<128x8xf32> -> vector<128x8xf32>
    %119 = arith.addf %112, %118 : vector<128x8xf32>
    %120 = vector.extract_strided_slice %113 {offsets = [1, 0, 0], sizes = [8, 16, 8], strides = [1, 1, 1]} : vector<10x16x8xf32> to vector<8x16x8xf32>
    %121 = vector.shape_cast %120 : vector<8x16x8xf32> to vector<128x8xf32>
    %c3_95 = arith.constant 3 : index
    %c0_96 = arith.constant 0 : index
    %c0_97 = arith.constant 0 : index
    %122 = vector.load %arg4[%c3_95, %c0_96, %c0_97] : memref<9x8x8xf32, #tpu.memory_space<vmem>>, vector<1x8x8xf32>
    %123 = vector.shape_cast %122 : vector<1x8x8xf32> to vector<8x8xf32>
    %cst_98 = arith.constant dense<0.000000e+00> : vector<128x8xf32>
    %124 = tpu.matmul %121, %123, %cst_98 {dimension_numbers = #tpu.dot_dimension_numbers<[1], [0], [0], [1], [0, 0, 1, 1], [], []>} : vector<128x8xf32>, vector<8x8xf32>, vector<128x8xf32> -> vector<128x8xf32>
    %125 = arith.addf %119, %124 : vector<128x8xf32>
    %126 = vector.extract_strided_slice %113 {offsets = [2, 0, 0], sizes = [8, 16, 8], strides = [1, 1, 1]} : vector<10x16x8xf32> to vector<8x16x8xf32>
    %127 = vector.shape_cast %126 : vector<8x16x8xf32> to vector<128x8xf32>
    %c6_99 = arith.constant 6 : index
    %c0_100 = arith.constant 0 : index
    %c0_101 = arith.constant 0 : index
    %128 = vector.load %arg4[%c6_99, %c0_100, %c0_101] : memref<9x8x8xf32, #tpu.memory_space<vmem>>, vector<1x8x8xf32>
    %129 = vector.shape_cast %128 : vector<1x8x8xf32> to vector<8x8xf32>
    %cst_102 = arith.constant dense<0.000000e+00> : vector<128x8xf32>
    %130 = tpu.matmul %127, %129, %cst_102 {dimension_numbers = #tpu.dot_dimension_numbers<[1], [0], [0], [1], [0, 0, 1, 1], [], []>} : vector<128x8xf32>, vector<8x8xf32>, vector<128x8xf32> -> vector<128x8xf32>
    %131 = arith.addf %125, %130 : vector<128x8xf32>
    %132 = vector.extract_strided_slice %111 {offsets = [0, 1, 0], sizes = [10, 16, 8], strides = [1, 1, 1]} : vector<10x18x8xf32> to vector<10x16x8xf32>
    %133 = vector.extract_strided_slice %132 {offsets = [0, 0, 0], sizes = [8, 16, 8], strides = [1, 1, 1]} : vector<10x16x8xf32> to vector<8x16x8xf32>
    %134 = vector.shape_cast %133 : vector<8x16x8xf32> to vector<128x8xf32>
    %c1_103 = arith.constant 1 : index
    %c0_104 = arith.constant 0 : index
    %c0_105 = arith.constant 0 : index
    %135 = vector.load %arg4[%c1_103, %c0_104, %c0_105] : memref<9x8x8xf32, #tpu.memory_space<vmem>>, vector<1x8x8xf32>
    %136 = vector.shape_cast %135 : vector<1x8x8xf32> to vector<8x8xf32>
    %cst_106 = arith.constant dense<0.000000e+00> : vector<128x8xf32>
    %137 = tpu.matmul %134, %136, %cst_106 {dimension_numbers = #tpu.dot_dimension_numbers<[1], [0], [0], [1], [0, 0, 1, 1], [], []>} : vector<128x8xf32>, vector<8x8xf32>, vector<128x8xf32> -> vector<128x8xf32>
    %138 = arith.addf %131, %137 : vector<128x8xf32>
    %139 = vector.extract_strided_slice %132 {offsets = [1, 0, 0], sizes = [8, 16, 8], strides = [1, 1, 1]} : vector<10x16x8xf32> to vector<8x16x8xf32>
    %140 = vector.shape_cast %139 : vector<8x16x8xf32> to vector<128x8xf32>
    %c4_107 = arith.constant 4 : index
    %c0_108 = arith.constant 0 : index
    %c0_109 = arith.constant 0 : index
    %141 = vector.load %arg4[%c4_107, %c0_108, %c0_109] : memref<9x8x8xf32, #tpu.memory_space<vmem>>, vector<1x8x8xf32>
    %142 = vector.shape_cast %141 : vector<1x8x8xf32> to vector<8x8xf32>
    %cst_110 = arith.constant dense<0.000000e+00> : vector<128x8xf32>
    %143 = tpu.matmul %140, %142, %cst_110 {dimension_numbers = #tpu.dot_dimension_numbers<[1], [0], [0], [1], [0, 0, 1, 1], [], []>} : vector<128x8xf32>, vector<8x8xf32>, vector<128x8xf32> -> vector<128x8xf32>
    %144 = arith.addf %138, %143 : vector<128x8xf32>
    %145 = vector.extract_strided_slice %132 {offsets = [2, 0, 0], sizes = [8, 16, 8], strides = [1, 1, 1]} : vector<10x16x8xf32> to vector<8x16x8xf32>
    %146 = vector.shape_cast %145 : vector<8x16x8xf32> to vector<128x8xf32>
    %c7_111 = arith.constant 7 : index
    %c0_112 = arith.constant 0 : index
    %c0_113 = arith.constant 0 : index
    %147 = vector.load %arg4[%c7_111, %c0_112, %c0_113] : memref<9x8x8xf32, #tpu.memory_space<vmem>>, vector<1x8x8xf32>
    %148 = vector.shape_cast %147 : vector<1x8x8xf32> to vector<8x8xf32>
    %cst_114 = arith.constant dense<0.000000e+00> : vector<128x8xf32>
    %149 = tpu.matmul %146, %148, %cst_114 {dimension_numbers = #tpu.dot_dimension_numbers<[1], [0], [0], [1], [0, 0, 1, 1], [], []>} : vector<128x8xf32>, vector<8x8xf32>, vector<128x8xf32> -> vector<128x8xf32>
    %150 = arith.addf %144, %149 : vector<128x8xf32>
    %151 = vector.extract_strided_slice %111 {offsets = [0, 2, 0], sizes = [10, 16, 8], strides = [1, 1, 1]} : vector<10x18x8xf32> to vector<10x16x8xf32>
    %152 = vector.extract_strided_slice %151 {offsets = [0, 0, 0], sizes = [8, 16, 8], strides = [1, 1, 1]} : vector<10x16x8xf32> to vector<8x16x8xf32>
    %153 = vector.shape_cast %152 : vector<8x16x8xf32> to vector<128x8xf32>
    %c2_115 = arith.constant 2 : index
    %c0_116 = arith.constant 0 : index
    %c0_117 = arith.constant 0 : index
    %154 = vector.load %arg4[%c2_115, %c0_116, %c0_117] : memref<9x8x8xf32, #tpu.memory_space<vmem>>, vector<1x8x8xf32>
    %155 = vector.shape_cast %154 : vector<1x8x8xf32> to vector<8x8xf32>
    %cst_118 = arith.constant dense<0.000000e+00> : vector<128x8xf32>
    %156 = tpu.matmul %153, %155, %cst_118 {dimension_numbers = #tpu.dot_dimension_numbers<[1], [0], [0], [1], [0, 0, 1, 1], [], []>} : vector<128x8xf32>, vector<8x8xf32>, vector<128x8xf32> -> vector<128x8xf32>
    %157 = arith.addf %150, %156 : vector<128x8xf32>
    %158 = vector.extract_strided_slice %151 {offsets = [1, 0, 0], sizes = [8, 16, 8], strides = [1, 1, 1]} : vector<10x16x8xf32> to vector<8x16x8xf32>
    %159 = vector.shape_cast %158 : vector<8x16x8xf32> to vector<128x8xf32>
    %c5_119 = arith.constant 5 : index
    %c0_120 = arith.constant 0 : index
    %c0_121 = arith.constant 0 : index
    %160 = vector.load %arg4[%c5_119, %c0_120, %c0_121] : memref<9x8x8xf32, #tpu.memory_space<vmem>>, vector<1x8x8xf32>
    %161 = vector.shape_cast %160 : vector<1x8x8xf32> to vector<8x8xf32>
    %cst_122 = arith.constant dense<0.000000e+00> : vector<128x8xf32>
    %162 = tpu.matmul %159, %161, %cst_122 {dimension_numbers = #tpu.dot_dimension_numbers<[1], [0], [0], [1], [0, 0, 1, 1], [], []>} : vector<128x8xf32>, vector<8x8xf32>, vector<128x8xf32> -> vector<128x8xf32>
    %163 = arith.addf %157, %162 : vector<128x8xf32>
    %164 = vector.extract_strided_slice %151 {offsets = [2, 0, 0], sizes = [8, 16, 8], strides = [1, 1, 1]} : vector<10x16x8xf32> to vector<8x16x8xf32>
    %165 = vector.shape_cast %164 : vector<8x16x8xf32> to vector<128x8xf32>
    %c8_123 = arith.constant 8 : index
    %c0_124 = arith.constant 0 : index
    %c0_125 = arith.constant 0 : index
    %166 = vector.load %arg4[%c8_123, %c0_124, %c0_125] : memref<9x8x8xf32, #tpu.memory_space<vmem>>, vector<1x8x8xf32>
    %167 = vector.shape_cast %166 : vector<1x8x8xf32> to vector<8x8xf32>
    %cst_126 = arith.constant dense<0.000000e+00> : vector<128x8xf32>
    %168 = tpu.matmul %165, %167, %cst_126 {dimension_numbers = #tpu.dot_dimension_numbers<[1], [0], [0], [1], [0, 0, 1, 1], [], []>} : vector<128x8xf32>, vector<8x8xf32>, vector<128x8xf32> -> vector<128x8xf32>
    %169 = arith.addf %163, %168 : vector<128x8xf32>
    %c0_127 = arith.constant 0 : index
    %c0_128 = arith.constant 0 : index
    %170 = vector.load %arg5[%c0_127, %c0_128] : memref<1x8xf32, #tpu.memory_space<vmem>>, vector<1x8xf32>
    %171 = vector.broadcast %170 : vector<1x8xf32> to vector<128x8xf32>
    %172 = arith.addf %169, %171 : vector<128x8xf32>
    %cst_129 = arith.constant 0.000000e+00 : f32
    %173 = vector.broadcast %cst_129 : f32 to vector<128x8xf32>
    %174 = arith.maximumf %172, %173 : vector<128x8xf32>
    %c0_130 = arith.constant 0 : index
    %c0_131 = arith.constant 0 : index
    %175 = vector.load %arg6[%c0_130, %c0_131] : memref<8x32xf32, #tpu.memory_space<vmem>>, vector<8x32xf32>
    %cst_132 = arith.constant dense<0.000000e+00> : vector<128x32xf32>
    %176 = tpu.matmul %174, %175, %cst_132 {dimension_numbers = #tpu.dot_dimension_numbers<[1], [0], [0], [1], [0, 0, 1, 1], [], []>} : vector<128x8xf32>, vector<8x32xf32>, vector<128x32xf32> -> vector<128x32xf32>
    %c0_133 = arith.constant 0 : index
    %c8_134 = arith.constant 8 : index
    %c0_135 = arith.constant 0 : index
    %c0_136 = arith.constant 0 : index
    %177 = vector.load %arg1[%c0_133, %c8_134, %c0_135, %c0_136] : memref<1x16x16x32xf32, #tpu.memory_space<vmem>>, vector<1x8x16x32xf32>
    %178 = vector.shape_cast %177 : vector<1x8x16x32xf32> to vector<8x16x32xf32>
    %179 = vector.shape_cast %178 : vector<8x16x32xf32> to vector<128x32xf32>
    %c0_137 = arith.constant 0 : index
    %c0_138 = arith.constant 0 : index
    %180 = vector.load %arg7[%c0_137, %c0_138] : memref<1x32xf32, #tpu.memory_space<vmem>>, vector<1x32xf32>
    %181 = vector.broadcast %180 : vector<1x32xf32> to vector<128x32xf32>
    %182 = arith.addf %176, %181 : vector<128x32xf32>
    %183 = arith.addf %182, %179 : vector<128x32xf32>
    %cst_139 = arith.constant 0.000000e+00 : f32
    %184 = vector.broadcast %cst_139 : f32 to vector<128x32xf32>
    %185 = arith.maximumf %183, %184 : vector<128x32xf32>
    %186 = vector.shape_cast %185 : vector<128x32xf32> to vector<8x16x32xf32>
    %c0_140 = arith.constant 0 : index
    %c8_141 = arith.constant 8 : index
    %c0_142 = arith.constant 0 : index
    %c0_143 = arith.constant 0 : index
    %187 = vector.load %arg8[%c0_140, %c8_141, %c0_142, %c0_143] : memref<1x16x16x32xf32, #tpu.memory_space<vmem>>, vector<1x8x16x32xf32>
    %188 = vector.shape_cast %187 : vector<1x8x16x32xf32> to vector<8x16x32xf32>
    %189 = vector.shape_cast %186 : vector<8x16x32xf32> to vector<1x8x16x32xf32>
    tpu.vector_store %arg8[%c0_140, %c8_141, %c0_142, %c0_143], %189 {strides = array<i32>} : memref<1x16x16x32xf32, #tpu.memory_space<vmem>>, vector<1x8x16x32xf32>,
    return
  }
  func.func @transform_0(%arg0: i32) -> (i32, i32, i32, i32) {
    %c0_i32 = arith.constant 0 : i32
    %c0_i32_0 = arith.constant 0 : i32
    %c0_i32_1 = arith.constant 0 : i32
    %c0_i32_2 = arith.constant 0 : i32
    return %arg0, %c0_i32, %c0_i32_0, %c0_i32_1 : i32, i32, i32, i32
  }
  func.func @transform_1(%arg0: i32) -> (i32, i32) {
    %c0_i32 = arith.constant 0 : i32
    %c0_i32_0 = arith.constant 0 : i32
    %c0_i32_1 = arith.constant 0 : i32
    return %c0_i32, %c0_i32_0 : i32, i32
  }
  func.func @transform_2(%arg0: i32) -> (i32, i32) {
    %c0_i32 = arith.constant 0 : i32
    %c0_i32_0 = arith.constant 0 : i32
    %c0_i32_1 = arith.constant 0 : i32
    return %c0_i32, %c0_i32_0 : i32, i32
  }
  func.func @transform_3(%arg0: i32) -> (i32, i32, i32) {
    %c0_i32 = arith.constant 0 : i32
    %c0_i32_0 = arith.constant 0 : i32
    %c0_i32_1 = arith.constant 0 : i32
    %c0_i32_2 = arith.constant 0 : i32
    return %c0_i32, %c0_i32_0, %c0_i32_1 : i32, i32, i32
  }
  func.func @transform_4(%arg0: i32) -> (i32, i32) {
    %c0_i32 = arith.constant 0 : i32
    %c0_i32_0 = arith.constant 0 : i32
    %c0_i32_1 = arith.constant 0 : i32
    return %c0_i32, %c0_i32_0 : i32, i32
  }
  func.func @transform_5(%arg0: i32) -> (i32, i32) {
    %c0_i32 = arith.constant 0 : i32
    %c0_i32_0 = arith.constant 0 : i32
    %c0_i32_1 = arith.constant 0 : i32
    return %c0_i32, %c0_i32_0 : i32, i32
  }
  func.func @transform_6(%arg0: i32) -> (i32, i32) {
    %c0_i32 = arith.constant 0 : i32
    %c0_i32_0 = arith.constant 0 : i32
    %c0_i32_1 = arith.constant 0 : i32
    return %c0_i32, %c0_i32_0 : i32, i32
  }
  func.func @transform_7(%arg0: i32) -> (i32, i32, i32, i32) {
    %c0_i32 = arith.constant 0 : i32
    %c0_i32_0 = arith.constant 0 : i32
    %c0_i32_1 = arith.constant 0 : i32
    %c0_i32_2 = arith.constant 0 : i32
    return %arg0, %c0_i32, %c0_i32_0, %c0_i32_1 : i32, i32, i32, i32
  }
}

</mosaic_0001>

<llo_original>
// kernel: tpu_custom_call.1
$region0: #{tpu_custom_call.1}
  #allocation0 [shape = 'u32[]', space=smem, size = 0x4, offset = 0x4, fixed_abs, tag = 'smem constant byte address 0x4 - core index']
  #allocation1 [shape = 'u32[144,128]{1,0:T(1,128)}', space=vmem, size = 0x12000, scoped, tag = 'internal scratch']
  #allocation2 [shape = 'f32[18,18,8]{2,1,0:T(8,128)}', space=vmem, size = 0x36000, scoped, tag = 'scratch operand']
  %s0 = inlined_call_operand.hbm [shape: f32[2,16,16,32], index: 0, kind: input, shape index: {}]
  %s1 = inlined_call_operand.vmem [shape: f32[32,8], index: 1, kind: input, shape index: {}]
  %s2 = inlined_call_operand.vmem [shape: f32[1,8], index: 2, kind: input, shape index: {}]
  %s3 = inlined_call_operand.vmem [shape: f32[9,8,8], index: 3, kind: input, shape index: {}]
  %s4 = inlined_call_operand.vmem [shape: f32[1,8], index: 4, kind: input, shape index: {}]
  %s5 = inlined_call_operand.vmem [shape: f32[8,32], index: 5, kind: input, shape index: {}]
  %s6 = inlined_call_operand.vmem [shape: f32[1,32], index: 6, kind: input, shape index: {}]
  %s7 = inlined_call_operand.hbm [shape: f32[2,16,16,32], index: 7, kind: output, shape index: {}]
  %s8 = sld [smem:[#allocation0]]
  $region65: #{tpu_custom_call.1} parent=0
    _
  %s10 = ssub.s32 1, %s8
  %s11 = scalar_select 0, %s10, %s8
  $region1: #{tpu_custom_call.1} parent=0
    #allocation3 [shape = 'u8[262144]{0}', space=vmem, size = 0x40000, scoped, tag = 'input window, operand 0']
    #allocation4 [shape = 's32[2]{0}', space=sflag, size = 0x8, scoped, tag = 'scoped memory for tpu_custom_call.1']
    #allocation5 [shape = 's32[2]{0}', space=sflag, size = 0x8, scoped, tag = 'scoped memory for tpu_custom_call.1']
    #allocation6 [shape = 'u8[262144]{0}', space=vmem, size = 0x40000, scoped, tag = 'output window, operand 0']
    %12 = vsyncpa [#allocation4], 0
    %s13 = scalar_lea.sflag [#allocation4], 1
    %14 = vsyncpa %s13, 0
    %15 = vsyncpa [#allocation5], 0
    %s16 = scalar_lea.sflag [#allocation5], 1
    %17 = vsyncpa %s16, 0
    loop: start=0, step=1, limit=4
    $region2: #{tpu_custom_call.1} parent=1 // loop_pre_header
      _
    $region3: #{tpu_custom_call.1} parent=1 // loop_header
      %s19 = sphi 0, %s23
      %p20 = scmp.ge.s32.totalorder %s19, 4
      %s29 = sphi 0, %s31
      %s32 = sphi 0, %s29
      %s33 = sphi 0, %s32
      %s49 = sphi 0, %s33
      %s53 = sphi 0, %s53
      %s55 = sphi 0, %s53
      %s56 = sphi 0, %s55
      %s70 = sphi 0, %s56
      %s74 = sphi 0, %s74
      %s76 = sphi 0, %s74
      %s77 = sphi 0, %s76
      %s91 = sphi 0, %s77
      %s95 = sphi 0, %s95
      %s97 = sphi 0, %s95
      %s98 = sphi 0, %s97
      %s112 = sphi 0, %s98
      %s116 = sphi 0, %s116
      %s118 = sphi 0, %s116
      %s119 = sphi 0, %s118
      %s133 = sphi 0, %s119
      %s137 = sphi 0, %s137
      %s139 = sphi 0, %s137
      %s140 = sphi 0, %s139
      %s154 = sphi 0, %s140
      %s158 = sphi 0, %s158
      %s160 = sphi 0, %s158
      %s161 = sphi 0, %s160
      %s175 = sphi 0, %s161
      %s181 = sphi 0, %s183
      %s184 = sphi 0, %s181
      %s185 = sphi 0, %s184
      %s201 = sphi 0, %s185
    $region4: #{tpu_custom_call.1} parent=1 // loop_header_branch
      %22 = sbr.rel (%p20) target = $region8
    $region5: #{tpu_custom_call.1} parent=1 // loop_body
      %s24 = ssub.s32 %s19, 1
      %s25 = ssub.s32 %s19, 2
      %s26 = sadd.s32 %s19, 1
      %s27 = ssub.s32 %s19, %s26
      %p28 = scmp.eq.s32.totalorder %s27, 0
      %s30 = sadd.s32 %s29, 1
      %s31 = scalar_select %p28, %s29, %s30
      %p34 = pneg %p28
      %p35 = scmp.eq.s32.totalorder %s19, 1
      %p36 = por %p34, %p35
      %p37 = scmp.ne.s32.totalorder %s29, %s32
      %p38 = scmp.eq.s32.totalorder %s19, 0
      %p39 = por %p37, %p38
      %p40 = scmp.ne.s32.totalorder %s29, %s32
      %p41 = scmp.eq.s32.totalorder %s24, 1
      %p42 = por %p40, %p41
      %p43 = scmp.ne.s32.totalorder %s32, %s33
      %p44 = scmp.eq.s32.totalorder %s24, 0
      %p45 = por %p43, %p44
      %p46 = scmp.ne.s32.totalorder %s32, %s33
      %p47 = scmp.eq.s32.totalorder %s25, 1
      %p48 = por %p46, %p47
      %p50 = scmp.ne.s32.totalorder %s33, %s49
      %p51 = scmp.eq.s32.totalorder %s25, 0
      %p52 = por %p50, %p51
      %s54 = sadd.s32 %s53, 1
      %p57 = scmp.eq.s32.totalorder %s19, 1
      %p58 = scmp.ne.s32.totalorder %s53, %s55
      %p59 = scmp.eq.s32.totalorder %s19, 0
      %p60 = por %p58, %p59
      %p61 = scmp.ne.s32.totalorder %s53, %s55
      %p62 = scmp.eq.s32.totalorder %s24, 1
      %p63 = por %p61, %p62
      %p64 = scmp.ne.s32.totalorder %s55, %s56
      %p65 = scmp.eq.s32.totalorder %s24, 0
      %p66 = por %p64, %p65
      %p67 = scmp.ne.s32.totalorder %s55, %s56
      %p68 = scmp.eq.s32.totalorder %s25, 1
      %p69 = por %p67, %p68
      %p71 = scmp.ne.s32.totalorder %s56, %s70
      %p72 = scmp.eq.s32.totalorder %s25, 0
      %p73 = por %p71, %p72
      %s75 = sadd.s32 %s74, 1
      %p78 = scmp.eq.s32.totalorder %s19, 1
      %p79 = scmp.ne.s32.totalorder %s74, %s76
      %p80 = scmp.eq.s32.totalorder %s19, 0
      %p81 = por %p79, %p80
      %p82 = scmp.ne.s32.totalorder %s74, %s76
      %p83 = scmp.eq.s32.totalorder %s24, 1
      %p84 = por %p82, %p83
      %p85 = scmp.ne.s32.totalorder %s76, %s77
      %p86 = scmp.eq.s32.totalorder %s24, 0
      %p87 = por %p85, %p86
      %p88 = scmp.ne.s32.totalorder %s76, %s77
      %p89 = scmp.eq.s32.totalorder %s25, 1
      %p90 = por %p88, %p89
      %p92 = scmp.ne.s32.totalorder %s77, %s91
      %p93 = scmp.eq.s32.totalorder %s25, 0
      %p94 = por %p92, %p93
      %s96 = sadd.s32 %s95, 1
      %p99 = scmp.eq.s32.totalorder %s19, 1
      %p100 = scmp.ne.s32.totalorder %s95, %s97
      %p101 = scmp.eq.s32.totalorder %s19, 0
      %p102 = por %p100, %p101
      %p103 = scmp.ne.s32.totalorder %s95, %s97
      %p104 = scmp.eq.s32.totalorder %s24, 1
      %p105 = por %p103, %p104
      %p106 = scmp.ne.s32.totalorder %s97, %s98
      %p107 = scmp.eq.s32.totalorder %s24, 0
      %p108 = por %p106, %p107
      %p109 = scmp.ne.s32.totalorder %s97, %s98
      %p110 = scmp.eq.s32.totalorder %s25, 1
      %p111 = por %p109, %p110
      %p113 = scmp.ne.s32.totalorder %s98, %s112
      %p114 = scmp.eq.s32.totalorder %s25, 0
      %p115 = por %p113, %p114
      %s117 = sadd.s32 %s116, 1
      %p120 = scmp.eq.s32.totalorder %s19, 1
      %p121 = scmp.ne.s32.totalorder %s116, %s118
      %p122 = scmp.eq.s32.totalorder %s19, 0
      %p123 = por %p121, %p122
      %p124 = scmp.ne.s32.totalorder %s116, %s118
      %p125 = scmp.eq.s32.totalorder %s24, 1
      %p126 = por %p124, %p125
      %p127 = scmp.ne.s32.totalorder %s118, %s119
      %p128 = scmp.eq.s32.totalorder %s24, 0
      %p129 = por %p127, %p128
      %p130 = scmp.ne.s32.totalorder %s118, %s119
      %p131 = scmp.eq.s32.totalorder %s25, 1
      %p132 = por %p130, %p131
      %p134 = scmp.ne.s32.totalorder %s119, %s133
      %p135 = scmp.eq.s32.totalorder %s25, 0
      %p136 = por %p134, %p135
      %s138 = sadd.s32 %s137, 1
      %p141 = scmp.eq.s32.totalorder %s19, 1
      %p142 = scmp.ne.s32.totalorder %s137, %s139
      %p143 = scmp.eq.s32.totalorder %s19, 0
      %p144 = por %p142, %p143
      %p145 = scmp.ne.s32.totalorder %s137, %s139
      %p146 = scmp.eq.s32.totalorder %s24, 1
      %p147 = por %p145, %p146
      %p148 = scmp.ne.s32.totalorder %s139, %s140
      %p149 = scmp.eq.s32.totalorder %s24, 0
      %p150 = por %p148, %p149
      %p151 = scmp.ne.s32.totalorder %s139, %s140
      %p152 = scmp.eq.s32.totalorder %s25, 1
      %p153 = por %p151, %p152
      %p155 = scmp.ne.s32.totalorder %s140, %s154
      %p156 = scmp.eq.s32.totalorder %s25, 0
      %p157 = por %p155, %p156
      %s159 = sadd.s32 %s158, 1
      %p162 = scmp.eq.s32.totalorder %s19, 1
      %p163 = scmp.ne.s32.totalorder %s158, %s160
      %p164 = scmp.eq.s32.totalorder %s19, 0
      %p165 = por %p163, %p164
      %p166 = scmp.ne.s32.totalorder %s158, %s160
      %p167 = scmp.eq.s32.totalorder %s24, 1
      %p168 = por %p166, %p167
      %p169 = scmp.ne.s32.totalorder %s160, %s161
      %p170 = scmp.eq.s32.totalorder %s24, 0
      %p171 = por %p169, %p170
      %p172 = scmp.ne.s32.totalorder %s160, %s161
      %p173 = scmp.eq.s32.totalorder %s25, 1
      %p174 = por %p172, %p173
      %p176 = scmp.ne.s32.totalorder %s161, %s175
      %p177 = scmp.eq.s32.totalorder %s25, 0
      %p178 = por %p176, %p177
      %s179 = ssub.s32 %s19, %s26
      %p180 = scmp.eq.s32.totalorder %s179, 0
      %s182 = sadd.s32 %s181, 1
      %s183 = scalar_select %p180, %s181, %s182
      %p186 = pneg %p180
      %p187 = scmp.eq.s32.totalorder %s19, 1
      %p188 = por %p186, %p187
      %p189 = scmp.ne.s32.totalorder %s181, %s184
      %p190 = scmp.eq.s32.totalorder %s19, 0
      %p191 = por %p189, %p190
      %p192 = scmp.ne.s32.totalorder %s181, %s184
      %p193 = scmp.eq.s32.totalorder %s24, 1
      %p194 = por %p192, %p193
      %p195 = scmp.ne.s32.totalorder %s184, %s185
      %p196 = scmp.eq.s32.totalorder %s24, 0
      %p197 = por %p195, %p196
      %p198 = scmp.ne.s32.totalorder %s184, %s185
      %p199 = scmp.eq.s32.totalorder %s25, 1
      %p200 = por %p198, %p199
      %p202 = scmp.ne.s32.totalorder %s185, %s201
      %p203 = scmp.eq.s32.totalorder %s25, 0
      %p204 = por %p202, %p203
      %p205 = scmp.le.s32.totalorder 1, %s19
      %p206 = scmp.lt.s32.totalorder %s19, 3
      %p207 = pnand %p205, %p206
      %p208 = pneg %p207
      // Predicated region
      $region9: #{tpu_custom_call.1} parent=5 // pred_check
        _
      $region10: #{tpu_custom_call.1} parent=5 // pred_check_branch
        %210 = sbr.rel (%p207) target = $region12
      $region11: #{tpu_custom_call.1} parent=5 // pred_region
        %s211 = ssub.s32 %s19, 1
        // Predicated region
        $region13: #{tpu_custom_call.1} parent=11 // pred_check
          %p212 = pneg %p66
        $region14: #{tpu_custom_call.1} parent=11 // pred_check_branch
          %214 = sbr.rel (%p212) target = $region16
        $region15: #{tpu_custom_call.1} parent=11 // pred_region
          _
        $region16: #{tpu_custom_call.1} parent=11 // pred_fallthru
          _
        // Predicated region
        $region17: #{tpu_custom_call.1} parent=11 // pred_check
          %p215 = pneg %p87
        $region18: #{tpu_custom_call.1} parent=11 // pred_check_branch
          %217 = sbr.rel (%p215) target = $region20
        $region19: #{tpu_custom_call.1} parent=11 // pred_region
          _
        $region20: #{tpu_custom_call.1} parent=11 // pred_fallthru
          _
        // Predicated region
        $region21: #{tpu_custom_call.1} parent=11 // pred_check
          %p218 = pneg %p108
        $region22: #{tpu_custom_call.1} parent=11 // pred_check_branch
          %220 = sbr.rel (%p218) target = $region24
        $region23: #{tpu_custom_call.1} parent=11 // pred_region
          _
        $region24: #{tpu_custom_call.1} parent=11 // pred_fallthru
          _
        // Predicated region
        $region25: #{tpu_custom_call.1} parent=11 // pred_check
          %p221 = pneg %p129
        $region26: #{tpu_custom_call.1} parent=11 // pred_check_branch
          %223 = sbr.rel (%p221) target = $region28
        $region27: #{tpu_custom_call.1} parent=11 // pred_region
          _
        $region28: #{tpu_custom_call.1} parent=11 // pred_fallthru
          _
        // Predicated region
        $region29: #{tpu_custom_call.1} parent=11 // pred_check
          %p224 = pneg %p150
        $region30: #{tpu_custom_call.1} parent=11 // pred_check_branch
          %226 = sbr.rel (%p224) target = $region32
        $region31: #{tpu_custom_call.1} parent=11 // pred_region
          _
        $region32: #{tpu_custom_call.1} parent=11 // pred_fallthru
          _
        // Predicated region
        $region33: #{tpu_custom_call.1} parent=11 // pred_check
          %p227 = pneg %p171
        $region34: #{tpu_custom_call.1} parent=11 // pred_check_branch
          %229 = sbr.rel (%p227) target = $region36
        $region35: #{tpu_custom_call.1} parent=11 // pred_region
          _
        $region36: #{tpu_custom_call.1} parent=11 // pred_fallthru
          _
      $region12: #{tpu_custom_call.1} parent=5 // pred_fallthru
        _
      %p230 = scmp.lt.s32.totalorder %s19, 2
      // Predicated region
      $region37: #{tpu_custom_call.1} parent=5 // pred_check
        %p231 = pneg %p230
      $region38: #{tpu_custom_call.1} parent=5 // pred_check_branch
        %233 = sbr.rel (%p231) target = $region40
      $region39: #{tpu_custom_call.1} parent=5 // pred_region
        // Predicated region
        $region41: #{tpu_custom_call.1} parent=39 // pred_check
          %p234 = pneg %p39
        $region42: #{tpu_custom_call.1} parent=39 // pred_check_branch
          %236 = sbr.rel (%p234) target = $region44
        $region43: #{tpu_custom_call.1} parent=39 // pred_region
          %s237 = sand.u32 %s29, 1
          %s238 = scalar_lea.sflag [#allocation4], %s237
          %s239 = sand.u32 %s29, 1
          %s240 = smul.addr %s239, 256
          %s241 = scalar_lea.vmem [#allocation3], %s240
          %s243 = ssub.s32 4096, 4096
          %244 = vsyncadd %s238, %s243
          %s245 = smul.addr %s19, 32
          %s246 = smul.addr %s245, 128
          %s247 = scalar_lea.hbm %s0, %s246
          %s248 = sshll.u32 %s241, 4
          %s249 = int_to_ptr.vmem [resolvable:$true] %s248
          %254 = dma.hbm_to_vmem [thread:$0]  %s247, 4096, %s249, %s238, 128, 128, 8
        $region44: #{tpu_custom_call.1} parent=39 // pred_fallthru
          _
      $region40: #{tpu_custom_call.1} parent=5 // pred_fallthru
        _
      %p255 = scmp.le.s32.totalorder 1, %s19
      %p256 = scmp.lt.s32.totalorder %s19, 3
      %p257 = pnand %p255, %p256
      %p258 = pneg %p257
      // Predicated region
      $region45: #{tpu_custom_call.1} parent=5 // pred_check
        _
      $region46: #{tpu_custom_call.1} parent=5 // pred_check_branch
        %260 = sbr.rel (%p257) target = $region48
      $region47: #{tpu_custom_call.1} parent=5 // pred_region
        %s261 = ssub.s32 %s19, 1
        %s262 = sand.u32 %s32, 1
        %s263 = scalar_lea.sflag [#allocation4], %s262
        %s264 = sand.u32 %s32, 1
        %s265 = smul.addr %s264, 256
        %s266 = scalar_lea.vmem [#allocation3], %s265
        // Predicated region
        $region49: #{tpu_custom_call.1} parent=47 // pred_check
          %p267 = pneg %p45
        $region50: #{tpu_custom_call.1} parent=47 // pred_check_branch
          %269 = sbr.rel (%p267) target = $region52
        $region51: #{tpu_custom_call.1} parent=47 // pred_region
          %270 = dma.done %s263, 4096
        $region52: #{tpu_custom_call.1} parent=47 // pred_fallthru
          _
        %s271 = sand.u32 %s32, 1
        %s272 = scalar_lea.sflag [#allocation4], %s271
        %s273 = sand.u32 %s32, 1
        %s274 = smul.addr %s273, 256
        %s275 = scalar_lea.vmem [#allocation3], %s274
        %p276 = pneg %p45
        %p277 = pneg %p42
        %p278 = pneg %p66
        %p279 = pneg %p63
        %p280 = pneg %p87
        %p281 = pneg %p84
        %p282 = pneg %p108
        %p283 = pneg %p105
        %p284 = pneg %p129
        %p285 = pneg %p126
        %p286 = pneg %p150
        %p287 = pneg %p147
        %p288 = pneg %p171
        %p289 = pneg %p168
        %p290 = pneg %p197
        %p291 = pneg %p194
        %s292 = sand.u32 %s184, 1
        %s293 = scalar_lea.sflag [#allocation5], %s292
        %s294 = sand.u32 %s184, 1
        %s295 = smul.addr %s294, 256
        %s296 = scalar_lea.vmem [#allocation6], %s295
        %vm297 = vcmask 64512
        %298 = vst.msk [vmem:[#allocation2] sm:$0xff] %vm297, 0.0
        %299 = vst.msk [vmem:[#allocation2 + $0x8] sm:$0xff] %vm297, 0.0
        %vm300 = vcmask 58368
        %301 = vst.msk [vmem:[#allocation2 + $0x10] sm:$0x3] %vm300, 0.0
        %s302 = scalar_lea.vmem [#allocation2], 408
        %303 = vst.msk [vmem:[%s302] sm:$0xff] %vm297, 0.0
        %304 = vst.msk [vmem:[%s302 + $0x8] sm:$0xff] %vm297, 0.0
        %305 = vst.msk [vmem:[%s302 + $0x10] sm:$0x3] %vm300, 0.0
        %vm306 = vcmask 57344
        %307 = vst.msk [vmem:[#allocation2] sm:$0x1] %vm306, 0.0
        %308 = vst.msk [vmem:[#allocation2 + $0x18] sm:$0x1] %vm306, 0.0
        %309 = vst.msk [vmem:[#allocation2 + $0x30] sm:$0x1] %vm306, 0.0
        %310 = vst.msk [vmem:[#allocation2 + $0x48] sm:$0x1] %vm306, 0.0
        %311 = vst.msk [vmem:[#allocation2 + $0x60] sm:$0x1] %vm306, 0.0
        %312 = vst.msk [vmem:[#allocation2 + $0x78] sm:$0x1] %vm306, 0.0
        %313 = vst.msk [vmem:[#allocation2 + $0x90] sm:$0x1] %vm306, 0.0
        %314 = vst.msk [vmem:[#allocation2 + $0xa8] sm:$0x1] %vm306, 0.0
        %315 = vst.msk [vmem:[#allocation2 + $0xc0] sm:$0x1] %vm306, 0.0
        %316 = vst.msk [vmem:[#allocation2 + $0xd8] sm:$0x1] %vm306, 0.0
        %317 = vst.msk [vmem:[#allocation2 + $0xf0] sm:$0x1] %vm306, 0.0
        %318 = vst.msk [vmem:[#allocation2 + $0x108] sm:$0x1] %vm306, 0.0
        %319 = vst.msk [vmem:[#allocation2 + $0x120] sm:$0x1] %vm306, 0.0
        %320 = vst.msk [vmem:[#allocation2 + $0x138] sm:$0x1] %vm306, 0.0
        %321 = vst.msk [vmem:[#allocation2 + $0x150] sm:$0x1] %vm306, 0.0
        %322 = vst.msk [vmem:[#allocation2 + $0x168] sm:$0x1] %vm306, 0.0
        %323 = vst.msk [vmem:[#allocation2 + $0x180] sm:$0x1] %vm306, 0.0
        %324 = vst.msk [vmem:[#allocation2 + $0x198] sm:$0x1] %vm306, 0.0
        %325 = vst.msk [vmem:[#allocation2 + $0x11] sm:$0x1] %vm306, 0.0
        %326 = vst.msk [vmem:[#allocation2 + $0x29] sm:$0x1] %vm306, 0.0
        %327 = vst.msk [vmem:[#allocation2 + $0x41] sm:$0x1] %vm306, 0.0
        %328 = vst.msk [vmem:[#allocation2 + $0x59] sm:$0x1] %vm306, 0.0
        %329 = vst.msk [vmem:[#allocation2 + $0x71] sm:$0x1] %vm306, 0.0
        %330 = vst.msk [vmem:[#allocation2 + $0x89] sm:$0x1] %vm306, 0.0
        %331 = vst.msk [vmem:[#allocation2 + $0xa1] sm:$0x1] %vm306, 0.0
        %332 = vst.msk [vmem:[#allocation2 + $0xb9] sm:$0x1] %vm306, 0.0
        %333 = vst.msk [vmem:[#allocation2 + $0xd1] sm:$0x1] %vm306, 0.0
        %334 = vst.msk [vmem:[#allocation2 + $0xe9] sm:$0x1] %vm306, 0.0
        %335 = vst.msk [vmem:[#allocation2 + $0x101] sm:$0x1] %vm306, 0.0
        %336 = vst.msk [vmem:[#allocation2 + $0x119] sm:$0x1] %vm306, 0.0
        %337 = vst.msk [vmem:[#allocation2 + $0x131] sm:$0x1] %vm306, 0.0
        %338 = vst.msk [vmem:[#allocation2 + $0x149] sm:$0x1] %vm306, 0.0
        %339 = vst.msk [vmem:[#allocation2 + $0x161] sm:$0x1] %vm306, 0.0
        %340 = vst.msk [vmem:[#allocation2 + $0x179] sm:$0x1] %vm306, 0.0
        %341 = vst.msk [vmem:[#allocation2 + $0x191] sm:$0x1] %vm306, 0.0
        %342 = vst.msk [vmem:[#allocation2 + $0x1a9] sm:$0x1] %vm306, 0.0
        %v343 = vld [vmem:[%s266] sm:$0xff]
        %v344 = vld [vmem:[%s266 + $0x8] sm:$0xff]
        %v345 = vld [vmem:[%s266 + $0x10] sm:$0xff]
        %v346 = vld [vmem:[%s266 + $0x18] sm:$0xff]
        %v347 = vld [vmem:[%s266 + $0x20] sm:$0xff]
        %v348 = vld [vmem:[%s266 + $0x28] sm:$0xff]
        %v349 = vld [vmem:[%s266 + $0x30] sm:$0xff]
        %v350 = vld [vmem:[%s266 + $0x38] sm:$0xff]
        %v351 = vld [vmem:[%s266 + $0x40] sm:$0xff]
        %v352 = vld [vmem:[%s266 + $0x48] sm:$0xff]
        %v353 = vld [vmem:[%s266 + $0x50] sm:$0xff]
        %v354 = vld [vmem:[%s266 + $0x58] sm:$0xff]
        %v355 = vld [vmem:[%s266 + $0x60] sm:$0xff]
        %v356 = vld [vmem:[%s266 + $0x68] sm:$0xff]
        %v357 = vld [vmem:[%s266 + $0x70] sm:$0xff]
        %v358 = vld [vmem:[%s266 + $0x78] sm:$0xff]
        %v359 = vld [vmem:[%s1] sm:$0xff]
        %v360 = vld [vmem:[%s1 + $0x8] sm:$0xff]
        %v361 = vld [vmem:[%s1 + $0x10] sm:$0xff]
        %v362 = vld [vmem:[%s1 + $0x18] sm:$0xff]
        %v363 = vld [vmem:[%s2] sm:$0x1]
        %v365 = vlaneseq
        %v366 = vshrl.u32 %v365, 7
        %v367 = vsub.s32 0, %v366
        %v368 = vrot.slane %v363, %v367
        %vm370 = vcmask 261120
        %v372 = vsel %vm370, %v343, 0
        %v375 = vsel %vm370, %v344, 0
        %v378 = vsel %vm370, %v345, 0
        %v381 = vsel %vm370, %v346, 0
        %v384 = vsel %vm370, %v347, 0
        %v387 = vsel %vm370, %v348, 0
        %v390 = vsel %vm370, %v349, 0
        %v393 = vsel %vm370, %v350, 0
        %v396 = vsel %vm370, %v351, 0
        %v399 = vsel %vm370, %v352, 0
        %v402 = vsel %vm370, %v353, 0
        %v405 = vsel %vm370, %v354, 0
        %v408 = vsel %vm370, %v355, 0
        %v411 = vsel %vm370, %v356, 0
        %v414 = vsel %vm370, %v357, 0
        %v417 = vsel %vm370, %v358, 0
        %419 = vmatprep.subr.mxu0 0.0
        %420 = vmatpush1.msra.mxu0 0.0
        %421 = vmatprep.subr.mxu0 0.0
        %422 = vmatpush1.msra.mxu0 0.0
        %423 = vmatprep.subr.mxu0 0.0
        %424 = vmatpush1.msra.mxu0 0.0
        %425 = vmatprep.subr.mxu0 0.0
        %426 = vmatpush1.msra.mxu0 0.0
        %427 = vmatprep.subr.mxu0 0.0
        %428 = vmatpush1.msra.mxu0 0.0
        %429 = vmatprep.subr.mxu0 0.0
        %430 = vmatpush1.msra.mxu0 0.0
        %431 = vmatprep.subr.mxu0 0.0
        %432 = vmatpush1.msra.mxu0 0.0
        %433 = vmatprep.subr.mxu0 0.0
        %434 = vmatpush1.msra.mxu0 0.0
        %435 = vmatprep.subr.mxu0 0.0
        %436 = vmatpush1.msra.mxu0 0.0
        %437 = vmatprep.subr.mxu0 0.0
        %438 = vmatpush1.msra.mxu0 0.0
        %439 = vmatprep.subr.mxu0 0.0
        %440 = vmatpush1.msra.mxu0 0.0
        %441 = vmatprep.subr.mxu0 0.0
        %442 = vmatpush1.msra.mxu0 0.0
        %443 = vmatprep.subr.mxu0 0.0
        %444 = vmatpush1.msra.mxu0 %v362
        %445 = vmatprep.subr.mxu0 0.0
        %446 = vmatpush1.msra.mxu0 %v361
        %447 = vmatprep.subr.mxu0 0.0
        %448 = vmatpush1.msra.mxu0 %v360
        %449 = vmatprep.subr.mxu0 0.0
        %450 = vmatpush1.msra.mxu0 %v359
        %451 = vmatprep.subr.mxu0 0.0
        %452 = vmatpush2.msra.mxu0 0.0
        %453 = vmatprep.subr.mxu0 0.0
        %454 = vmatpush2.msra.mxu0 0.0
        %455 = vmatprep.subr.mxu0 0.0
        %456 = vmatpush2.msra.mxu0 0.0
        %457 = vmatprep.subr.mxu0 0.0
        %458 = vmatpush2.msra.mxu0 0.0
        %459 = vmatprep.subr.mxu0 0.0
        %460 = vmatpush2.msra.mxu0 0.0
        %461 = vmatprep.subr.mxu0 0.0
        %462 = vmatpush2.msra.mxu0 0.0
        %463 = vmatprep.subr.mxu0 0.0
        %464 = vmatpush2.msra.mxu0 0.0
        %465 = vmatprep.subr.mxu0 0.0
        %466 = vmatpush2.msra.mxu0 0.0
        %467 = vmatprep.subr.mxu0 0.0
        %468 = vmatpush2.msra.mxu0 0.0
        %469 = vmatprep.subr.mxu0 0.0
        %470 = vmatpush2.msra.mxu0 0.0
        %471 = vmatprep.subr.mxu0 0.0
        %472 = vmatpush2.msra.mxu0 0.0
        %473 = vmatprep.subr.mxu0 0.0
        %474 = vmatpush2.msra.mxu0 0.0
        %475 = vmatprep.subr.mxu0 0.0
        %476 = vmatpush2.msra.mxu0 0.0
        %477 = vmatprep.subr.mxu0 0.0
        %478 = vmatpush2.msra.mxu0 0.0
        %479 = vmatprep.subr.mxu0 0.0
        %480 = vmatpush2.msra.mxu0 0.0
        %481 = vmatprep.subr.mxu0 0.0
        %482 = vmatpush2.msra.mxu0 0.0
        %483 = vmatprep.mubr.f32.mxu0 0.0
        %484 = vmatmul.mubr.f32.gmra.mxu0 %v372
        %v485 = vpop.f32.mrf.mxu0
        %v486 = vadd.f32 %v368, %v485
        %v487 = vpop.f32.mrf.mxu0
        %488 = vmatprep.mubr.f32.mxu0 0.0
        %489 = vmatmul.mubr.f32.gmra.mxu0 %v375
        %v490 = vpop.f32.mrf.mxu0
        %v491 = vadd.f32 %v368, %v490
        %v492 = vpop.f32.mrf.mxu0
        %493 = vmatprep.mubr.f32.mxu0 0.0
        %494 = vmatmul.mubr.f32.gmra.mxu0 %v378
        %v495 = vpop.f32.mrf.mxu0
        %v496 = vadd.f32 %v368, %v495
        %v497 = vpop.f32.mrf.mxu0
        %498 = vmatprep.mubr.f32.mxu0 0.0
        %499 = vmatmul.mubr.f32.gmra.mxu0 %v381
        %v500 = vpop.f32.mrf.mxu0
        %v501 = vadd.f32 %v368, %v500
        %v502 = vpop.f32.mrf.mxu0
        %503 = vmatprep.mubr.f32.mxu0 0.0
        %504 = vmatmul.mubr.f32.gmra.mxu0 %v384
        %v505 = vpop.f32.mrf.mxu0
        %v506 = vadd.f32 %v368, %v505
        %v507 = vpop.f32.mrf.mxu0
        %508 = vmatprep.mubr.f32.mxu0 0.0
        %509 = vmatmul.mubr.f32.gmra.mxu0 %v387
        %v510 = vpop.f32.mrf.mxu0
        %v511 = vadd.f32 %v368, %v510
        %v512 = vpop.f32.mrf.mxu0
        %513 = vmatprep.mubr.f32.mxu0 0.0
        %514 = vmatmul.mubr.f32.gmra.mxu0 %v390
        %v515 = vpop.f32.mrf.mxu0
        %v516 = vadd.f32 %v368, %v515
        %v517 = vpop.f32.mrf.mxu0
        %518 = vmatprep.mubr.f32.mxu0 0.0
        %519 = vmatmul.mubr.f32.gmra.mxu0 %v393
        %v520 = vpop.f32.mrf.mxu0
        %v521 = vadd.f32 %v368, %v520
        %v522 = vpop.f32.mrf.mxu0
        %523 = vmatprep.mubr.f32.mxu0 0.0
        %524 = vmatmul.mubr.f32.gmra.mxu0 %v396
        %v525 = vpop.f32.mrf.mxu0
        %v526 = vadd.f32 %v368, %v525
        %v527 = vpop.f32.mrf.mxu0
        %528 = vmatprep.mubr.f32.mxu0 0.0
        %529 = vmatmul.mubr.f32.gmra.mxu0 %v399
        %v530 = vpop.f32.mrf.mxu0
        %v531 = vadd.f32 %v368, %v530
        %v532 = vpop.f32.mrf.mxu0
        %533 = vmatprep.mubr.f32.mxu0 0.0
        %534 = vmatmul.mubr.f32.gmra.mxu0 %v402
        %v535 = vpop.f32.mrf.mxu0
        %v536 = vadd.f32 %v368, %v535
        %v537 = vpop.f32.mrf.mxu0
        %538 = vmatprep.mubr.f32.mxu0 0.0
        %539 = vmatmul.mubr.f32.gmra.mxu0 %v405
        %v540 = vpop.f32.mrf.mxu0
        %v541 = vadd.f32 %v368, %v540
        %v542 = vpop.f32.mrf.mxu0
        %543 = vmatprep.mubr.f32.mxu0 0.0
        %544 = vmatmul.mubr.f32.gmra.mxu0 %v408
        %v545 = vpop.f32.mrf.mxu0
        %v546 = vadd.f32 %v368, %v545
        %v547 = vpop.f32.mrf.mxu0
        %548 = vmatprep.mubr.f32.mxu0 0.0
        %549 = vmatmul.mubr.f32.gmra.mxu0 %v411
        %v550 = vpop.f32.mrf.mxu0
        %v551 = vadd.f32 %v368, %v550
        %v552 = vpop.f32.mrf.mxu0
        %553 = vmatprep.mubr.f32.mxu0 0.0
        %554 = vmatmul.mubr.f32.gmra.mxu0 %v414
        %v555 = vpop.f32.mrf.mxu0
        %v556 = vadd.f32 %v368, %v555
        %v557 = vpop.f32.mrf.mxu0
        %558 = vmatprep.mubr.f32.mxu0 0.0
        %559 = vmatmul.mubr.f32.gmra.mxu0 %v417
        %v560 = vpop.f32.mrf.mxu0
        %v561 = vadd.f32 %v368, %v560
        %v562 = vpop.f32.mrf.mxu0
        %563 = vdwg.mxu0
        %v564 = vmax.f32 %v486, 0.0
        %v565 = vmax.f32 %v491, 0.0
        %v566 = vmax.f32 %v496, 0.0
        %v567 = vmax.f32 %v501, 0.0
        %v568 = vmax.f32 %v506, 0.0
        %v569 = vmax.f32 %v511, 0.0
        %v570 = vmax.f32 %v516, 0.0
        %v571 = vmax.f32 %v521, 0.0
        %v572 = vmax.f32 %v526, 0.0
        %v573 = vmax.f32 %v531, 0.0
        %v574 = vmax.f32 %v536, 0.0
        %v575 = vmax.f32 %v541, 0.0
        %v576 = vmax.f32 %v546, 0.0
        %v577 = vmax.f32 %v551, 0.0
        %v578 = vmax.f32 %v556, 0.0
        %v579 = vmax.f32 %v561, 0.0
        %s580 = scalar_lea.vmem [#allocation2], 24
        %581 = vst.msk [vmem:[%s580 + $0x1] sm:$0xff] %vm297, %v564
        %582 = vst.msk [vmem:[%s580 + $0x9] sm:$0xff] %vm297, %v565
        %583 = vst.msk [vmem:[%s580 + $0x19] sm:$0xff] %vm297, %v566
        %584 = vst.msk [vmem:[%s580 + $0x21] sm:$0xff] %vm297, %v567
        %585 = vst.msk [vmem:[%s580 + $0x31] sm:$0xff] %vm297, %v568
        %586 = vst.msk [vmem:[%s580 + $0x39] sm:$0xff] %vm297, %v569
        %587 = vst.msk [vmem:[%s580 + $0x49] sm:$0xff] %vm297, %v570
        %588 = vst.msk [vmem:[%s580 + $0x51] sm:$0xff] %vm297, %v571
        %589 = vst.msk [vmem:[%s580 + $0x61] sm:$0xff] %vm297, %v572
        %590 = vst.msk [vmem:[%s580 + $0x69] sm:$0xff] %vm297, %v573
        %591 = vst.msk [vmem:[%s580 + $0x79] sm:$0xff] %vm297, %v574
        %592 = vst.msk [vmem:[%s580 + $0x81] sm:$0xff] %vm297, %v575
        %593 = vst.msk [vmem:[%s580 + $0x91] sm:$0xff] %vm297, %v576
        %594 = vst.msk [vmem:[%s580 + $0x99] sm:$0xff] %vm297, %v577
        %595 = vst.msk [vmem:[%s580 + $0xa9] sm:$0xff] %vm297, %v578
        %596 = vst.msk [vmem:[%s580 + $0xb1] sm:$0xff] %vm297, %v579
        %s597 = scalar_lea.vmem %s266, 128 [#allocation3]
        %v598 = vld [vmem:[%s597] sm:$0xff]
        %v599 = vld [vmem:[%s597 + $0x8] sm:$0xff]
        %v600 = vld [vmem:[%s597 + $0x10] sm:$0xff]
        %v601 = vld [vmem:[%s597 + $0x18] sm:$0xff]
        %v602 = vld [vmem:[%s597 + $0x20] sm:$0xff]
        %v603 = vld [vmem:[%s597 + $0x28] sm:$0xff]
        %v604 = vld [vmem:[%s597 + $0x30] sm:$0xff]
        %v605 = vld [vmem:[%s597 + $0x38] sm:$0xff]
        %v606 = vld [vmem:[%s597 + $0x40] sm:$0xff]
        %v607 = vld [vmem:[%s597 + $0x48] sm:$0xff]
        %v608 = vld [vmem:[%s597 + $0x50] sm:$0xff]
        %v609 = vld [vmem:[%s597 + $0x58] sm:$0xff]
        %v610 = vld [vmem:[%s597 + $0x60] sm:$0xff]
        %v611 = vld [vmem:[%s597 + $0x68] sm:$0xff]
        %v612 = vld [vmem:[%s597 + $0x70] sm:$0xff]
        %v613 = vld [vmem:[%s597 + $0x78] sm:$0xff]
        %v614 = vld [vmem:[%s1] sm:$0xff]
        %v615 = vld [vmem:[%s1 + $0x8] sm:$0xff]
        %v616 = vld [vmem:[%s1 + $0x10] sm:$0xff]
        %v617 = vld [vmem:[%s1 + $0x18] sm:$0xff]
        %v618 = vld [vmem:[%s2] sm:$0x1]
        %v620 = vlaneseq
        %v621 = vshrl.u32 %v620, 7
        %v622 = vsub.s32 0, %v621
        %v623 = vrot.slane %v618, %v622
        %v626 = vsel %vm370, %v598, 0
        %v629 = vsel %vm370, %v599, 0
        %v632 = vsel %vm370, %v600, 0
        %v635 = vsel %vm370, %v601, 0
        %v638 = vsel %vm370, %v602, 0
        %v641 = vsel %vm370, %v603, 0
        %v644 = vsel %vm370, %v604, 0
        %v647 = vsel %vm370, %v605, 0
        %v650 = vsel %vm370, %v606, 0
        %v653 = vsel %vm370, %v607, 0
        %v656 = vsel %vm370, %v608, 0
        %v659 = vsel %vm370, %v609, 0
        %v662 = vsel %vm370, %v610, 0
        %v665 = vsel %vm370, %v611, 0
        %v668 = vsel %vm370, %v612, 0
        %v671 = vsel %vm370, %v613, 0
        %673 = vmatprep.subr.mxu0 0.0
        %674 = vmatpush1.msra.mxu0 0.0
        %675 = vmatprep.subr.mxu0 0.0
        %676 = vmatpush1.msra.mxu0 0.0
        %677 = vmatprep.subr.mxu0 0.0
        %678 = vmatpush1.msra.mxu0 0.0
        %679 = vmatprep.subr.mxu0 0.0
        %680 = vmatpush1.msra.mxu0 0.0
        %681 = vmatprep.subr.mxu0 0.0
        %682 = vmatpush1.msra.mxu0 0.0
        %683 = vmatprep.subr.mxu0 0.0
        %684 = vmatpush1.msra.mxu0 0.0
        %685 = vmatprep.subr.mxu0 0.0
        %686 = vmatpush1.msra.mxu0 0.0
        %687 = vmatprep.subr.mxu0 0.0
        %688 = vmatpush1.msra.mxu0 0.0
        %689 = vmatprep.subr.mxu0 0.0
        %690 = vmatpush1.msra.mxu0 0.0
        %691 = vmatprep.subr.mxu0 0.0
        %692 = vmatpush1.msra.mxu0 0.0
        %693 = vmatprep.subr.mxu0 0.0
        %694 = vmatpush1.msra.mxu0 0.0
        %695 = vmatprep.subr.mxu0 0.0
        %696 = vmatpush1.msra.mxu0 0.0
        %697 = vmatprep.subr.mxu0 0.0
        %698 = vmatpush1.msra.mxu0 %v617
        %699 = vmatprep.subr.mxu0 0.0
        %700 = vmatpush1.msra.mxu0 %v616
        %701 = vmatprep.subr.mxu0 0.0
        %702 = vmatpush1.msra.mxu0 %v615
        %703 = vmatprep.subr.mxu0 0.0
        %704 = vmatpush1.msra.mxu0 %v614
        %705 = vmatprep.subr.mxu0 0.0
        %706 = vmatpush2.msra.mxu0 0.0
        %707 = vmatprep.subr.mxu0 0.0
        %708 = vmatpush2.msra.mxu0 0.0
        %709 = vmatprep.subr.mxu0 0.0
        %710 = vmatpush2.msra.mxu0 0.0
        %711 = vmatprep.subr.mxu0 0.0
        %712 = vmatpush2.msra.mxu0 0.0
        %713 = vmatprep.subr.mxu0 0.0
        %714 = vmatpush2.msra.mxu0 0.0
        %715 = vmatprep.subr.mxu0 0.0
        %716 = vmatpush2.msra.mxu0 0.0
        %717 = vmatprep.subr.mxu0 0.0
        %718 = vmatpush2.msra.mxu0 0.0
        %719 = vmatprep.subr.mxu0 0.0
        %720 = vmatpush2.msra.mxu0 0.0
        %721 = vmatprep.subr.mxu0 0.0
        %722 = vmatpush2.msra.mxu0 0.0
        %723 = vmatprep.subr.mxu0 0.0
        %724 = vmatpush2.msra.mxu0 0.0
        %725 = vmatprep.subr.mxu0 0.0
        %726 = vmatpush2.msra.mxu0 0.0
        %727 = vmatprep.subr.mxu0 0.0
        %728 = vmatpush2.msra.mxu0 0.0
        %729 = vmatprep.subr.mxu0 0.0
        %730 = vmatpush2.msra.mxu0 0.0
        %731 = vmatprep.subr.mxu0 0.0
        %732 = vmatpush2.msra.mxu0 0.0
        %733 = vmatprep.subr.mxu0 0.0
        %734 = vmatpush2.msra.mxu0 0.0
        %735 = vmatprep.subr.mxu0 0.0
        %736 = vmatpush2.msra.mxu0 0.0
        %737 = vmatprep.mubr.f32.mxu0 0.0
        %738 = vmatmul.mubr.f32.gmra.mxu0 %v626
        %v739 = vpop.f32.mrf.mxu0
        %v740 = vadd.f32 %v623, %v739
        %v741 = vpop.f32.mrf.mxu0
        %742 = vmatprep.mubr.f32.mxu0 0.0
        %743 = vmatmul.mubr.f32.gmra.mxu0 %v629
        %v744 = vpop.f32.mrf.mxu0
        %v745 = vadd.f32 %v623, %v744
        %v746 = vpop.f32.mrf.mxu0
        %747 = vmatprep.mubr.f32.mxu0 0.0
        %748 = vmatmul.mubr.f32.gmra.mxu0 %v632
        %v749 = vpop.f32.mrf.mxu0
        %v750 = vadd.f32 %v623, %v749
        %v751 = vpop.f32.mrf.mxu0
        %752 = vmatprep.mubr.f32.mxu0 0.0
        %753 = vmatmul.mubr.f32.gmra.mxu0 %v635
        %v754 = vpop.f32.mrf.mxu0
        %v755 = vadd.f32 %v623, %v754
        %v756 = vpop.f32.mrf.mxu0
        %757 = vmatprep.mubr.f32.mxu0 0.0
        %758 = vmatmul.mubr.f32.gmra.mxu0 %v638
        %v759 = vpop.f32.mrf.mxu0
        %v760 = vadd.f32 %v623, %v759
        %v761 = vpop.f32.mrf.mxu0
        %762 = vmatprep.mubr.f32.mxu0 0.0
        %763 = vmatmul.mubr.f32.gmra.mxu0 %v641
        %v764 = vpop.f32.mrf.mxu0
        %v765 = vadd.f32 %v623, %v764
        %v766 = vpop.f32.mrf.mxu0
        %767 = vmatprep.mubr.f32.mxu0 0.0
        %768 = vmatmul.mubr.f32.gmra.mxu0 %v644
        %v769 = vpop.f32.mrf.mxu0
        %v770 = vadd.f32 %v623, %v769
        %v771 = vpop.f32.mrf.mxu0
        %772 = vmatprep.mubr.f32.mxu0 0.0
        %773 = vmatmul.mubr.f32.gmra.mxu0 %v647
        %v774 = vpop.f32.mrf.mxu0
        %v775 = vadd.f32 %v623, %v774
        %v776 = vpop.f32.mrf.mxu0
        %777 = vmatprep.mubr.f32.mxu0 0.0
        %778 = vmatmul.mubr.f32.gmra.mxu0 %v650
        %v779 = vpop.f32.mrf.mxu0
        %v780 = vadd.f32 %v623, %v779
        %v781 = vpop.f32.mrf.mxu0
        %782 = vmatprep.mubr.f32.mxu0 0.0
        %783 = vmatmul.mubr.f32.gmra.mxu0 %v653
        %v784 = vpop.f32.mrf.mxu0
        %v785 = vadd.f32 %v623, %v784
        %v786 = vpop.f32.mrf.mxu0
        %787 = vmatprep.mubr.f32.mxu0 0.0
        %788 = vmatmul.mubr.f32.gmra.mxu0 %v656
        %v789 = vpop.f32.mrf.mxu0
        %v790 = vadd.f32 %v623, %v789
        %v791 = vpop.f32.mrf.mxu0
        %792 = vmatprep.mubr.f32.mxu0 0.0
        %793 = vmatmul.mubr.f32.gmra.mxu0 %v659
        %v794 = vpop.f32.mrf.mxu0
        %v795 = vadd.f32 %v623, %v794
        %v796 = vpop.f32.mrf.mxu0
        %797 = vmatprep.mubr.f32.mxu0 0.0
        %798 = vmatmul.mubr.f32.gmra.mxu0 %v662
        %v799 = vpop.f32.mrf.mxu0
        %v800 = vadd.f32 %v623, %v799
        %v801 = vpop.f32.mrf.mxu0
        %802 = vmatprep.mubr.f32.mxu0 0.0
        %803 = vmatmul.mubr.f32.gmra.mxu0 %v665
        %v804 = vpop.f32.mrf.mxu0
        %v805 = vadd.f32 %v623, %v804
        %v806 = vpop.f32.mrf.mxu0
        %807 = vmatprep.mubr.f32.mxu0 0.0
        %808 = vmatmul.mubr.f32.gmra.mxu0 %v668
        %v809 = vpop.f32.mrf.mxu0
        %v810 = vadd.f32 %v623, %v809
        %v811 = vpop.f32.mrf.mxu0
        %812 = vmatprep.mubr.f32.mxu0 0.0
        %813 = vmatmul.mubr.f32.gmra.mxu0 %v671
        %v814 = vpop.f32.mrf.mxu0
        %v815 = vadd.f32 %v623, %v814
        %v816 = vpop.f32.mrf.mxu0
        %817 = vdwg.mxu0
        %v818 = vmax.f32 %v740, 0.0
        %v819 = vmax.f32 %v745, 0.0
        %v820 = vmax.f32 %v750, 0.0
        %v821 = vmax.f32 %v755, 0.0
        %v822 = vmax.f32 %v760, 0.0
        %v823 = vmax.f32 %v765, 0.0
        %v824 = vmax.f32 %v770, 0.0
        %v825 = vmax.f32 %v775, 0.0
        %v826 = vmax.f32 %v780, 0.0
        %v827 = vmax.f32 %v785, 0.0
        %v828 = vmax.f32 %v790, 0.0
        %v829 = vmax.f32 %v795, 0.0
        %v830 = vmax.f32 %v800, 0.0
        %v831 = vmax.f32 %v805, 0.0
        %v832 = vmax.f32 %v810, 0.0
        %v833 = vmax.f32 %v815, 0.0
        %s834 = scalar_lea.vmem [#allocation2], 216
        %835 = vst.msk [vmem:[%s834 + $0x1] sm:$0xff] %vm297, %v818
        %836 = vst.msk [vmem:[%s834 + $0x9] sm:$0xff] %vm297, %v819
        %837 = vst.msk [vmem:[%s834 + $0x19] sm:$0xff] %vm297, %v820
        %838 = vst.msk [vmem:[%s834 + $0x21] sm:$0xff] %vm297, %v821
        %839 = vst.msk [vmem:[%s834 + $0x31] sm:$0xff] %vm297, %v822
        %840 = vst.msk [vmem:[%s834 + $0x39] sm:$0xff] %vm297, %v823
        %841 = vst.msk [vmem:[%s834 + $0x49] sm:$0xff] %vm297, %v824
        %842 = vst.msk [vmem:[%s834 + $0x51] sm:$0xff] %vm297, %v825
        %843 = vst.msk [vmem:[%s834 + $0x61] sm:$0xff] %vm297, %v826
        %844 = vst.msk [vmem:[%s834 + $0x69] sm:$0xff] %vm297, %v827
        %845 = vst.msk [vmem:[%s834 + $0x79] sm:$0xff] %vm297, %v828
        %846 = vst.msk [vmem:[%s834 + $0x81] sm:$0xff] %vm297, %v829
        %847 = vst.msk [vmem:[%s834 + $0x91] sm:$0xff] %vm297, %v830
        %848 = vst.msk [vmem:[%s834 + $0x99] sm:$0xff] %vm297, %v831
        %849 = vst.msk [vmem:[%s834 + $0xa9] sm:$0xff] %vm297, %v832
        %850 = vst.msk [vmem:[%s834 + $0xb1] sm:$0xff] %vm297, %v833
        %v851 = vld [vmem:[#allocation2] sm:$0xff]
        %v852 = vld [vmem:[#allocation2 + $0x8] sm:$0xff]
        %v853 = vld [vmem:[#allocation2 + $0x10] sm:$0x3]
        %v854 = vld [vmem:[#allocation2 + $0x18] sm:$0xff]
        %v855 = vld [vmem:[#allocation2 + $0x20] sm:$0xff]
        %v856 = vld [vmem:[#allocation2 + $0x28] sm:$0x3]
        %v857 = vld [vmem:[#allocation2 + $0x30] sm:$0xff]
        %v858 = vld [vmem:[#allocation2 + $0x38] sm:$0xff]
        %v859 = vld [vmem:[#allocation2 + $0x40] sm:$0x3]
        %v860 = vld [vmem:[#allocation2 + $0x48] sm:$0xff]
        %v861 = vld [vmem:[#allocation2 + $0x50] sm:$0xff]
        %v862 = vld [vmem:[#allocation2 + $0x58] sm:$0x3]
        %v863 = vld [vmem:[#allocation2 + $0x60] sm:$0xff]
        %v864 = vld [vmem:[#allocation2 + $0x68] sm:$0xff]
        %v865 = vld [vmem:[#allocation2 + $0x70] sm:$0x3]
        %v866 = vld [vmem:[#allocation2 + $0x78] sm:$0xff]
        %v867 = vld [vmem:[#allocation2 + $0x80] sm:$0xff]
        %v868 = vld [vmem:[#allocation2 + $0x88] sm:$0x3]
        %v869 = vld [vmem:[#allocation2 + $0x90] sm:$0xff]
        %v870 = vld [vmem:[#allocation2 + $0x98] sm:$0xff]
        %v871 = vld [vmem:[#allocation2 + $0xa0] sm:$0x3]
        %v872 = vld [vmem:[#allocation2 + $0xa8] sm:$0xff]
        %v873 = vld [vmem:[#allocation2 + $0xb0] sm:$0xff]
        %v874 = vld [vmem:[#allocation2 + $0xb8] sm:$0x3]
        %v875 = vld [vmem:[#allocation2 + $0xc0] sm:$0xff]
        %v876 = vld [vmem:[#allocation2 + $0xc8] sm:$0xff]
        %v877 = vld [vmem:[#allocation2 + $0xd0] sm:$0x3]
        %v878 = vld [vmem:[#allocation2 + $0xd8] sm:$0xff]
        %v879 = vld [vmem:[#allocation2 + $0xe0] sm:$0xff]
        %v880 = vld [vmem:[#allocation2 + $0xe8] sm:$0x3]
        %v881 = vld [vmem:[%s3] sm:$0xff]
        %s882 = scalar_lea.vmem %s3, 24
        %v883 = vld [vmem:[%s882] sm:$0xff]
        %v885 = vsel %vm297, %v854, 0
        %v888 = vsel %vm297, %v855, 0
        %v891 = vsel %vm297, %v857, 0
        %v894 = vsel %vm297, %v858, 0
        %v897 = vsel %vm297, %v860, 0
        %v900 = vsel %vm297, %v861, 0
        %v903 = vsel %vm297, %v863, 0
        %v906 = vsel %vm297, %v864, 0
        %v909 = vsel %vm297, %v866, 0
        %v912 = vsel %vm297, %v867, 0
        %v915 = vsel %vm297, %v869, 0
        %v918 = vsel %vm297, %v870, 0
        %v921 = vsel %vm297, %v872, 0
        %v924 = vsel %vm297, %v873, 0
        %v927 = vsel %vm297, %v875, 0
        %v930 = vsel %vm297, %v876, 0
        %932 = vmatprep.subr.mxu0 0.0
        %933 = vmatpush1.msra.mxu0 0.0
        %934 = vmatprep.subr.mxu0 0.0
        %935 = vmatpush1.msra.mxu0 0.0
        %936 = vmatprep.subr.mxu0 0.0
        %937 = vmatpush1.msra.mxu0 0.0
        %938 = vmatprep.subr.mxu0 0.0
        %939 = vmatpush1.msra.mxu0 0.0
        %940 = vmatprep.subr.mxu0 0.0
        %941 = vmatpush1.msra.mxu0 0.0
        %942 = vmatprep.subr.mxu0 0.0
        %943 = vmatpush1.msra.mxu0 0.0
        %944 = vmatprep.subr.mxu0 0.0
        %945 = vmatpush1.msra.mxu0 0.0
        %946 = vmatprep.subr.mxu0 0.0
        %947 = vmatpush1.msra.mxu0 0.0
        %948 = vmatprep.subr.mxu0 0.0
        %949 = vmatpush1.msra.mxu0 0.0
        %950 = vmatprep.subr.mxu0 0.0
        %951 = vmatpush1.msra.mxu0 0.0
        %952 = vmatprep.subr.mxu0 0.0
        %953 = vmatpush1.msra.mxu0 0.0
        %954 = vmatprep.subr.mxu0 0.0
        %955 = vmatpush1.msra.mxu0 0.0
        %956 = vmatprep.subr.mxu0 0.0
        %957 = vmatpush1.msra.mxu0 0.0
        %958 = vmatprep.subr.mxu0 0.0
        %959 = vmatpush1.msra.mxu0 0.0
        %960 = vmatprep.subr.mxu0 0.0
        %961 = vmatpush1.msra.mxu0 0.0
        %962 = vmatprep.subr.mxu0 0.0
        %963 = vmatpush1.msra.mxu0 %v883
        %964 = vmatprep.subr.mxu0 0.0
        %965 = vmatpush2.msra.mxu0 0.0
        %966 = vmatprep.subr.mxu0 0.0
        %967 = vmatpush2.msra.mxu0 0.0
        %968 = vmatprep.subr.mxu0 0.0
        %969 = vmatpush2.msra.mxu0 0.0
        %970 = vmatprep.subr.mxu0 0.0
        %971 = vmatpush2.msra.mxu0 0.0
        %972 = vmatprep.subr.mxu0 0.0
        %973 = vmatpush2.msra.mxu0 0.0
        %974 = vmatprep.subr.mxu0 0.0
        %975 = vmatpush2.msra.mxu0 0.0
        %976 = vmatprep.subr.mxu0 0.0
        %977 = vmatpush2.msra.mxu0 0.0
        %978 = vmatprep.subr.mxu0 0.0
        %979 = vmatpush2.msra.mxu0 0.0
        %980 = vmatprep.subr.mxu0 0.0
        %981 = vmatpush2.msra.mxu0 0.0
        %982 = vmatprep.subr.mxu0 0.0
        %983 = vmatpush2.msra.mxu0 0.0
        %984 = vmatprep.subr.mxu0 0.0
        %985 = vmatpush2.msra.mxu0 0.0
        %986 = vmatprep.subr.mxu0 0.0
        %987 = vmatpush2.msra.mxu0 0.0
        %988 = vmatprep.subr.mxu0 0.0
        %989 = vmatpush2.msra.mxu0 0.0
        %990 = vmatprep.subr.mxu0 0.0
        %991 = vmatpush2.msra.mxu0 0.0
        %992 = vmatprep.subr.mxu0 0.0
        %993 = vmatpush2.msra.mxu0 0.0
        %994 = vmatprep.subr.mxu0 0.0
        %995 = vmatpush2.msra.mxu0 0.0
        %996 = vmatprep.mubr.f32.mxu0 0.0
        %997 = vmatmul.mubr.f32.gmra.mxu0 %v885
        %v998 = vpop.f32.mrf.mxu0
        %v999 = vadd.f32 0.0, %v998
        %v1000 = vpop.f32.mrf.mxu0
        %1001 = vmatprep.mubr.f32.mxu0 0.0
        %1002 = vmatmul.mubr.f32.gmra.mxu0 %v888
        %v1003 = vpop.f32.mrf.mxu0
        %v1004 = vadd.f32 0.0, %v1003
        %v1005 = vpop.f32.mrf.mxu0
        %1006 = vmatprep.mubr.f32.mxu0 0.0
        %1007 = vmatmul.mubr.f32.gmra.mxu0 %v891
        %v1008 = vpop.f32.mrf.mxu0
        %v1009 = vadd.f32 0.0, %v1008
        %v1010 = vpop.f32.mrf.mxu0
        %1011 = vmatprep.mubr.f32.mxu0 0.0
        %1012 = vmatmul.mubr.f32.gmra.mxu0 %v894
        %v1013 = vpop.f32.mrf.mxu0
        %v1014 = vadd.f32 0.0, %v1013
        %v1015 = vpop.f32.mrf.mxu0
        %1016 = vmatprep.mubr.f32.mxu0 0.0
        %1017 = vmatmul.mubr.f32.gmra.mxu0 %v897
        %v1018 = vpop.f32.mrf.mxu0
        %v1019 = vadd.f32 0.0, %v1018
        %v1020 = vpop.f32.mrf.mxu0
        %1021 = vmatprep.mubr.f32.mxu0 0.0
        %1022 = vmatmul.mubr.f32.gmra.mxu0 %v900
        %v1023 = vpop.f32.mrf.mxu0
        %v1024 = vadd.f32 0.0, %v1023
        %v1025 = vpop.f32.mrf.mxu0
        %1026 = vmatprep.mubr.f32.mxu0 0.0
        %1027 = vmatmul.mubr.f32.gmra.mxu0 %v903
        %v1028 = vpop.f32.mrf.mxu0
        %v1029 = vadd.f32 0.0, %v1028
        %v1030 = vpop.f32.mrf.mxu0
        %1031 = vmatprep.mubr.f32.mxu0 0.0
        %1032 = vmatmul.mubr.f32.gmra.mxu0 %v906
        %v1033 = vpop.f32.mrf.mxu0
        %v1034 = vadd.f32 0.0, %v1033
        %v1035 = vpop.f32.mrf.mxu0
        %1036 = vmatprep.mubr.f32.mxu0 0.0
        %1037 = vmatmul.mubr.f32.gmra.mxu0 %v909
        %v1038 = vpop.f32.mrf.mxu0
        %v1039 = vadd.f32 0.0, %v1038
        %v1040 = vpop.f32.mrf.mxu0
        %1041 = vmatprep.mubr.f32.mxu0 0.0
        %1042 = vmatmul.mubr.f32.gmra.mxu0 %v912
        %v1043 = vpop.f32.mrf.mxu0
        %v1044 = vadd.f32 0.0, %v1043
        %v1045 = vpop.f32.mrf.mxu0
        %1046 = vmatprep.mubr.f32.mxu0 0.0
        %1047 = vmatmul.mubr.f32.gmra.mxu0 %v915
        %v1048 = vpop.f32.mrf.mxu0
        %v1049 = vadd.f32 0.0, %v1048
        %v1050 = vpop.f32.mrf.mxu0
        %1051 = vmatprep.mubr.f32.mxu0 0.0
        %1052 = vmatmul.mubr.f32.gmra.mxu0 %v918
        %v1053 = vpop.f32.mrf.mxu0
        %v1054 = vadd.f32 0.0, %v1053
        %v1055 = vpop.f32.mrf.mxu0
        %1056 = vmatprep.mubr.f32.mxu0 0.0
        %1057 = vmatmul.mubr.f32.gmra.mxu0 %v921
        %v1058 = vpop.f32.mrf.mxu0
        %v1059 = vadd.f32 0.0, %v1058
        %v1060 = vpop.f32.mrf.mxu0
        %1061 = vmatprep.mubr.f32.mxu0 0.0
        %1062 = vmatmul.mubr.f32.gmra.mxu0 %v924
        %v1063 = vpop.f32.mrf.mxu0
        %v1064 = vadd.f32 0.0, %v1063
        %v1065 = vpop.f32.mrf.mxu0
        %1066 = vmatprep.mubr.f32.mxu0 0.0
        %1067 = vmatmul.mubr.f32.gmra.mxu0 %v927
        %v1068 = vpop.f32.mrf.mxu0
        %v1069 = vadd.f32 0.0, %v1068
        %v1070 = vpop.f32.mrf.mxu0
        %1071 = vmatprep.mubr.f32.mxu0 0.0
        %1072 = vmatmul.mubr.f32.gmra.mxu0 %v930
        %v1073 = vpop.f32.mrf.mxu0
        %v1074 = vadd.f32 0.0, %v1073
        %v1075 = vpop.f32.mrf.mxu0
        %1076 = vdwg.mxu0
        %v1078 = vsel %vm297, %v851, 0
        %v1081 = vsel %vm297, %v852, 0
        %1083 = vmatprep.subr.mxu0 0.0
        %1084 = vmatpush1.msra.mxu0 0.0
        %1085 = vmatprep.subr.mxu0 0.0
        %1086 = vmatpush1.msra.mxu0 0.0
        %1087 = vmatprep.subr.mxu0 0.0
        %1088 = vmatpush1.msra.mxu0 0.0
        %1089 = vmatprep.subr.mxu0 0.0
        %1090 = vmatpush1.msra.mxu0 0.0
        %1091 = vmatprep.subr.mxu0 0.0
        %1092 = vmatpush1.msra.mxu0 0.0
        %1093 = vmatprep.subr.mxu0 0.0
        %1094 = vmatpush1.msra.mxu0 0.0
        %1095 = vmatprep.subr.mxu0 0.0
        %1096 = vmatpush1.msra.mxu0 0.0
        %1097 = vmatprep.subr.mxu0 0.0
        %1098 = vmatpush1.msra.mxu0 0.0
        %1099 = vmatprep.subr.mxu0 0.0
        %1100 = vmatpush1.msra.mxu0 0.0
        %1101 = vmatprep.subr.mxu0 0.0
        %1102 = vmatpush1.msra.mxu0 0.0
        %1103 = vmatprep.subr.mxu0 0.0
        %1104 = vmatpush1.msra.mxu0 0.0
        %1105 = vmatprep.subr.mxu0 0.0
        %1106 = vmatpush1.msra.mxu0 0.0
        %1107 = vmatprep.subr.mxu0 0.0
        %1108 = vmatpush1.msra.mxu0 0.0
        %1109 = vmatprep.subr.mxu0 0.0
        %1110 = vmatpush1.msra.mxu0 0.0
        %1111 = vmatprep.subr.mxu0 0.0
        %1112 = vmatpush1.msra.mxu0 0.0
        %1113 = vmatprep.subr.mxu0 0.0
        %1114 = vmatpush1.msra.mxu0 %v881
        %1115 = vmatprep.subr.mxu0 0.0
        %1116 = vmatpush2.msra.mxu0 0.0
        %1117 = vmatprep.subr.mxu0 0.0
        %1118 = vmatpush2.msra.mxu0 0.0
        %1119 = vmatprep.subr.mxu0 0.0
        %1120 = vmatpush2.msra.mxu0 0.0
        %1121 = vmatprep.subr.mxu0 0.0
        %1122 = vmatpush2.msra.mxu0 0.0
        %1123 = vmatprep.subr.mxu0 0.0
        %1124 = vmatpush2.msra.mxu0 0.0
        %1125 = vmatprep.subr.mxu0 0.0
        %1126 = vmatpush2.msra.mxu0 0.0
        %1127 = vmatprep.subr.mxu0 0.0
        %1128 = vmatpush2.msra.mxu0 0.0
        %1129 = vmatprep.subr.mxu0 0.0
        %1130 = vmatpush2.msra.mxu0 0.0
        %1131 = vmatprep.subr.mxu0 0.0
        %1132 = vmatpush2.msra.mxu0 0.0
        %1133 = vmatprep.subr.mxu0 0.0
        %1134 = vmatpush2.msra.mxu0 0.0
        %1135 = vmatprep.subr.mxu0 0.0
        %1136 = vmatpush2.msra.mxu0 0.0
        %1137 = vmatprep.subr.mxu0 0.0
        %1138 = vmatpush2.msra.mxu0 0.0
        %1139 = vmatprep.subr.mxu0 0.0
        %1140 = vmatpush2.msra.mxu0 0.0
        %1141 = vmatprep.subr.mxu0 0.0
        %1142 = vmatpush2.msra.mxu0 0.0
        %1143 = vmatprep.subr.mxu0 0.0
        %1144 = vmatpush2.msra.mxu0 0.0
        %1145 = vmatprep.subr.mxu0 0.0
        %1146 = vmatpush2.msra.mxu0 0.0
        %1147 = vmatprep.mubr.f32.mxu0 0.0
        %1148 = vmatmul.mubr.f32.gmra.mxu0 %v1078
        %v1149 = vpop.f32.mrf.mxu0
        %v1150 = vadd.f32 %v999, %v1149
        %v1151 = vpop.f32.mrf.mxu0
        %1152 = vmatprep.mubr.f32.mxu0 0.0
        %1153 = vmatmul.mubr.f32.gmra.mxu0 %v1081
        %v1154 = vpop.f32.mrf.mxu0
        %v1155 = vadd.f32 %v1004, %v1154
        %v1156 = vpop.f32.mrf.mxu0
        %1157 = vmatprep.mubr.f32.mxu0 0.0
        %1158 = vmatmul.mubr.f32.gmra.mxu0 %v885
        %v1159 = vpop.f32.mrf.mxu0
        %v1160 = vadd.f32 %v1009, %v1159
        %v1161 = vpop.f32.mrf.mxu0
        %1162 = vmatprep.mubr.f32.mxu0 0.0
        %1163 = vmatmul.mubr.f32.gmra.mxu0 %v888
        %v1164 = vpop.f32.mrf.mxu0
        %v1165 = vadd.f32 %v1014, %v1164
        %v1166 = vpop.f32.mrf.mxu0
        %1167 = vmatprep.mubr.f32.mxu0 0.0
        %1168 = vmatmul.mubr.f32.gmra.mxu0 %v891
        %v1169 = vpop.f32.mrf.mxu0
        %v1170 = vadd.f32 %v1019, %v1169
        %v1171 = vpop.f32.mrf.mxu0
        %1172 = vmatprep.mubr.f32.mxu0 0.0
        %1173 = vmatmul.mubr.f32.gmra.mxu0 %v894
        %v1174 = vpop.f32.mrf.mxu0
        %v1175 = vadd.f32 %v1024, %v1174
        %v1176 = vpop.f32.mrf.mxu0
        %1177 = vmatprep.mubr.f32.mxu0 0.0
        %1178 = vmatmul.mubr.f32.gmra.mxu0 %v897
        %v1179 = vpop.f32.mrf.mxu0
        %v1180 = vadd.f32 %v1029, %v1179
        %v1181 = vpop.f32.mrf.mxu0
        %1182 = vmatprep.mubr.f32.mxu0 0.0
        %1183 = vmatmul.mubr.f32.gmra.mxu0 %v900
        %v1184 = vpop.f32.mrf.mxu0
        %v1185 = vadd.f32 %v1034, %v1184
        %v1186 = vpop.f32.mrf.mxu0
        %1187 = vmatprep.mubr.f32.mxu0 0.0
        %1188 = vmatmul.mubr.f32.gmra.mxu0 %v903
        %v1189 = vpop.f32.mrf.mxu0
        %v1190 = vadd.f32 %v1039, %v1189
        %v1191 = vpop.f32.mrf.mxu0
        %1192 = vmatprep.mubr.f32.mxu0 0.0
        %1193 = vmatmul.mubr.f32.gmra.mxu0 %v906
        %v1194 = vpop.f32.mrf.mxu0
        %v1195 = vadd.f32 %v1044, %v1194
        %v1196 = vpop.f32.mrf.mxu0
        %1197 = vmatprep.mubr.f32.mxu0 0.0
        %1198 = vmatmul.mubr.f32.gmra.mxu0 %v909
        %v1199 = vpop.f32.mrf.mxu0
        %v1200 = vadd.f32 %v1049, %v1199
        %v1201 = vpop.f32.mrf.mxu0
        %1202 = vmatprep.mubr.f32.mxu0 0.0
        %1203 = vmatmul.mubr.f32.gmra.mxu0 %v912
        %v1204 = vpop.f32.mrf.mxu0
        %v1205 = vadd.f32 %v1054, %v1204
        %v1206 = vpop.f32.mrf.mxu0
        %1207 = vmatprep.mubr.f32.mxu0 0.0
        %1208 = vmatmul.mubr.f32.gmra.mxu0 %v915
        %v1209 = vpop.f32.mrf.mxu0
        %v1210 = vadd.f32 %v1059, %v1209
        %v1211 = vpop.f32.mrf.mxu0
        %1212 = vmatprep.mubr.f32.mxu0 0.0
        %1213 = vmatmul.mubr.f32.gmra.mxu0 %v918
        %v1214 = vpop.f32.mrf.mxu0
        %v1215 = vadd.f32 %v1064, %v1214
        %v1216 = vpop.f32.mrf.mxu0
        %1217 = vmatprep.mubr.f32.mxu0 0.0
        %1218 = vmatmul.mubr.f32.gmra.mxu0 %v921
        %v1219 = vpop.f32.mrf.mxu0
        %v1220 = vadd.f32 %v1069, %v1219
        %v1221 = vpop.f32.mrf.mxu0
        %1222 = vmatprep.mubr.f32.mxu0 0.0
        %1223 = vmatmul.mubr.f32.gmra.mxu0 %v924
        %v1224 = vpop.f32.mrf.mxu0
        %v1225 = vadd.f32 %v1074, %v1224
        %v1226 = vpop.f32.mrf.mxu0
        %1227 = vdwg.mxu0
        %s1228 = scalar_lea.vmem %s3, 48
        %v1229 = vld [vmem:[%s1228] sm:$0xff]
        %v1231 = vsel %vm297, %v878, 0
        %v1234 = vsel %vm297, %v879, 0
        %1236 = vmatprep.subr.mxu0 0.0
        %1237 = vmatpush1.msra.mxu0 0.0
        %1238 = vmatprep.subr.mxu0 0.0
        %1239 = vmatpush1.msra.mxu0 0.0
        %1240 = vmatprep.subr.mxu0 0.0
        %1241 = vmatpush1.msra.mxu0 0.0
        %1242 = vmatprep.subr.mxu0 0.0
        %1243 = vmatpush1.msra.mxu0 0.0
        %1244 = vmatprep.subr.mxu0 0.0
        %1245 = vmatpush1.msra.mxu0 0.0
        %1246 = vmatprep.subr.mxu0 0.0
        %1247 = vmatpush1.msra.mxu0 0.0
        %1248 = vmatprep.subr.mxu0 0.0
        %1249 = vmatpush1.msra.mxu0 0.0
        %1250 = vmatprep.subr.mxu0 0.0
        %1251 = vmatpush1.msra.mxu0 0.0
        %1252 = vmatprep.subr.mxu0 0.0
        %1253 = vmatpush1.msra.mxu0 0.0
        %1254 = vmatprep.subr.mxu0 0.0
        %1255 = vmatpush1.msra.mxu0 0.0
        %1256 = vmatprep.subr.mxu0 0.0
        %1257 = vmatpush1.msra.mxu0 0.0
        %1258 = vmatprep.subr.mxu0 0.0
        %1259 = vmatpush1.msra.mxu0 0.0
        %1260 = vmatprep.subr.mxu0 0.0
        %1261 = vmatpush1.msra.mxu0 0.0
        %1262 = vmatprep.subr.mxu0 0.0
        %1263 = vmatpush1.msra.mxu0 0.0
        %1264 = vmatprep.subr.mxu0 0.0
        %1265 = vmatpush1.msra.mxu0 0.0
        %1266 = vmatprep.subr.mxu0 0.0
        %1267 = vmatpush1.msra.mxu0 %v1229
        %1268 = vmatprep.subr.mxu0 0.0
        %1269 = vmatpush2.msra.mxu0 0.0
        %1270 = vmatprep.subr.mxu0 0.0
        %1271 = vmatpush2.msra.mxu0 0.0
        %1272 = vmatprep.subr.mxu0 0.0
        %1273 = vmatpush2.msra.mxu0 0.0
        %1274 = vmatprep.subr.mxu0 0.0
        %1275 = vmatpush2.msra.mxu0 0.0
        %1276 = vmatprep.subr.mxu0 0.0
        %1277 = vmatpush2.msra.mxu0 0.0
        %1278 = vmatprep.subr.mxu0 0.0
        %1279 = vmatpush2.msra.mxu0 0.0
        %1280 = vmatprep.subr.mxu0 0.0
        %1281 = vmatpush2.msra.mxu0 0.0
        %1282 = vmatprep.subr.mxu0 0.0
        %1283 = vmatpush2.msra.mxu0 0.0
        %1284 = vmatprep.subr.mxu0 0.0
        %1285 = vmatpush2.msra.mxu0 0.0
        %1286 = vmatprep.subr.mxu0 0.0
        %1287 = vmatpush2.msra.mxu0 0.0
        %1288 = vmatprep.subr.mxu0 0.0
        %1289 = vmatpush2.msra.mxu0 0.0
        %1290 = vmatprep.subr.mxu0 0.0
        %1291 = vmatpush2.msra.mxu0 0.0
        %1292 = vmatprep.subr.mxu0 0.0
        %1293 = vmatpush2.msra.mxu0 0.0
        %1294 = vmatprep.subr.mxu0 0.0
        %1295 = vmatpush2.msra.mxu0 0.0
        %1296 = vmatprep.subr.mxu0 0.0
        %1297 = vmatpush2.msra.mxu0 0.0
        %1298 = vmatprep.subr.mxu0 0.0
        %1299 = vmatpush2.msra.mxu0 0.0
        %1300 = vmatprep.mubr.f32.mxu0 0.0
        %1301 = vmatmul.mubr.f32.gmra.mxu0 %v891
        %v1302 = vpop.f32.mrf.mxu0
        %v1303 = vadd.f32 0.0, %v1302
        %v1304 = vpop.f32.mrf.mxu0
        %1305 = vmatprep.mubr.f32.mxu0 0.0
        %1306 = vmatmul.mubr.f32.gmra.mxu0 %v894
        %v1307 = vpop.f32.mrf.mxu0
        %v1308 = vadd.f32 0.0, %v1307
        %v1309 = vpop.f32.mrf.mxu0
        %1310 = vmatprep.mubr.f32.mxu0 0.0
        %1311 = vmatmul.mubr.f32.gmra.mxu0 %v897
        %v1312 = vpop.f32.mrf.mxu0
        %v1313 = vadd.f32 0.0, %v1312
        %v1314 = vpop.f32.mrf.mxu0
        %1315 = vmatprep.mubr.f32.mxu0 0.0
        %1316 = vmatmul.mubr.f32.gmra.mxu0 %v900
        %v1317 = vpop.f32.mrf.mxu0
        %v1318 = vadd.f32 0.0, %v1317
        %v1319 = vpop.f32.mrf.mxu0
        %1320 = vmatprep.mubr.f32.mxu0 0.0
        %1321 = vmatmul.mubr.f32.gmra.mxu0 %v903
        %v1322 = vpop.f32.mrf.mxu0
        %v1323 = vadd.f32 0.0, %v1322
        %v1324 = vpop.f32.mrf.mxu0
        %1325 = vmatprep.mubr.f32.mxu0 0.0
        %1326 = vmatmul.mubr.f32.gmra.mxu0 %v906
        %v1327 = vpop.f32.mrf.mxu0
        %v1328 = vadd.f32 0.0, %v1327
        %v1329 = vpop.f32.mrf.mxu0
        %1330 = vmatprep.mubr.f32.mxu0 0.0
        %1331 = vmatmul.mubr.f32.gmra.mxu0 %v909
        %v1332 = vpop.f32.mrf.mxu0
        %v1333 = vadd.f32 0.0, %v1332
        %v1334 = vpop.f32.mrf.mxu0
        %1335 = vmatprep.mubr.f32.mxu0 0.0
        %1336 = vmatmul.mubr.f32.gmra.mxu0 %v912
        %v1337 = vpop.f32.mrf.mxu0
        %v1338 = vadd.f32 0.0, %v1337
        %v1339 = vpop.f32.mrf.mxu0
        %1340 = vmatprep.mubr.f32.mxu0 0.0
        %1341 = vmatmul.mubr.f32.gmra.mxu0 %v915
        %v1342 = vpop.f32.mrf.mxu0
        %v1343 = vadd.f32 0.0, %v1342
        %v1344 = vpop.f32.mrf.mxu0
        %1345 = vmatprep.mubr.f32.mxu0 0.0
        %1346 = vmatmul.mubr.f32.gmra.mxu0 %v918
        %v1347 = vpop.f32.mrf.mxu0
        %v1348 = vadd.f32 0.0, %v1347
        %v1349 = vpop.f32.mrf.mxu0
        %1350 = vmatprep.mubr.f32.mxu0 0.0
        %1351 = vmatmul.mubr.f32.gmra.mxu0 %v921
        %v1352 = vpop.f32.mrf.mxu0
        %v1353 = vadd.f32 0.0, %v1352
        %v1354 = vpop.f32.mrf.mxu0
        %1355 = vmatprep.mubr.f32.mxu0 0.0
        %1356 = vmatmul.mubr.f32.gmra.mxu0 %v924
        %v1357 = vpop.f32.mrf.mxu0
        %v1358 = vadd.f32 0.0, %v1357
        %v1359 = vpop.f32.mrf.mxu0
        %1360 = vmatprep.mubr.f32.mxu0 0.0
        %1361 = vmatmul.mubr.f32.gmra.mxu0 %v927
        %v1362 = vpop.f32.mrf.mxu0
        %v1363 = vadd.f32 0.0, %v1362
        %v1364 = vpop.f32.mrf.mxu0
        %1365 = vmatprep.mubr.f32.mxu0 0.0
        %1366 = vmatmul.mubr.f32.gmra.mxu0 %v930
        %v1367 = vpop.f32.mrf.mxu0
        %v1368 = vadd.f32 0.0, %v1367
        %v1369 = vpop.f32.mrf.mxu0
        %1370 = vmatprep.mubr.f32.mxu0 0.0
        %1371 = vmatmul.mubr.f32.gmra.mxu0 %v1231
        %v1372 = vpop.f32.mrf.mxu0
        %v1373 = vadd.f32 0.0, %v1372
        %v1374 = vpop.f32.mrf.mxu0
        %1375 = vmatprep.mubr.f32.mxu0 0.0
        %1376 = vmatmul.mubr.f32.gmra.mxu0 %v1234
        %v1377 = vpop.f32.mrf.mxu0
        %v1378 = vadd.f32 0.0, %v1377
        %v1379 = vpop.f32.mrf.mxu0
        %1380 = vdwg.mxu0
        %v1381 = vadd.f32 %v1150, %v1303
        %v1382 = vadd.f32 %v1155, %v1308
        %v1383 = vadd.f32 %v1160, %v1313
        %v1384 = vadd.f32 %v1165, %v1318
        %v1385 = vadd.f32 %v1170, %v1323
        %v1386 = vadd.f32 %v1175, %v1328
        %v1387 = vadd.f32 %v1180, %v1333
        %v1388 = vadd.f32 %v1185, %v1338
        %v1389 = vadd.f32 %v1190, %v1343
        %v1390 = vadd.f32 %v1195, %v1348
        %v1391 = vadd.f32 %v1200, %v1353
        %v1392 = vadd.f32 %v1205, %v1358
        %v1393 = vadd.f32 %v1210, %v1363
        %v1394 = vadd.f32 %v1215, %v1368
        %v1395 = vadd.f32 %v1220, %v1373
        %v1396 = vadd.f32 %v1225, %v1378
        %vm1405 = vcmask 1046528
        %v1406 = vrot.slane %v851, 1
        %v1407 = vrot.slane %v852, 1
        %v1408 = vsel %vm1405, %v1406, %v1407
        %v1409 = vrot.slane %v853, 1
        %v1410 = vsel %vm1405, %v1407, %v1409
        %v1411 = vrot.slane %v854, 1
        %v1412 = vrot.slane %v855, 1
        %v1413 = vsel %vm1405, %v1411, %v1412
        %v1414 = vrot.slane %v856, 1
        %v1415 = vsel %vm1405, %v1412, %v1414
        %v1416 = vrot.slane %v857, 1
        %v1417 = vrot.slane %v858, 1
        %v1418 = vsel %vm1405, %v1416, %v1417
        %v1419 = vrot.slane %v859, 1
        %v1420 = vsel %vm1405, %v1417, %v1419
        %v1421 = vrot.slane %v860, 1
        %v1422 = vrot.slane %v861, 1
        %v1423 = vsel %vm1405, %v1421, %v1422
        %v1424 = vrot.slane %v862, 1
        %v1425 = vsel %vm1405, %v1422, %v1424
        %v1426 = vrot.slane %v863, 1
        %v1427 = vrot.slane %v864, 1
        %v1428 = vsel %vm1405, %v1426, %v1427
        %v1429 = vrot.slane %v865, 1
        %v1430 = vsel %vm1405, %v1427, %v1429
        %v1431 = vrot.slane %v866, 1
        %v1432 = vrot.slane %v867, 1
        %v1433 = vsel %vm1405, %v1431, %v1432
        %v1434 = vrot.slane %v868, 1
        %v1435 = vsel %vm1405, %v1432, %v1434
        %v1436 = vrot.slane %v869, 1
        %v1437 = vrot.slane %v870, 1
        %v1438 = vsel %vm1405, %v1436, %v1437
        %v1439 = vrot.slane %v871, 1
        %v1440 = vsel %vm1405, %v1437, %v1439
        %v1441 = vrot.slane %v872, 1
        %v1442 = vrot.slane %v873, 1
        %v1443 = vsel %vm1405, %v1441, %v1442
        %v1444 = vrot.slane %v874, 1
        %v1445 = vsel %vm1405, %v1442, %v1444
        %s1446 = scalar_lea.vmem %s3, 8
        %v1447 = vld [vmem:[%s1446] sm:$0xff]
        %v1448 = vsel %vm297, %v1408, 0
        %v1450 = vsel %vm297, %v1410, 0
        %v1452 = vsel %vm297, %v1413, 0
        %v1454 = vsel %vm297, %v1415, 0
        %v1456 = vsel %vm297, %v1418, 0
        %v1458 = vsel %vm297, %v1420, 0
        %v1460 = vsel %vm297, %v1423, 0
        %v1462 = vsel %vm297, %v1425, 0
        %v1464 = vsel %vm297, %v1428, 0
        %v1466 = vsel %vm297, %v1430, 0
        %v1468 = vsel %vm297, %v1433, 0
        %v1470 = vsel %vm297, %v1435, 0
        %v1472 = vsel %vm297, %v1438, 0
        %v1474 = vsel %vm297, %v1440, 0
        %v1476 = vsel %vm297, %v1443, 0
        %v1478 = vsel %vm297, %v1445, 0
        %1480 = vmatprep.subr.mxu0 0.0
        %1481 = vmatpush1.msra.mxu0 0.0
        %1482 = vmatprep.subr.mxu0 0.0
        %1483 = vmatpush1.msra.mxu0 0.0
        %1484 = vmatprep.subr.mxu0 0.0
        %1485 = vmatpush1.msra.mxu0 0.0
        %1486 = vmatprep.subr.mxu0 0.0
        %1487 = vmatpush1.msra.mxu0 0.0
        %1488 = vmatprep.subr.mxu0 0.0
        %1489 = vmatpush1.msra.mxu0 0.0
        %1490 = vmatprep.subr.mxu0 0.0
        %1491 = vmatpush1.msra.mxu0 0.0
        %1492 = vmatprep.subr.mxu0 0.0
        %1493 = vmatpush1.msra.mxu0 0.0
        %1494 = vmatprep.subr.mxu0 0.0
        %1495 = vmatpush1.msra.mxu0 0.0
        %1496 = vmatprep.subr.mxu0 0.0
        %1497 = vmatpush1.msra.mxu0 0.0
        %1498 = vmatprep.subr.mxu0 0.0
        %1499 = vmatpush1.msra.mxu0 0.0
        %1500 = vmatprep.subr.mxu0 0.0
        %1501 = vmatpush1.msra.mxu0 0.0
        %1502 = vmatprep.subr.mxu0 0.0
        %1503 = vmatpush1.msra.mxu0 0.0
        %1504 = vmatprep.subr.mxu0 0.0
        %1505 = vmatpush1.msra.mxu0 0.0
        %1506 = vmatprep.subr.mxu0 0.0
        %1507 = vmatpush1.msra.mxu0 0.0
        %1508 = vmatprep.subr.mxu0 0.0
        %1509 = vmatpush1.msra.mxu0 0.0
        %1510 = vmatprep.subr.mxu0 0.0
        %1511 = vmatpush1.msra.mxu0 %v1447
        %1512 = vmatprep.subr.mxu0 0.0
        %1513 = vmatpush2.msra.mxu0 0.0
        %1514 = vmatprep.subr.mxu0 0.0
        %1515 = vmatpush2.msra.mxu0 0.0
        %1516 = vmatprep.subr.mxu0 0.0
        %1517 = vmatpush2.msra.mxu0 0.0
        %1518 = vmatprep.subr.mxu0 0.0
        %1519 = vmatpush2.msra.mxu0 0.0
        %1520 = vmatprep.subr.mxu0 0.0
        %1521 = vmatpush2.msra.mxu0 0.0
        %1522 = vmatprep.subr.mxu0 0.0
        %1523 = vmatpush2.msra.mxu0 0.0
        %1524 = vmatprep.subr.mxu0 0.0
        %1525 = vmatpush2.msra.mxu0 0.0
        %1526 = vmatprep.subr.mxu0 0.0
        %1527 = vmatpush2.msra.mxu0 0.0
        %1528 = vmatprep.subr.mxu0 0.0
        %1529 = vmatpush2.msra.mxu0 0.0
        %1530 = vmatprep.subr.mxu0 0.0
        %1531 = vmatpush2.msra.mxu0 0.0
        %1532 = vmatprep.subr.mxu0 0.0
        %1533 = vmatpush2.msra.mxu0 0.0
        %1534 = vmatprep.subr.mxu0 0.0
        %1535 = vmatpush2.msra.mxu0 0.0
        %1536 = vmatprep.subr.mxu0 0.0
        %1537 = vmatpush2.msra.mxu0 0.0
        %1538 = vmatprep.subr.mxu0 0.0
        %1539 = vmatpush2.msra.mxu0 0.0
        %1540 = vmatprep.subr.mxu0 0.0
        %1541 = vmatpush2.msra.mxu0 0.0
        %1542 = vmatprep.subr.mxu0 0.0
        %1543 = vmatpush2.msra.mxu0 0.0
        %1544 = vmatprep.mubr.f32.mxu0 0.0
        %1545 = vmatmul.mubr.f32.gmra.mxu0 %v1448
        %v1546 = vpop.f32.mrf.mxu0
        %v1547 = vadd.f32 0.0, %v1546
        %v1548 = vpop.f32.mrf.mxu0
        %1549 = vmatprep.mubr.f32.mxu0 0.0
        %1550 = vmatmul.mubr.f32.gmra.mxu0 %v1450
        %v1551 = vpop.f32.mrf.mxu0
        %v1552 = vadd.f32 0.0, %v1551
        %v1553 = vpop.f32.mrf.mxu0
        %1554 = vmatprep.mubr.f32.mxu0 0.0
        %1555 = vmatmul.mubr.f32.gmra.mxu0 %v1452
        %v1556 = vpop.f32.mrf.mxu0
        %v1557 = vadd.f32 0.0, %v1556
        %v1558 = vpop.f32.mrf.mxu0
        %1559 = vmatprep.mubr.f32.mxu0 0.0
        %1560 = vmatmul.mubr.f32.gmra.mxu0 %v1454
        %v1561 = vpop.f32.mrf.mxu0
        %v1562 = vadd.f32 0.0, %v1561
        %v1563 = vpop.f32.mrf.mxu0
        %1564 = vmatprep.mubr.f32.mxu0 0.0
        %1565 = vmatmul.mubr.f32.gmra.mxu0 %v1456
        %v1566 = vpop.f32.mrf.mxu0
        %v1567 = vadd.f32 0.0, %v1566
        %v1568 = vpop.f32.mrf.mxu0
        %1569 = vmatprep.mubr.f32.mxu0 0.0
        %1570 = vmatmul.mubr.f32.gmra.mxu0 %v1458
        %v1571 = vpop.f32.mrf.mxu0
        %v1572 = vadd.f32 0.0, %v1571
        %v1573 = vpop.f32.mrf.mxu0
        %1574 = vmatprep.mubr.f32.mxu0 0.0
        %1575 = vmatmul.mubr.f32.gmra.mxu0 %v1460
        %v1576 = vpop.f32.mrf.mxu0
        %v1577 = vadd.f32 0.0, %v1576
        %v1578 = vpop.f32.mrf.mxu0
        %1579 = vmatprep.mubr.f32.mxu0 0.0
        %1580 = vmatmul.mubr.f32.gmra.mxu0 %v1462
        %v1581 = vpop.f32.mrf.mxu0
        %v1582 = vadd.f32 0.0, %v1581
        %v1583 = vpop.f32.mrf.mxu0
        %1584 = vmatprep.mubr.f32.mxu0 0.0
        %1585 = vmatmul.mubr.f32.gmra.mxu0 %v1464
        %v1586 = vpop.f32.mrf.mxu0
        %v1587 = vadd.f32 0.0, %v1586
        %v1588 = vpop.f32.mrf.mxu0
        %1589 = vmatprep.mubr.f32.mxu0 0.0
        %1590 = vmatmul.mubr.f32.gmra.mxu0 %v1466
        %v1591 = vpop.f32.mrf.mxu0
        %v1592 = vadd.f32 0.0, %v1591
        %v1593 = vpop.f32.mrf.mxu0
        %1594 = vmatprep.mubr.f32.mxu0 0.0
        %1595 = vmatmul.mubr.f32.gmra.mxu0 %v1468
        %v1596 = vpop.f32.mrf.mxu0
        %v1597 = vadd.f32 0.0, %v1596
        %v1598 = vpop.f32.mrf.mxu0
        %1599 = vmatprep.mubr.f32.mxu0 0.0
        %1600 = vmatmul.mubr.f32.gmra.mxu0 %v1470
        %v1601 = vpop.f32.mrf.mxu0
        %v1602 = vadd.f32 0.0, %v1601
        %v1603 = vpop.f32.mrf.mxu0
        %1604 = vmatprep.mubr.f32.mxu0 0.0
        %1605 = vmatmul.mubr.f32.gmra.mxu0 %v1472
        %v1606 = vpop.f32.mrf.mxu0
        %v1607 = vadd.f32 0.0, %v1606
        %v1608 = vpop.f32.mrf.mxu0
        %1609 = vmatprep.mubr.f32.mxu0 0.0
        %1610 = vmatmul.mubr.f32.gmra.mxu0 %v1474
        %v1611 = vpop.f32.mrf.mxu0
        %v1612 = vadd.f32 0.0, %v1611
        %v1613 = vpop.f32.mrf.mxu0
        %1614 = vmatprep.mubr.f32.mxu0 0.0
        %1615 = vmatmul.mubr.f32.gmra.mxu0 %v1476
        %v1616 = vpop.f32.mrf.mxu0
        %v1617 = vadd.f32 0.0, %v1616
        %v1618 = vpop.f32.mrf.mxu0
        %1619 = vmatprep.mubr.f32.mxu0 0.0
        %1620 = vmatmul.mubr.f32.gmra.mxu0 %v1478
        %v1621 = vpop.f32.mrf.mxu0
        %v1622 = vadd.f32 0.0, %v1621
        %v1623 = vpop.f32.mrf.mxu0
        %1624 = vdwg.mxu0
        %v1625 = vadd.f32 %v1381, %v1547
        %v1626 = vadd.f32 %v1382, %v1552
        %v1627 = vadd.f32 %v1383, %v1557
        %v1628 = vadd.f32 %v1384, %v1562
        %v1629 = vadd.f32 %v1385, %v1567
        %v1630 = vadd.f32 %v1386, %v1572
        %v1631 = vadd.f32 %v1387, %v1577
        %v1632 = vadd.f32 %v1388, %v1582
        %v1633 = vadd.f32 %v1389, %v1587
        %v1634 = vadd.f32 %v1390, %v1592
        %v1635 = vadd.f32 %v1391, %v1597
        %v1636 = vadd.f32 %v1392, %v1602
        %v1637 = vadd.f32 %v1393, %v1607
        %v1638 = vadd.f32 %v1394, %v1612
        %v1639 = vadd.f32 %v1395, %v1617
        %v1640 = vadd.f32 %v1396, %v1622
        %v1642 = vrot.slane %v875, 1
        %v1643 = vrot.slane %v876, 1
        %v1644 = vsel %vm1405, %v1642, %v1643
        %v1645 = vrot.slane %v877, 1
        %v1646 = vsel %vm1405, %v1643, %v1645
        %s1647 = scalar_lea.vmem %s3, 32
        %v1648 = vld [vmem:[%s1647] sm:$0xff]
        %v1649 = vsel %vm297, %v1644, 0
        %v1651 = vsel %vm297, %v1646, 0
        %1653 = vmatprep.subr.mxu0 0.0
        %1654 = vmatpush1.msra.mxu0 0.0
        %1655 = vmatprep.subr.mxu0 0.0
        %1656 = vmatpush1.msra.mxu0 0.0
        %1657 = vmatprep.subr.mxu0 0.0
        %1658 = vmatpush1.msra.mxu0 0.0
        %1659 = vmatprep.subr.mxu0 0.0
        %1660 = vmatpush1.msra.mxu0 0.0
        %1661 = vmatprep.subr.mxu0 0.0
        %1662 = vmatpush1.msra.mxu0 0.0
        %1663 = vmatprep.subr.mxu0 0.0
        %1664 = vmatpush1.msra.mxu0 0.0
        %1665 = vmatprep.subr.mxu0 0.0
        %1666 = vmatpush1.msra.mxu0 0.0
        %1667 = vmatprep.subr.mxu0 0.0
        %1668 = vmatpush1.msra.mxu0 0.0
        %1669 = vmatprep.subr.mxu0 0.0
        %1670 = vmatpush1.msra.mxu0 0.0
        %1671 = vmatprep.subr.mxu0 0.0
        %1672 = vmatpush1.msra.mxu0 0.0
        %1673 = vmatprep.subr.mxu0 0.0
        %1674 = vmatpush1.msra.mxu0 0.0
        %1675 = vmatprep.subr.mxu0 0.0
        %1676 = vmatpush1.msra.mxu0 0.0
        %1677 = vmatprep.subr.mxu0 0.0
        %1678 = vmatpush1.msra.mxu0 0.0
        %1679 = vmatprep.subr.mxu0 0.0
        %1680 = vmatpush1.msra.mxu0 0.0
        %1681 = vmatprep.subr.mxu0 0.0
        %1682 = vmatpush1.msra.mxu0 0.0
        %1683 = vmatprep.subr.mxu0 0.0
        %1684 = vmatpush1.msra.mxu0 %v1648
        %1685 = vmatprep.subr.mxu0 0.0
        %1686 = vmatpush2.msra.mxu0 0.0
        %1687 = vmatprep.subr.mxu0 0.0
        %1688 = vmatpush2.msra.mxu0 0.0
        %1689 = vmatprep.subr.mxu0 0.0
        %1690 = vmatpush2.msra.mxu0 0.0
        %1691 = vmatprep.subr.mxu0 0.0
        %1692 = vmatpush2.msra.mxu0 0.0
        %1693 = vmatprep.subr.mxu0 0.0
        %1694 = vmatpush2.msra.mxu0 0.0
        %1695 = vmatprep.subr.mxu0 0.0
        %1696 = vmatpush2.msra.mxu0 0.0
        %1697 = vmatprep.subr.mxu0 0.0
        %1698 = vmatpush2.msra.mxu0 0.0
        %1699 = vmatprep.subr.mxu0 0.0
        %1700 = vmatpush2.msra.mxu0 0.0
        %1701 = vmatprep.subr.mxu0 0.0
        %1702 = vmatpush2.msra.mxu0 0.0
        %1703 = vmatprep.subr.mxu0 0.0
        %1704 = vmatpush2.msra.mxu0 0.0
        %1705 = vmatprep.subr.mxu0 0.0
        %1706 = vmatpush2.msra.mxu0 0.0
        %1707 = vmatprep.subr.mxu0 0.0
        %1708 = vmatpush2.msra.mxu0 0.0
        %1709 = vmatprep.subr.mxu0 0.0
        %1710 = vmatpush2.msra.mxu0 0.0
        %1711 = vmatprep.subr.mxu0 0.0
        %1712 = vmatpush2.msra.mxu0 0.0
        %1713 = vmatprep.subr.mxu0 0.0
        %1714 = vmatpush2.msra.mxu0 0.0
        %1715 = vmatprep.subr.mxu0 0.0
        %1716 = vmatpush2.msra.mxu0 0.0
        %1717 = vmatprep.mubr.f32.mxu0 0.0
        %1718 = vmatmul.mubr.f32.gmra.mxu0 %v1452
        %v1719 = vpop.f32.mrf.mxu0
        %v1720 = vadd.f32 0.0, %v1719
        %v1721 = vpop.f32.mrf.mxu0
        %1722 = vmatprep.mubr.f32.mxu0 0.0
        %1723 = vmatmul.mubr.f32.gmra.mxu0 %v1454
        %v1724 = vpop.f32.mrf.mxu0
        %v1725 = vadd.f32 0.0, %v1724
        %v1726 = vpop.f32.mrf.mxu0
        %1727 = vmatprep.mubr.f32.mxu0 0.0
        %1728 = vmatmul.mubr.f32.gmra.mxu0 %v1456
        %v1729 = vpop.f32.mrf.mxu0
        %v1730 = vadd.f32 0.0, %v1729
        %v1731 = vpop.f32.mrf.mxu0
        %1732 = vmatprep.mubr.f32.mxu0 0.0
        %1733 = vmatmul.mubr.f32.gmra.mxu0 %v1458
        %v1734 = vpop.f32.mrf.mxu0
        %v1735 = vadd.f32 0.0, %v1734
        %v1736 = vpop.f32.mrf.mxu0
        %1737 = vmatprep.mubr.f32.mxu0 0.0
        %1738 = vmatmul.mubr.f32.gmra.mxu0 %v1460
        %v1739 = vpop.f32.mrf.mxu0
        %v1740 = vadd.f32 0.0, %v1739
        %v1741 = vpop.f32.mrf.mxu0
        %1742 = vmatprep.mubr.f32.mxu0 0.0
        %1743 = vmatmul.mubr.f32.gmra.mxu0 %v1462
        %v1744 = vpop.f32.mrf.mxu0
        %v1745 = vadd.f32 0.0, %v1744
        %v1746 = vpop.f32.mrf.mxu0
        %1747 = vmatprep.mubr.f32.mxu0 0.0
        %1748 = vmatmul.mubr.f32.gmra.mxu0 %v1464
        %v1749 = vpop.f32.mrf.mxu0
        %v1750 = vadd.f32 0.0, %v1749
        %v1751 = vpop.f32.mrf.mxu0
        %1752 = vmatprep.mubr.f32.mxu0 0.0
        %1753 = vmatmul.mubr.f32.gmra.mxu0 %v1466
        %v1754 = vpop.f32.mrf.mxu0
        %v1755 = vadd.f32 0.0, %v1754
        %v1756 = vpop.f32.mrf.mxu0
        %1757 = vmatprep.mubr.f32.mxu0 0.0
        %1758 = vmatmul.mubr.f32.gmra.mxu0 %v1468
        %v1759 = vpop.f32.mrf.mxu0
        %v1760 = vadd.f32 0.0, %v1759
        %v1761 = vpop.f32.mrf.mxu0
        %1762 = vmatprep.mubr.f32.mxu0 0.0
        %1763 = vmatmul.mubr.f32.gmra.mxu0 %v1470
        %v1764 = vpop.f32.mrf.mxu0
        %v1765 = vadd.f32 0.0, %v1764
        %v1766 = vpop.f32.mrf.mxu0
        %1767 = vmatprep.mubr.f32.mxu0 0.0
        %1768 = vmatmul.mubr.f32.gmra.mxu0 %v1472
        %v1769 = vpop.f32.mrf.mxu0
        %v1770 = vadd.f32 0.0, %v1769
        %v1771 = vpop.f32.mrf.mxu0
        %1772 = vmatprep.mubr.f32.mxu0 0.0
        %1773 = vmatmul.mubr.f32.gmra.mxu0 %v1474
        %v1774 = vpop.f32.mrf.mxu0
        %v1775 = vadd.f32 0.0, %v1774
        %v1776 = vpop.f32.mrf.mxu0
        %1777 = vmatprep.mubr.f32.mxu0 0.0
        %1778 = vmatmul.mubr.f32.gmra.mxu0 %v1476
        %v1779 = vpop.f32.mrf.mxu0
        %v1780 = vadd.f32 0.0, %v1779
        %v1781 = vpop.f32.mrf.mxu0
        %1782 = vmatprep.mubr.f32.mxu0 0.0
        %1783 = vmatmul.mubr.f32.gmra.mxu0 %v1478
        %v1784 = vpop.f32.mrf.mxu0
        %v1785 = vadd.f32 0.0, %v1784
        %v1786 = vpop.f32.mrf.mxu0
        %1787 = vmatprep.mubr.f32.mxu0 0.0
        %1788 = vmatmul.mubr.f32.gmra.mxu0 %v1649
        %v1789 = vpop.f32.mrf.mxu0
        %v1790 = vadd.f32 0.0, %v1789
        %v1791 = vpop.f32.mrf.mxu0
        %1792 = vmatprep.mubr.f32.mxu0 0.0
        %1793 = vmatmul.mubr.f32.gmra.mxu0 %v1651
        %v1794 = vpop.f32.mrf.mxu0
        %v1795 = vadd.f32 0.0, %v1794
        %v1796 = vpop.f32.mrf.mxu0
        %1797 = vdwg.mxu0
        %v1798 = vadd.f32 %v1625, %v1720
        %v1799 = vadd.f32 %v1626, %v1725
        %v1800 = vadd.f32 %v1627, %v1730
        %v1801 = vadd.f32 %v1628, %v1735
        %v1802 = vadd.f32 %v1629, %v1740
        %v1803 = vadd.f32 %v1630, %v1745
        %v1804 = vadd.f32 %v1631, %v1750
        %v1805 = vadd.f32 %v1632, %v1755
        %v1806 = vadd.f32 %v1633, %v1760
        %v1807 = vadd.f32 %v1634, %v1765
        %v1808 = vadd.f32 %v1635, %v1770
        %v1809 = vadd.f32 %v1636, %v1775
        %v1810 = vadd.f32 %v1637, %v1780
        %v1811 = vadd.f32 %v1638, %v1785
        %v1812 = vadd.f32 %v1639, %v1790
        %v1813 = vadd.f32 %v1640, %v1795
        %v1815 = vrot.slane %v878, 1
        %v1816 = vrot.slane %v879, 1
        %v1817 = vsel %vm1405, %v1815, %v1816
        %v1818 = vrot.slane %v880, 1
        %v1819 = vsel %vm1405, %v1816, %v1818
        %s1820 = scalar_lea.vmem %s3, 56
        %v1821 = vld [vmem:[%s1820] sm:$0xff]
        %v1822 = vsel %vm297, %v1817, 0
        %v1824 = vsel %vm297, %v1819, 0
        %1826 = vmatprep.subr.mxu0 0.0
        %1827 = vmatpush1.msra.mxu0 0.0
        %1828 = vmatprep.subr.mxu0 0.0
        %1829 = vmatpush1.msra.mxu0 0.0
        %1830 = vmatprep.subr.mxu0 0.0
        %1831 = vmatpush1.msra.mxu0 0.0
        %1832 = vmatprep.subr.mxu0 0.0
        %1833 = vmatpush1.msra.mxu0 0.0
        %1834 = vmatprep.subr.mxu0 0.0
        %1835 = vmatpush1.msra.mxu0 0.0
        %1836 = vmatprep.subr.mxu0 0.0
        %1837 = vmatpush1.msra.mxu0 0.0
        %1838 = vmatprep.subr.mxu0 0.0
        %1839 = vmatpush1.msra.mxu0 0.0
        %1840 = vmatprep.subr.mxu0 0.0
        %1841 = vmatpush1.msra.mxu0 0.0
        %1842 = vmatprep.subr.mxu0 0.0
        %1843 = vmatpush1.msra.mxu0 0.0
        %1844 = vmatprep.subr.mxu0 0.0
        %1845 = vmatpush1.msra.mxu0 0.0
        %1846 = vmatprep.subr.mxu0 0.0
        %1847 = vmatpush1.msra.mxu0 0.0
        %1848 = vmatprep.subr.mxu0 0.0
        %1849 = vmatpush1.msra.mxu0 0.0
        %1850 = vmatprep.subr.mxu0 0.0
        %1851 = vmatpush1.msra.mxu0 0.0
        %1852 = vmatprep.subr.mxu0 0.0
        %1853 = vmatpush1.msra.mxu0 0.0
        %1854 = vmatprep.subr.mxu0 0.0
        %1855 = vmatpush1.msra.mxu0 0.0
        %1856 = vmatprep.subr.mxu0 0.0
        %1857 = vmatpush1.msra.mxu0 %v1821
        %1858 = vmatprep.subr.mxu0 0.0
        %1859 = vmatpush2.msra.mxu0 0.0
        %1860 = vmatprep.subr.mxu0 0.0
        %1861 = vmatpush2.msra.mxu0 0.0
        %1862 = vmatprep.subr.mxu0 0.0
        %1863 = vmatpush2.msra.mxu0 0.0
        %1864 = vmatprep.subr.mxu0 0.0
        %1865 = vmatpush2.msra.mxu0 0.0
        %1866 = vmatprep.subr.mxu0 0.0
        %1867 = vmatpush2.msra.mxu0 0.0
        %1868 = vmatprep.subr.mxu0 0.0
        %1869 = vmatpush2.msra.mxu0 0.0
        %1870 = vmatprep.subr.mxu0 0.0
        %1871 = vmatpush2.msra.mxu0 0.0
        %1872 = vmatprep.subr.mxu0 0.0
        %1873 = vmatpush2.msra.mxu0 0.0
        %1874 = vmatprep.subr.mxu0 0.0
        %1875 = vmatpush2.msra.mxu0 0.0
        %1876 = vmatprep.subr.mxu0 0.0
        %1877 = vmatpush2.msra.mxu0 0.0
        %1878 = vmatprep.subr.mxu0 0.0
        %1879 = vmatpush2.msra.mxu0 0.0
        %1880 = vmatprep.subr.mxu0 0.0
        %1881 = vmatpush2.msra.mxu0 0.0
        %1882 = vmatprep.subr.mxu0 0.0
        %1883 = vmatpush2.msra.mxu0 0.0
        %1884 = vmatprep.subr.mxu0 0.0
        %1885 = vmatpush2.msra.mxu0 0.0
        %1886 = vmatprep.subr.mxu0 0.0
        %1887 = vmatpush2.msra.mxu0 0.0
        %1888 = vmatprep.subr.mxu0 0.0
        %1889 = vmatpush2.msra.mxu0 0.0
        %1890 = vmatprep.mubr.f32.mxu0 0.0
        %1891 = vmatmul.mubr.f32.gmra.mxu0 %v1456
        %v1892 = vpop.f32.mrf.mxu0
        %v1893 = vadd.f32 0.0, %v1892
        %v1894 = vpop.f32.mrf.mxu0
        %1895 = vmatprep.mubr.f32.mxu0 0.0
        %1896 = vmatmul.mubr.f32.gmra.mxu0 %v1458
        %v1897 = vpop.f32.mrf.mxu0
        %v1898 = vadd.f32 0.0, %v1897
        %v1899 = vpop.f32.mrf.mxu0
        %1900 = vmatprep.mubr.f32.mxu0 0.0
        %1901 = vmatmul.mubr.f32.gmra.mxu0 %v1460
        %v1902 = vpop.f32.mrf.mxu0
        %v1903 = vadd.f32 0.0, %v1902
        %v1904 = vpop.f32.mrf.mxu0
        %1905 = vmatprep.mubr.f32.mxu0 0.0
        %1906 = vmatmul.mubr.f32.gmra.mxu0 %v1462
        %v1907 = vpop.f32.mrf.mxu0
        %v1908 = vadd.f32 0.0, %v1907
        %v1909 = vpop.f32.mrf.mxu0
        %1910 = vmatprep.mubr.f32.mxu0 0.0
        %1911 = vmatmul.mubr.f32.gmra.mxu0 %v1464
        %v1912 = vpop.f32.mrf.mxu0
        %v1913 = vadd.f32 0.0, %v1912
        %v1914 = vpop.f32.mrf.mxu0
        %1915 = vmatprep.mubr.f32.mxu0 0.0
        %1916 = vmatmul.mubr.f32.gmra.mxu0 %v1466
        %v1917 = vpop.f32.mrf.mxu0
        %v1918 = vadd.f32 0.0, %v1917
        %v1919 = vpop.f32.mrf.mxu0
        %1920 = vmatprep.mubr.f32.mxu0 0.0
        %1921 = vmatmul.mubr.f32.gmra.mxu0 %v1468
        %v1922 = vpop.f32.mrf.mxu0
        %v1923 = vadd.f32 0.0, %v1922
        %v1924 = vpop.f32.mrf.mxu0
        %1925 = vmatprep.mubr.f32.mxu0 0.0
        %1926 = vmatmul.mubr.f32.gmra.mxu0 %v1470
        %v1927 = vpop.f32.mrf.mxu0
        %v1928 = vadd.f32 0.0, %v1927
        %v1929 = vpop.f32.mrf.mxu0
        %1930 = vmatprep.mubr.f32.mxu0 0.0
        %1931 = vmatmul.mubr.f32.gmra.mxu0 %v1472
        %v1932 = vpop.f32.mrf.mxu0
        %v1933 = vadd.f32 0.0, %v1932
        %v1934 = vpop.f32.mrf.mxu0
        %1935 = vmatprep.mubr.f32.mxu0 0.0
        %1936 = vmatmul.mubr.f32.gmra.mxu0 %v1474
        %v1937 = vpop.f32.mrf.mxu0
        %v1938 = vadd.f32 0.0, %v1937
        %v1939 = vpop.f32.mrf.mxu0
        %1940 = vmatprep.mubr.f32.mxu0 0.0
        %1941 = vmatmul.mubr.f32.gmra.mxu0 %v1476
        %v1942 = vpop.f32.mrf.mxu0
        %v1943 = vadd.f32 0.0, %v1942
        %v1944 = vpop.f32.mrf.mxu0
        %1945 = vmatprep.mubr.f32.mxu0 0.0
        %1946 = vmatmul.mubr.f32.gmra.mxu0 %v1478
        %v1947 = vpop.f32.mrf.mxu0
        %v1948 = vadd.f32 0.0, %v1947
        %v1949 = vpop.f32.mrf.mxu0
        %1950 = vmatprep.mubr.f32.mxu0 0.0
        %1951 = vmatmul.mubr.f32.gmra.mxu0 %v1649
        %v1952 = vpop.f32.mrf.mxu0
        %v1953 = vadd.f32 0.0, %v1952
        %v1954 = vpop.f32.mrf.mxu0
        %1955 = vmatprep.mubr.f32.mxu0 0.0
        %1956 = vmatmul.mubr.f32.gmra.mxu0 %v1651
        %v1957 = vpop.f32.mrf.mxu0
        %v1958 = vadd.f32 0.0, %v1957
        %v1959 = vpop.f32.mrf.mxu0
        %1960 = vmatprep.mubr.f32.mxu0 0.0
        %1961 = vmatmul.mubr.f32.gmra.mxu0 %v1822
        %v1962 = vpop.f32.mrf.mxu0
        %v1963 = vadd.f32 0.0, %v1962
        %v1964 = vpop.f32.mrf.mxu0
        %1965 = vmatprep.mubr.f32.mxu0 0.0
        %1966 = vmatmul.mubr.f32.gmra.mxu0 %v1824
        %v1967 = vpop.f32.mrf.mxu0
        %v1968 = vadd.f32 0.0, %v1967
        %v1969 = vpop.f32.mrf.mxu0
        %1970 = vdwg.mxu0
        %v1971 = vadd.f32 %v1798, %v1893
        %v1972 = vadd.f32 %v1799, %v1898
        %v1973 = vadd.f32 %v1800, %v1903
        %v1974 = vadd.f32 %v1801, %v1908
        %v1975 = vadd.f32 %v1802, %v1913
        %v1976 = vadd.f32 %v1803, %v1918
        %v1977 = vadd.f32 %v1804, %v1923
        %v1978 = vadd.f32 %v1805, %v1928
        %v1979 = vadd.f32 %v1806, %v1933
        %v1980 = vadd.f32 %v1807, %v1938
        %v1981 = vadd.f32 %v1808, %v1943
        %v1982 = vadd.f32 %v1809, %v1948
        %v1983 = vadd.f32 %v1810, %v1953
        %v1984 = vadd.f32 %v1811, %v1958
        %v1985 = vadd.f32 %v1812, %v1963
        %v1986 = vadd.f32 %v1813, %v1968
        %vm1987 = vcmask 1045504
        %v1988 = vrot.slane %v851, 2
        %v1989 = vrot.slane %v852, 2
        %v1990 = vsel %vm1987, %v1988, %v1989
        %v1991 = vrot.slane %v853, 2
        %v1992 = vsel %vm1987, %v1989, %v1991
        %v1993 = vrot.slane %v854, 2
        %v1994 = vrot.slane %v855, 2
        %v1995 = vsel %vm1987, %v1993, %v1994
        %v1996 = vrot.slane %v856, 2
        %v1997 = vsel %vm1987, %v1994, %v1996
        %v1998 = vrot.slane %v857, 2
        %v1999 = vrot.slane %v858, 2
        %v2000 = vsel %vm1987, %v1998, %v1999
        %v2001 = vrot.slane %v859, 2
        %v2002 = vsel %vm1987, %v1999, %v2001
        %v2003 = vrot.slane %v860, 2
        %v2004 = vrot.slane %v861, 2
        %v2005 = vsel %vm1987, %v2003, %v2004
        %v2006 = vrot.slane %v862, 2
        %v2007 = vsel %vm1987, %v2004, %v2006
        %v2008 = vrot.slane %v863, 2
        %v2009 = vrot.slane %v864, 2
        %v2010 = vsel %vm1987, %v2008, %v2009
        %v2011 = vrot.slane %v865, 2
        %v2012 = vsel %vm1987, %v2009, %v2011
        %v2013 = vrot.slane %v866, 2
        %v2014 = vrot.slane %v867, 2
        %v2015 = vsel %vm1987, %v2013, %v2014
        %v2016 = vrot.slane %v868, 2
        %v2017 = vsel %vm1987, %v2014, %v2016
        %v2018 = vrot.slane %v869, 2
        %v2019 = vrot.slane %v870, 2
        %v2020 = vsel %vm1987, %v2018, %v2019
        %v2021 = vrot.slane %v871, 2
        %v2022 = vsel %vm1987, %v2019, %v2021
        %v2023 = vrot.slane %v872, 2
        %v2024 = vrot.slane %v873, 2
        %v2025 = vsel %vm1987, %v2023, %v2024
        %v2026 = vrot.slane %v874, 2
        %v2027 = vsel %vm1987, %v2024, %v2026
        %s2028 = scalar_lea.vmem %s3, 16
        %v2029 = vld [vmem:[%s2028] sm:$0xff]
        %v2030 = vsel %vm297, %v1990, 0
        %v2032 = vsel %vm297, %v1992, 0
        %v2034 = vsel %vm297, %v1995, 0
        %v2036 = vsel %vm297, %v1997, 0
        %v2038 = vsel %vm297, %v2000, 0
        %v2040 = vsel %vm297, %v2002, 0
        %v2042 = vsel %vm297, %v2005, 0
        %v2044 = vsel %vm297, %v2007, 0
        %v2046 = vsel %vm297, %v2010, 0
        %v2048 = vsel %vm297, %v2012, 0
        %v2050 = vsel %vm297, %v2015, 0
        %v2052 = vsel %vm297, %v2017, 0
        %v2054 = vsel %vm297, %v2020, 0
        %v2056 = vsel %vm297, %v2022, 0
        %v2058 = vsel %vm297, %v2025, 0
        %v2060 = vsel %vm297, %v2027, 0
        %2062 = vmatprep.subr.mxu0 0.0
        %2063 = vmatpush1.msra.mxu0 0.0
        %2064 = vmatprep.subr.mxu0 0.0
        %2065 = vmatpush1.msra.mxu0 0.0
        %2066 = vmatprep.subr.mxu0 0.0
        %2067 = vmatpush1.msra.mxu0 0.0
        %2068 = vmatprep.subr.mxu0 0.0
        %2069 = vmatpush1.msra.mxu0 0.0
        %2070 = vmatprep.subr.mxu0 0.0
        %2071 = vmatpush1.msra.mxu0 0.0
        %2072 = vmatprep.subr.mxu0 0.0
        %2073 = vmatpush1.msra.mxu0 0.0
        %2074 = vmatprep.subr.mxu0 0.0
        %2075 = vmatpush1.msra.mxu0 0.0
        %2076 = vmatprep.subr.mxu0 0.0
        %2077 = vmatpush1.msra.mxu0 0.0
        %2078 = vmatprep.subr.mxu0 0.0
        %2079 = vmatpush1.msra.mxu0 0.0
        %2080 = vmatprep.subr.mxu0 0.0
        %2081 = vmatpush1.msra.mxu0 0.0
        %2082 = vmatprep.subr.mxu0 0.0
        %2083 = vmatpush1.msra.mxu0 0.0
        %2084 = vmatprep.subr.mxu0 0.0
        %2085 = vmatpush1.msra.mxu0 0.0
        %2086 = vmatprep.subr.mxu0 0.0
        %2087 = vmatpush1.msra.mxu0 0.0
        %2088 = vmatprep.subr.mxu0 0.0
        %2089 = vmatpush1.msra.mxu0 0.0
        %2090 = vmatprep.subr.mxu0 0.0
        %2091 = vmatpush1.msra.mxu0 0.0
        %2092 = vmatprep.subr.mxu0 0.0
        %2093 = vmatpush1.msra.mxu0 %v2029
        %2094 = vmatprep.subr.mxu0 0.0
        %2095 = vmatpush2.msra.mxu0 0.0
        %2096 = vmatprep.subr.mxu0 0.0
        %2097 = vmatpush2.msra.mxu0 0.0
        %2098 = vmatprep.subr.mxu0 0.0
        %2099 = vmatpush2.msra.mxu0 0.0
        %2100 = vmatprep.subr.mxu0 0.0
        %2101 = vmatpush2.msra.mxu0 0.0
        %2102 = vmatprep.subr.mxu0 0.0
        %2103 = vmatpush2.msra.mxu0 0.0
        %2104 = vmatprep.subr.mxu0 0.0
        %2105 = vmatpush2.msra.mxu0 0.0
        %2106 = vmatprep.subr.mxu0 0.0
        %2107 = vmatpush2.msra.mxu0 0.0
        %2108 = vmatprep.subr.mxu0 0.0
        %2109 = vmatpush2.msra.mxu0 0.0
        %2110 = vmatprep.subr.mxu0 0.0
        %2111 = vmatpush2.msra.mxu0 0.0
        %2112 = vmatprep.subr.mxu0 0.0
        %2113 = vmatpush2.msra.mxu0 0.0
        %2114 = vmatprep.subr.mxu0 0.0
        %2115 = vmatpush2.msra.mxu0 0.0
        %2116 = vmatprep.subr.mxu0 0.0
        %2117 = vmatpush2.msra.mxu0 0.0
        %2118 = vmatprep.subr.mxu0 0.0
        %2119 = vmatpush2.msra.mxu0 0.0
        %2120 = vmatprep.subr.mxu0 0.0
        %2121 = vmatpush2.msra.mxu0 0.0
        %2122 = vmatprep.subr.mxu0 0.0
        %2123 = vmatpush2.msra.mxu0 0.0
        %2124 = vmatprep.subr.mxu0 0.0
        %2125 = vmatpush2.msra.mxu0 0.0
        %2126 = vmatprep.mubr.f32.mxu0 0.0
        %2127 = vmatmul.mubr.f32.gmra.mxu0 %v2030
        %v2128 = vpop.f32.mrf.mxu0
        %v2129 = vadd.f32 0.0, %v2128
        %v2130 = vpop.f32.mrf.mxu0
        %2131 = vmatprep.mubr.f32.mxu0 0.0
        %2132 = vmatmul.mubr.f32.gmra.mxu0 %v2032
        %v2133 = vpop.f32.mrf.mxu0
        %v2134 = vadd.f32 0.0, %v2133
        %v2135 = vpop.f32.mrf.mxu0
        %2136 = vmatprep.mubr.f32.mxu0 0.0
        %2137 = vmatmul.mubr.f32.gmra.mxu0 %v2034
        %v2138 = vpop.f32.mrf.mxu0
        %v2139 = vadd.f32 0.0, %v2138
        %v2140 = vpop.f32.mrf.mxu0
        %2141 = vmatprep.mubr.f32.mxu0 0.0
        %2142 = vmatmul.mubr.f32.gmra.mxu0 %v2036
        %v2143 = vpop.f32.mrf.mxu0
        %v2144 = vadd.f32 0.0, %v2143
        %v2145 = vpop.f32.mrf.mxu0
        %2146 = vmatprep.mubr.f32.mxu0 0.0
        %2147 = vmatmul.mubr.f32.gmra.mxu0 %v2038
        %v2148 = vpop.f32.mrf.mxu0
        %v2149 = vadd.f32 0.0, %v2148
        %v2150 = vpop.f32.mrf.mxu0
        %2151 = vmatprep.mubr.f32.mxu0 0.0
        %2152 = vmatmul.mubr.f32.gmra.mxu0 %v2040
        %v2153 = vpop.f32.mrf.mxu0
        %v2154 = vadd.f32 0.0, %v2153
        %v2155 = vpop.f32.mrf.mxu0
        %2156 = vmatprep.mubr.f32.mxu0 0.0
        %2157 = vmatmul.mubr.f32.gmra.mxu0 %v2042
        %v2158 = vpop.f32.mrf.mxu0
        %v2159 = vadd.f32 0.0, %v2158
        %v2160 = vpop.f32.mrf.mxu0
        %2161 = vmatprep.mubr.f32.mxu0 0.0
        %2162 = vmatmul.mubr.f32.gmra.mxu0 %v2044
        %v2163 = vpop.f32.mrf.mxu0
        %v2164 = vadd.f32 0.0, %v2163
        %v2165 = vpop.f32.mrf.mxu0
        %2166 = vmatprep.mubr.f32.mxu0 0.0
        %2167 = vmatmul.mubr.f32.gmra.mxu0 %v2046
        %v2168 = vpop.f32.mrf.mxu0
        %v2169 = vadd.f32 0.0, %v2168
        %v2170 = vpop.f32.mrf.mxu0
        %2171 = vmatprep.mubr.f32.mxu0 0.0
        %2172 = vmatmul.mubr.f32.gmra.mxu0 %v2048
        %v2173 = vpop.f32.mrf.mxu0
        %v2174 = vadd.f32 0.0, %v2173
        %v2175 = vpop.f32.mrf.mxu0
        %2176 = vmatprep.mubr.f32.mxu0 0.0
        %2177 = vmatmul.mubr.f32.gmra.mxu0 %v2050
        %v2178 = vpop.f32.mrf.mxu0
        %v2179 = vadd.f32 0.0, %v2178
        %v2180 = vpop.f32.mrf.mxu0
        %2181 = vmatprep.mubr.f32.mxu0 0.0
        %2182 = vmatmul.mubr.f32.gmra.mxu0 %v2052
        %v2183 = vpop.f32.mrf.mxu0
        %v2184 = vadd.f32 0.0, %v2183
        %v2185 = vpop.f32.mrf.mxu0
        %2186 = vmatprep.mubr.f32.mxu0 0.0
        %2187 = vmatmul.mubr.f32.gmra.mxu0 %v2054
        %v2188 = vpop.f32.mrf.mxu0
        %v2189 = vadd.f32 0.0, %v2188
        %v2190 = vpop.f32.mrf.mxu0
        %2191 = vmatprep.mubr.f32.mxu0 0.0
        %2192 = vmatmul.mubr.f32.gmra.mxu0 %v2056
        %v2193 = vpop.f32.mrf.mxu0
        %v2194 = vadd.f32 0.0, %v2193
        %v2195 = vpop.f32.mrf.mxu0
        %2196 = vmatprep.mubr.f32.mxu0 0.0
        %2197 = vmatmul.mubr.f32.gmra.mxu0 %v2058
        %v2198 = vpop.f32.mrf.mxu0
        %v2199 = vadd.f32 0.0, %v2198
        %v2200 = vpop.f32.mrf.mxu0
        %2201 = vmatprep.mubr.f32.mxu0 0.0
        %2202 = vmatmul.mubr.f32.gmra.mxu0 %v2060
        %v2203 = vpop.f32.mrf.mxu0
        %v2204 = vadd.f32 0.0, %v2203
        %v2205 = vpop.f32.mrf.mxu0
        %2206 = vdwg.mxu0
        %v2207 = vadd.f32 %v1971, %v2129
        %v2208 = vadd.f32 %v1972, %v2134
        %v2209 = vadd.f32 %v1973, %v2139
        %v2210 = vadd.f32 %v1974, %v2144
        %v2211 = vadd.f32 %v1975, %v2149
        %v2212 = vadd.f32 %v1976, %v2154
        %v2213 = vadd.f32 %v1977, %v2159
        %v2214 = vadd.f32 %v1978, %v2164
        %v2215 = vadd.f32 %v1979, %v2169
        %v2216 = vadd.f32 %v1980, %v2174
        %v2217 = vadd.f32 %v1981, %v2179
        %v2218 = vadd.f32 %v1982, %v2184
        %v2219 = vadd.f32 %v1983, %v2189
        %v2220 = vadd.f32 %v1984, %v2194
        %v2221 = vadd.f32 %v1985, %v2199
        %v2222 = vadd.f32 %v1986, %v2204
        %v2223 = vrot.slane %v875, 2
        %v2224 = vrot.slane %v876, 2
        %v2225 = vsel %vm1987, %v2223, %v2224
        %v2226 = vrot.slane %v877, 2
        %v2227 = vsel %vm1987, %v2224, %v2226
        %s2228 = scalar_lea.vmem %s3, 40
        %v2229 = vld [vmem:[%s2228] sm:$0xff]
        %v2230 = vsel %vm297, %v2225, 0
        %v2232 = vsel %vm297, %v2227, 0
        %2234 = vmatprep.subr.mxu0 0.0
        %2235 = vmatpush1.msra.mxu0 0.0
        %2236 = vmatprep.subr.mxu0 0.0
        %2237 = vmatpush1.msra.mxu0 0.0
        %2238 = vmatprep.subr.mxu0 0.0
        %2239 = vmatpush1.msra.mxu0 0.0
        %2240 = vmatprep.subr.mxu0 0.0
        %2241 = vmatpush1.msra.mxu0 0.0
        %2242 = vmatprep.subr.mxu0 0.0
        %2243 = vmatpush1.msra.mxu0 0.0
        %2244 = vmatprep.subr.mxu0 0.0
        %2245 = vmatpush1.msra.mxu0 0.0
        %2246 = vmatprep.subr.mxu0 0.0
        %2247 = vmatpush1.msra.mxu0 0.0
        %2248 = vmatprep.subr.mxu0 0.0
        %2249 = vmatpush1.msra.mxu0 0.0
        %2250 = vmatprep.subr.mxu0 0.0
        %2251 = vmatpush1.msra.mxu0 0.0
        %2252 = vmatprep.subr.mxu0 0.0
        %2253 = vmatpush1.msra.mxu0 0.0
        %2254 = vmatprep.subr.mxu0 0.0
        %2255 = vmatpush1.msra.mxu0 0.0
        %2256 = vmatprep.subr.mxu0 0.0
        %2257 = vmatpush1.msra.mxu0 0.0
        %2258 = vmatprep.subr.mxu0 0.0
        %2259 = vmatpush1.msra.mxu0 0.0
        %2260 = vmatprep.subr.mxu0 0.0
        %2261 = vmatpush1.msra.mxu0 0.0
        %2262 = vmatprep.subr.mxu0 0.0
        %2263 = vmatpush1.msra.mxu0 0.0
        %2264 = vmatprep.subr.mxu0 0.0
        %2265 = vmatpush1.msra.mxu0 %v2229
        %2266 = vmatprep.subr.mxu0 0.0
        %2267 = vmatpush2.msra.mxu0 0.0
        %2268 = vmatprep.subr.mxu0 0.0
        %2269 = vmatpush2.msra.mxu0 0.0
        %2270 = vmatprep.subr.mxu0 0.0
        %2271 = vmatpush2.msra.mxu0 0.0
        %2272 = vmatprep.subr.mxu0 0.0
        %2273 = vmatpush2.msra.mxu0 0.0
        %2274 = vmatprep.subr.mxu0 0.0
        %2275 = vmatpush2.msra.mxu0 0.0
        %2276 = vmatprep.subr.mxu0 0.0
        %2277 = vmatpush2.msra.mxu0 0.0
        %2278 = vmatprep.subr.mxu0 0.0
        %2279 = vmatpush2.msra.mxu0 0.0
        %2280 = vmatprep.subr.mxu0 0.0
        %2281 = vmatpush2.msra.mxu0 0.0
        %2282 = vmatprep.subr.mxu0 0.0
        %2283 = vmatpush2.msra.mxu0 0.0
        %2284 = vmatprep.subr.mxu0 0.0
        %2285 = vmatpush2.msra.mxu0 0.0
        %2286 = vmatprep.subr.mxu0 0.0
        %2287 = vmatpush2.msra.mxu0 0.0
        %2288 = vmatprep.subr.mxu0 0.0
        %2289 = vmatpush2.msra.mxu0 0.0
        %2290 = vmatprep.subr.mxu0 0.0
        %2291 = vmatpush2.msra.mxu0 0.0
        %2292 = vmatprep.subr.mxu0 0.0
        %2293 = vmatpush2.msra.mxu0 0.0
        %2294 = vmatprep.subr.mxu0 0.0
        %2295 = vmatpush2.msra.mxu0 0.0
        %2296 = vmatprep.subr.mxu0 0.0
        %2297 = vmatpush2.msra.mxu0 0.0
        %2298 = vmatprep.mubr.f32.mxu0 0.0
        %2299 = vmatmul.mubr.f32.gmra.mxu0 %v2034
        %v2300 = vpop.f32.mrf.mxu0
        %v2301 = vadd.f32 0.0, %v2300
        %v2302 = vpop.f32.mrf.mxu0
        %2303 = vmatprep.mubr.f32.mxu0 0.0
        %2304 = vmatmul.mubr.f32.gmra.mxu0 %v2036
        %v2305 = vpop.f32.mrf.mxu0
        %v2306 = vadd.f32 0.0, %v2305
        %v2307 = vpop.f32.mrf.mxu0
        %2308 = vmatprep.mubr.f32.mxu0 0.0
        %2309 = vmatmul.mubr.f32.gmra.mxu0 %v2038
        %v2310 = vpop.f32.mrf.mxu0
        %v2311 = vadd.f32 0.0, %v2310
        %v2312 = vpop.f32.mrf.mxu0
        %2313 = vmatprep.mubr.f32.mxu0 0.0
        %2314 = vmatmul.mubr.f32.gmra.mxu0 %v2040
        %v2315 = vpop.f32.mrf.mxu0
        %v2316 = vadd.f32 0.0, %v2315
        %v2317 = vpop.f32.mrf.mxu0
        %2318 = vmatprep.mubr.f32.mxu0 0.0
        %2319 = vmatmul.mubr.f32.gmra.mxu0 %v2042
        %v2320 = vpop.f32.mrf.mxu0
        %v2321 = vadd.f32 0.0, %v2320
        %v2322 = vpop.f32.mrf.mxu0
        %2323 = vmatprep.mubr.f32.mxu0 0.0
        %2324 = vmatmul.mubr.f32.gmra.mxu0 %v2044
        %v2325 = vpop.f32.mrf.mxu0
        %v2326 = vadd.f32 0.0, %v2325
        %v2327 = vpop.f32.mrf.mxu0
        %2328 = vmatprep.mubr.f32.mxu0 0.0
        %2329 = vmatmul.mubr.f32.gmra.mxu0 %v2046
        %v2330 = vpop.f32.mrf.mxu0
        %v2331 = vadd.f32 0.0, %v2330
        %v2332 = vpop.f32.mrf.mxu0
        %2333 = vmatprep.mubr.f32.mxu0 0.0
        %2334 = vmatmul.mubr.f32.gmra.mxu0 %v2048
        %v2335 = vpop.f32.mrf.mxu0
        %v2336 = vadd.f32 0.0, %v2335
        %v2337 = vpop.f32.mrf.mxu0
        %2338 = vmatprep.mubr.f32.mxu0 0.0
        %2339 = vmatmul.mubr.f32.gmra.mxu0 %v2050
        %v2340 = vpop.f32.mrf.mxu0
        %v2341 = vadd.f32 0.0, %v2340
        %v2342 = vpop.f32.mrf.mxu0
        %2343 = vmatprep.mubr.f32.mxu0 0.0
        %2344 = vmatmul.mubr.f32.gmra.mxu0 %v2052
        %v2345 = vpop.f32.mrf.mxu0
        %v2346 = vadd.f32 0.0, %v2345
        %v2347 = vpop.f32.mrf.mxu0
        %2348 = vmatprep.mubr.f32.mxu0 0.0
        %2349 = vmatmul.mubr.f32.gmra.mxu0 %v2054
        %v2350 = vpop.f32.mrf.mxu0
        %v2351 = vadd.f32 0.0, %v2350
        %v2352 = vpop.f32.mrf.mxu0
        %2353 = vmatprep.mubr.f32.mxu0 0.0
        %2354 = vmatmul.mubr.f32.gmra.mxu0 %v2056
        %v2355 = vpop.f32.mrf.mxu0
        %v2356 = vadd.f32 0.0, %v2355
        %v2357 = vpop.f32.mrf.mxu0
        %2358 = vmatprep.mubr.f32.mxu0 0.0
        %2359 = vmatmul.mubr.f32.gmra.mxu0 %v2058
        %v2360 = vpop.f32.mrf.mxu0
        %v2361 = vadd.f32 0.0, %v2360
        %v2362 = vpop.f32.mrf.mxu0
        %2363 = vmatprep.mubr.f32.mxu0 0.0
        %2364 = vmatmul.mubr.f32.gmra.mxu0 %v2060
        %v2365 = vpop.f32.mrf.mxu0
        %v2366 = vadd.f32 0.0, %v2365
        %v2367 = vpop.f32.mrf.mxu0
        %2368 = vmatprep.mubr.f32.mxu0 0.0
        %2369 = vmatmul.mubr.f32.gmra.mxu0 %v2230
        %v2370 = vpop.f32.mrf.mxu0
        %v2371 = vadd.f32 0.0, %v2370
        %v2372 = vpop.f32.mrf.mxu0
        %2373 = vmatprep.mubr.f32.mxu0 0.0
        %2374 = vmatmul.mubr.f32.gmra.mxu0 %v2232
        %v2375 = vpop.f32.mrf.mxu0
        %v2376 = vadd.f32 0.0, %v2375
        %v2377 = vpop.f32.mrf.mxu0
        %2378 = vdwg.mxu0
        %v2379 = vadd.f32 %v2207, %v2301
        %v2380 = vadd.f32 %v2208, %v2306
        %v2381 = vadd.f32 %v2209, %v2311
        %v2382 = vadd.f32 %v2210, %v2316
        %v2383 = vadd.f32 %v2211, %v2321
        %v2384 = vadd.f32 %v2212, %v2326
        %v2385 = vadd.f32 %v2213, %v2331
        %v2386 = vadd.f32 %v2214, %v2336
        %v2387 = vadd.f32 %v2215, %v2341
        %v2388 = vadd.f32 %v2216, %v2346
        %v2389 = vadd.f32 %v2217, %v2351
        %v2390 = vadd.f32 %v2218, %v2356
        %v2391 = vadd.f32 %v2219, %v2361
        %v2392 = vadd.f32 %v2220, %v2366
        %v2393 = vadd.f32 %v2221, %v2371
        %v2394 = vadd.f32 %v2222, %v2376
        %v2395 = vrot.slane %v878, 2
        %v2396 = vrot.slane %v879, 2
        %v2397 = vsel %vm1987, %v2395, %v2396
        %v2398 = vrot.slane %v880, 2
        %v2399 = vsel %vm1987, %v2396, %v2398
        %s2400 = scalar_lea.vmem %s3, 64
        %v2401 = vld [vmem:[%s2400] sm:$0xff]
        %v2402 = vsel %vm297, %v2397, 0
        %v2404 = vsel %vm297, %v2399, 0
        %2406 = vmatprep.subr.mxu0 0.0
        %2407 = vmatpush1.msra.mxu0 0.0
        %2408 = vmatprep.subr.mxu0 0.0
        %2409 = vmatpush1.msra.mxu0 0.0
        %2410 = vmatprep.subr.mxu0 0.0
        %2411 = vmatpush1.msra.mxu0 0.0
        %2412 = vmatprep.subr.mxu0 0.0
        %2413 = vmatpush1.msra.mxu0 0.0
        %2414 = vmatprep.subr.mxu0 0.0
        %2415 = vmatpush1.msra.mxu0 0.0
        %2416 = vmatprep.subr.mxu0 0.0
        %2417 = vmatpush1.msra.mxu0 0.0
        %2418 = vmatprep.subr.mxu0 0.0
        %2419 = vmatpush1.msra.mxu0 0.0
        %2420 = vmatprep.subr.mxu0 0.0
        %2421 = vmatpush1.msra.mxu0 0.0
        %2422 = vmatprep.subr.mxu0 0.0
        %2423 = vmatpush1.msra.mxu0 0.0
        %2424 = vmatprep.subr.mxu0 0.0
        %2425 = vmatpush1.msra.mxu0 0.0
        %2426 = vmatprep.subr.mxu0 0.0
        %2427 = vmatpush1.msra.mxu0 0.0
        %2428 = vmatprep.subr.mxu0 0.0
        %2429 = vmatpush1.msra.mxu0 0.0
        %2430 = vmatprep.subr.mxu0 0.0
        %2431 = vmatpush1.msra.mxu0 0.0
        %2432 = vmatprep.subr.mxu0 0.0
        %2433 = vmatpush1.msra.mxu0 0.0
        %2434 = vmatprep.subr.mxu0 0.0
        %2435 = vmatpush1.msra.mxu0 0.0
        %2436 = vmatprep.subr.mxu0 0.0
        %2437 = vmatpush1.msra.mxu0 %v2401
        %2438 = vmatprep.subr.mxu0 0.0
        %2439 = vmatpush2.msra.mxu0 0.0
        %2440 = vmatprep.subr.mxu0 0.0
        %2441 = vmatpush2.msra.mxu0 0.0
        %2442 = vmatprep.subr.mxu0 0.0
        %2443 = vmatpush2.msra.mxu0 0.0
        %2444 = vmatprep.subr.mxu0 0.0
        %2445 = vmatpush2.msra.mxu0 0.0
        %2446 = vmatprep.subr.mxu0 0.0
        %2447 = vmatpush2.msra.mxu0 0.0
        %2448 = vmatprep.subr.mxu0 0.0
        %2449 = vmatpush2.msra.mxu0 0.0
        %2450 = vmatprep.subr.mxu0 0.0
        %2451 = vmatpush2.msra.mxu0 0.0
        %2452 = vmatprep.subr.mxu0 0.0
        %2453 = vmatpush2.msra.mxu0 0.0
        %2454 = vmatprep.subr.mxu0 0.0
        %2455 = vmatpush2.msra.mxu0 0.0
        %2456 = vmatprep.subr.mxu0 0.0
        %2457 = vmatpush2.msra.mxu0 0.0
        %2458 = vmatprep.subr.mxu0 0.0
        %2459 = vmatpush2.msra.mxu0 0.0
        %2460 = vmatprep.subr.mxu0 0.0
        %2461 = vmatpush2.msra.mxu0 0.0
        %2462 = vmatprep.subr.mxu0 0.0
        %2463 = vmatpush2.msra.mxu0 0.0
        %2464 = vmatprep.subr.mxu0 0.0
        %2465 = vmatpush2.msra.mxu0 0.0
        %2466 = vmatprep.subr.mxu0 0.0
        %2467 = vmatpush2.msra.mxu0 0.0
        %2468 = vmatprep.subr.mxu0 0.0
        %2469 = vmatpush2.msra.mxu0 0.0
        %2470 = vmatprep.mubr.f32.mxu0 0.0
        %2471 = vmatmul.mubr.f32.gmra.mxu0 %v2038
        %v2472 = vpop.f32.mrf.mxu0
        %v2473 = vadd.f32 0.0, %v2472
        %v2474 = vpop.f32.mrf.mxu0
        %2475 = vmatprep.mubr.f32.mxu0 0.0
        %2476 = vmatmul.mubr.f32.gmra.mxu0 %v2040
        %v2477 = vpop.f32.mrf.mxu0
        %v2478 = vadd.f32 0.0, %v2477
        %v2479 = vpop.f32.mrf.mxu0
        %2480 = vmatprep.mubr.f32.mxu0 0.0
        %2481 = vmatmul.mubr.f32.gmra.mxu0 %v2042
        %v2482 = vpop.f32.mrf.mxu0
        %v2483 = vadd.f32 0.0, %v2482
        %v2484 = vpop.f32.mrf.mxu0
        %2485 = vmatprep.mubr.f32.mxu0 0.0
        %2486 = vmatmul.mubr.f32.gmra.mxu0 %v2044
        %v2487 = vpop.f32.mrf.mxu0
        %v2488 = vadd.f32 0.0, %v2487
        %v2489 = vpop.f32.mrf.mxu0
        %2490 = vmatprep.mubr.f32.mxu0 0.0
        %2491 = vmatmul.mubr.f32.gmra.mxu0 %v2046
        %v2492 = vpop.f32.mrf.mxu0
        %v2493 = vadd.f32 0.0, %v2492
        %v2494 = vpop.f32.mrf.mxu0
        %2495 = vmatprep.mubr.f32.mxu0 0.0
        %2496 = vmatmul.mubr.f32.gmra.mxu0 %v2048
        %v2497 = vpop.f32.mrf.mxu0
        %v2498 = vadd.f32 0.0, %v2497
        %v2499 = vpop.f32.mrf.mxu0
        %2500 = vmatprep.mubr.f32.mxu0 0.0
        %2501 = vmatmul.mubr.f32.gmra.mxu0 %v2050
        %v2502 = vpop.f32.mrf.mxu0
        %v2503 = vadd.f32 0.0, %v2502
        %v2504 = vpop.f32.mrf.mxu0
        %2505 = vmatprep.mubr.f32.mxu0 0.0
        %2506 = vmatmul.mubr.f32.gmra.mxu0 %v2052
        %v2507 = vpop.f32.mrf.mxu0
        %v2508 = vadd.f32 0.0, %v2507
        %v2509 = vpop.f32.mrf.mxu0
        %2510 = vmatprep.mubr.f32.mxu0 0.0
        %2511 = vmatmul.mubr.f32.gmra.mxu0 %v2054
        %v2512 = vpop.f32.mrf.mxu0
        %v2513 = vadd.f32 0.0, %v2512
        %v2514 = vpop.f32.mrf.mxu0
        %2515 = vmatprep.mubr.f32.mxu0 0.0
        %2516 = vmatmul.mubr.f32.gmra.mxu0 %v2056
        %v2517 = vpop.f32.mrf.mxu0
        %v2518 = vadd.f32 0.0, %v2517
        %v2519 = vpop.f32.mrf.mxu0
        %2520 = vmatprep.mubr.f32.mxu0 0.0
        %2521 = vmatmul.mubr.f32.gmra.mxu0 %v2058
        %v2522 = vpop.f32.mrf.mxu0
        %v2523 = vadd.f32 0.0, %v2522
        %v2524 = vpop.f32.mrf.mxu0
        %2525 = vmatprep.mubr.f32.mxu0 0.0
        %2526 = vmatmul.mubr.f32.gmra.mxu0 %v2060
        %v2527 = vpop.f32.mrf.mxu0
        %v2528 = vadd.f32 0.0, %v2527
        %v2529 = vpop.f32.mrf.mxu0
        %2530 = vmatprep.mubr.f32.mxu0 0.0
        %2531 = vmatmul.mubr.f32.gmra.mxu0 %v2230
        %v2532 = vpop.f32.mrf.mxu0
        %v2533 = vadd.f32 0.0, %v2532
        %v2534 = vpop.f32.mrf.mxu0
        %2535 = vmatprep.mubr.f32.mxu0 0.0
        %2536 = vmatmul.mubr.f32.gmra.mxu0 %v2232
        %v2537 = vpop.f32.mrf.mxu0
        %v2538 = vadd.f32 0.0, %v2537
        %v2539 = vpop.f32.mrf.mxu0
        %2540 = vmatprep.mubr.f32.mxu0 0.0
        %2541 = vmatmul.mubr.f32.gmra.mxu0 %v2402
        %v2542 = vpop.f32.mrf.mxu0
        %v2543 = vadd.f32 0.0, %v2542
        %v2544 = vpop.f32.mrf.mxu0
        %2545 = vmatprep.mubr.f32.mxu0 0.0
        %2546 = vmatmul.mubr.f32.gmra.mxu0 %v2404
        %v2547 = vpop.f32.mrf.mxu0
        %v2548 = vadd.f32 0.0, %v2547
        %v2549 = vpop.f32.mrf.mxu0
        %2550 = vdwg.mxu0
        %v2551 = vadd.f32 %v2379, %v2473
        %v2552 = vadd.f32 %v2380, %v2478
        %v2553 = vadd.f32 %v2381, %v2483
        %v2554 = vadd.f32 %v2382, %v2488
        %v2555 = vadd.f32 %v2383, %v2493
        %v2556 = vadd.f32 %v2384, %v2498
        %v2557 = vadd.f32 %v2385, %v2503
        %v2558 = vadd.f32 %v2386, %v2508
        %v2559 = vadd.f32 %v2387, %v2513
        %v2560 = vadd.f32 %v2388, %v2518
        %v2561 = vadd.f32 %v2389, %v2523
        %v2562 = vadd.f32 %v2390, %v2528
        %v2563 = vadd.f32 %v2391, %v2533
        %v2564 = vadd.f32 %v2392, %v2538
        %v2565 = vadd.f32 %v2393, %v2543
        %v2566 = vadd.f32 %v2394, %v2548
        %v2567 = vld [vmem:[%s4] sm:$0x1]
        %v2569 = vlaneseq
        %v2570 = vshrl.u32 %v2569, 7
        %v2571 = vsub.s32 0, %v2570
        %v2572 = vrot.slane %v2567, %v2571
        %v2574 = vadd.f32 %v2551, %v2572
        %v2575 = vadd.f32 %v2552, %v2572
        %v2576 = vadd.f32 %v2553, %v2572
        %v2577 = vadd.f32 %v2554, %v2572
        %v2578 = vadd.f32 %v2555, %v2572
        %v2579 = vadd.f32 %v2556, %v2572
        %v2580 = vadd.f32 %v2557, %v2572
        %v2581 = vadd.f32 %v2558, %v2572
        %v2582 = vadd.f32 %v2559, %v2572
        %v2583 = vadd.f32 %v2560, %v2572
        %v2584 = vadd.f32 %v2561, %v2572
        %v2585 = vadd.f32 %v2562, %v2572
        %v2586 = vadd.f32 %v2563, %v2572
        %v2587 = vadd.f32 %v2564, %v2572
        %v2588 = vadd.f32 %v2565, %v2572
        %v2589 = vadd.f32 %v2566, %v2572
        %v2590 = vmax.f32 %v2574, 0.0
        %v2591 = vmax.f32 %v2575, 0.0
        %v2592 = vmax.f32 %v2576, 0.0
        %v2593 = vmax.f32 %v2577, 0.0
        %v2594 = vmax.f32 %v2578, 0.0
        %v2595 = vmax.f32 %v2579, 0.0
        %v2596 = vmax.f32 %v2580, 0.0
        %v2597 = vmax.f32 %v2581, 0.0
        %v2598 = vmax.f32 %v2582, 0.0
        %v2599 = vmax.f32 %v2583, 0.0
        %v2600 = vmax.f32 %v2584, 0.0
        %v2601 = vmax.f32 %v2585, 0.0
        %v2602 = vmax.f32 %v2586, 0.0
        %v2603 = vmax.f32 %v2587, 0.0
        %v2604 = vmax.f32 %v2588, 0.0
        %v2605 = vmax.f32 %v2589, 0.0
        %v2606 = vld [vmem:[%s5] sm:$0xff]
        %v2607 = vld [vmem:[%s266] sm:$0xff]
        %v2608 = vld [vmem:[%s266 + $0x8] sm:$0xff]
        %v2609 = vld [vmem:[%s266 + $0x10] sm:$0xff]
        %v2610 = vld [vmem:[%s266 + $0x18] sm:$0xff]
        %v2611 = vld [vmem:[%s266 + $0x20] sm:$0xff]
        %v2612 = vld [vmem:[%s266 + $0x28] sm:$0xff]
        %v2613 = vld [vmem:[%s266 + $0x30] sm:$0xff]
        %v2614 = vld [vmem:[%s266 + $0x38] sm:$0xff]
        %v2615 = vld [vmem:[%s266 + $0x40] sm:$0xff]
        %v2616 = vld [vmem:[%s266 + $0x48] sm:$0xff]
        %v2617 = vld [vmem:[%s266 + $0x50] sm:$0xff]
        %v2618 = vld [vmem:[%s266 + $0x58] sm:$0xff]
        %v2619 = vld [vmem:[%s266 + $0x60] sm:$0xff]
        %v2620 = vld [vmem:[%s266 + $0x68] sm:$0xff]
        %v2621 = vld [vmem:[%s266 + $0x70] sm:$0xff]
        %v2622 = vld [vmem:[%s266 + $0x78] sm:$0xff]
        %v2623 = vld [vmem:[%s6] sm:$0x1]
        %v2625 = vlaneseq
        %v2626 = vshrl.u32 %v2625, 7
        %v2627 = vsub.s32 0, %v2626
        %v2628 = vrot.slane %v2623, %v2627
        %v2631 = vsel %vm297, %v2590, 0
        %v2634 = vsel %vm297, %v2591, 0
        %v2637 = vsel %vm297, %v2592, 0
        %v2640 = vsel %vm297, %v2593, 0
        %v2643 = vsel %vm297, %v2594, 0
        %v2646 = vsel %vm297, %v2595, 0
        %v2649 = vsel %vm297, %v2596, 0
        %v2652 = vsel %vm297, %v2597, 0
        %v2655 = vsel %vm297, %v2598, 0
        %v2658 = vsel %vm297, %v2599, 0
        %v2661 = vsel %vm297, %v2600, 0
        %v2664 = vsel %vm297, %v2601, 0
        %v2667 = vsel %vm297, %v2602, 0
        %v2670 = vsel %vm297, %v2603, 0
        %v2673 = vsel %vm297, %v2604, 0
        %v2676 = vsel %vm297, %v2605, 0
        %2678 = vmatprep.subr.mxu0 0.0
        %2679 = vmatpush1.msra.mxu0 0.0
        %2680 = vmatprep.subr.mxu0 0.0
        %2681 = vmatpush1.msra.mxu0 0.0
        %2682 = vmatprep.subr.mxu0 0.0
        %2683 = vmatpush1.msra.mxu0 0.0
        %2684 = vmatprep.subr.mxu0 0.0
        %2685 = vmatpush1.msra.mxu0 0.0
        %2686 = vmatprep.subr.mxu0 0.0
        %2687 = vmatpush1.msra.mxu0 0.0
        %2688 = vmatprep.subr.mxu0 0.0
        %2689 = vmatpush1.msra.mxu0 0.0
        %2690 = vmatprep.subr.mxu0 0.0
        %2691 = vmatpush1.msra.mxu0 0.0
        %2692 = vmatprep.subr.mxu0 0.0
        %2693 = vmatpush1.msra.mxu0 0.0
        %2694 = vmatprep.subr.mxu0 0.0
        %2695 = vmatpush1.msra.mxu0 0.0
        %2696 = vmatprep.subr.mxu0 0.0
        %2697 = vmatpush1.msra.mxu0 0.0
        %2698 = vmatprep.subr.mxu0 0.0
        %2699 = vmatpush1.msra.mxu0 0.0
        %2700 = vmatprep.subr.mxu0 0.0
        %2701 = vmatpush1.msra.mxu0 0.0
        %2702 = vmatprep.subr.mxu0 0.0
        %2703 = vmatpush1.msra.mxu0 0.0
        %2704 = vmatprep.subr.mxu0 0.0
        %2705 = vmatpush1.msra.mxu0 0.0
        %2706 = vmatprep.subr.mxu0 0.0
        %2707 = vmatpush1.msra.mxu0 0.0
        %2708 = vmatprep.subr.mxu0 0.0
        %2709 = vmatpush1.msra.mxu0 %v2606
        %2710 = vmatprep.subr.mxu0 0.0
        %2711 = vmatpush2.msra.mxu0 0.0
        %2712 = vmatprep.subr.mxu0 0.0
        %2713 = vmatpush2.msra.mxu0 0.0
        %2714 = vmatprep.subr.mxu0 0.0
        %2715 = vmatpush2.msra.mxu0 0.0
        %2716 = vmatprep.subr.mxu0 0.0
        %2717 = vmatpush2.msra.mxu0 0.0
        %2718 = vmatprep.subr.mxu0 0.0
        %2719 = vmatpush2.msra.mxu0 0.0
        %2720 = vmatprep.subr.mxu0 0.0
        %2721 = vmatpush2.msra.mxu0 0.0
        %2722 = vmatprep.subr.mxu0 0.0
        %2723 = vmatpush2.msra.mxu0 0.0
        %2724 = vmatprep.subr.mxu0 0.0
        %2725 = vmatpush2.msra.mxu0 0.0
        %2726 = vmatprep.subr.mxu0 0.0
        %2727 = vmatpush2.msra.mxu0 0.0
        %2728 = vmatprep.subr.mxu0 0.0
        %2729 = vmatpush2.msra.mxu0 0.0
        %2730 = vmatprep.subr.mxu0 0.0
        %2731 = vmatpush2.msra.mxu0 0.0
        %2732 = vmatprep.subr.mxu0 0.0
        %2733 = vmatpush2.msra.mxu0 0.0
        %2734 = vmatprep.subr.mxu0 0.0
        %2735 = vmatpush2.msra.mxu0 0.0
        %2736 = vmatprep.subr.mxu0 0.0
        %2737 = vmatpush2.msra.mxu0 0.0
        %2738 = vmatprep.subr.mxu0 0.0
        %2739 = vmatpush2.msra.mxu0 0.0
        %2740 = vmatprep.subr.mxu0 0.0
        %2741 = vmatpush2.msra.mxu0 0.0
        %2742 = vmatprep.mubr.f32.mxu0 0.0
        %2743 = vmatmul.mubr.f32.gmra.mxu0 %v2631
        %v2744 = vpop.f32.mrf.mxu0
        %v2745 = vadd.f32 %v2628, %v2744
        %v2746 = vpop.f32.mrf.mxu0
        %2747 = vmatprep.mubr.f32.mxu0 0.0
        %2748 = vmatmul.mubr.f32.gmra.mxu0 %v2634
        %v2749 = vpop.f32.mrf.mxu0
        %v2750 = vadd.f32 %v2628, %v2749
        %v2751 = vpop.f32.mrf.mxu0
        %2752 = vmatprep.mubr.f32.mxu0 0.0
        %2753 = vmatmul.mubr.f32.gmra.mxu0 %v2637
        %v2754 = vpop.f32.mrf.mxu0
        %v2755 = vadd.f32 %v2628, %v2754
        %v2756 = vpop.f32.mrf.mxu0
        %2757 = vmatprep.mubr.f32.mxu0 0.0
        %2758 = vmatmul.mubr.f32.gmra.mxu0 %v2640
        %v2759 = vpop.f32.mrf.mxu0
        %v2760 = vadd.f32 %v2628, %v2759
        %v2761 = vpop.f32.mrf.mxu0
        %2762 = vmatprep.mubr.f32.mxu0 0.0
        %2763 = vmatmul.mubr.f32.gmra.mxu0 %v2643
        %v2764 = vpop.f32.mrf.mxu0
        %v2765 = vadd.f32 %v2628, %v2764
        %v2766 = vpop.f32.mrf.mxu0
        %2767 = vmatprep.mubr.f32.mxu0 0.0
        %2768 = vmatmul.mubr.f32.gmra.mxu0 %v2646
        %v2769 = vpop.f32.mrf.mxu0
        %v2770 = vadd.f32 %v2628, %v2769
        %v2771 = vpop.f32.mrf.mxu0
        %2772 = vmatprep.mubr.f32.mxu0 0.0
        %2773 = vmatmul.mubr.f32.gmra.mxu0 %v2649
        %v2774 = vpop.f32.mrf.mxu0
        %v2775 = vadd.f32 %v2628, %v2774
        %v2776 = vpop.f32.mrf.mxu0
        %2777 = vmatprep.mubr.f32.mxu0 0.0
        %2778 = vmatmul.mubr.f32.gmra.mxu0 %v2652
        %v2779 = vpop.f32.mrf.mxu0
        %v2780 = vadd.f32 %v2628, %v2779
        %v2781 = vpop.f32.mrf.mxu0
        %2782 = vmatprep.mubr.f32.mxu0 0.0
        %2783 = vmatmul.mubr.f32.gmra.mxu0 %v2655
        %v2784 = vpop.f32.mrf.mxu0
        %v2785 = vadd.f32 %v2628, %v2784
        %v2786 = vpop.f32.mrf.mxu0
        %2787 = vmatprep.mubr.f32.mxu0 0.0
        %2788 = vmatmul.mubr.f32.gmra.mxu0 %v2658
        %v2789 = vpop.f32.mrf.mxu0
        %v2790 = vadd.f32 %v2628, %v2789
        %v2791 = vpop.f32.mrf.mxu0
        %2792 = vmatprep.mubr.f32.mxu0 0.0
        %2793 = vmatmul.mubr.f32.gmra.mxu0 %v2661
        %v2794 = vpop.f32.mrf.mxu0
        %v2795 = vadd.f32 %v2628, %v2794
        %v2796 = vpop.f32.mrf.mxu0
        %2797 = vmatprep.mubr.f32.mxu0 0.0
        %2798 = vmatmul.mubr.f32.gmra.mxu0 %v2664
        %v2799 = vpop.f32.mrf.mxu0
        %v2800 = vadd.f32 %v2628, %v2799
        %v2801 = vpop.f32.mrf.mxu0
        %2802 = vmatprep.mubr.f32.mxu0 0.0
        %2803 = vmatmul.mubr.f32.gmra.mxu0 %v2667
        %v2804 = vpop.f32.mrf.mxu0
        %v2805 = vadd.f32 %v2628, %v2804
        %v2806 = vpop.f32.mrf.mxu0
        %2807 = vmatprep.mubr.f32.mxu0 0.0
        %2808 = vmatmul.mubr.f32.gmra.mxu0 %v2670
        %v2809 = vpop.f32.mrf.mxu0
        %v2810 = vadd.f32 %v2628, %v2809
        %v2811 = vpop.f32.mrf.mxu0
        %2812 = vmatprep.mubr.f32.mxu0 0.0
        %2813 = vmatmul.mubr.f32.gmra.mxu0 %v2673
        %v2814 = vpop.f32.mrf.mxu0
        %v2815 = vadd.f32 %v2628, %v2814
        %v2816 = vpop.f32.mrf.mxu0
        %2817 = vmatprep.mubr.f32.mxu0 0.0
        %2818 = vmatmul.mubr.f32.gmra.mxu0 %v2676
        %v2819 = vpop.f32.mrf.mxu0
        %v2820 = vadd.f32 %v2628, %v2819
        %v2821 = vpop.f32.mrf.mxu0
        %2822 = vdwg.mxu0
        %v2823 = vadd.f32 %v2745, %v2607
        %v2824 = vadd.f32 %v2750, %v2608
        %v2825 = vadd.f32 %v2755, %v2609
        %v2826 = vadd.f32 %v2760, %v2610
        %v2827 = vadd.f32 %v2765, %v2611
        %v2828 = vadd.f32 %v2770, %v2612
        %v2829 = vadd.f32 %v2775, %v2613
        %v2830 = vadd.f32 %v2780, %v2614
        %v2831 = vadd.f32 %v2785, %v2615
        %v2832 = vadd.f32 %v2790, %v2616
        %v2833 = vadd.f32 %v2795, %v2617
        %v2834 = vadd.f32 %v2800, %v2618
        %v2835 = vadd.f32 %v2805, %v2619
        %v2836 = vadd.f32 %v2810, %v2620
        %v2837 = vadd.f32 %v2815, %v2621
        %v2838 = vadd.f32 %v2820, %v2622
        %v2839 = vmax.f32 %v2823, 0.0
        %v2840 = vmax.f32 %v2824, 0.0
        %v2841 = vmax.f32 %v2825, 0.0
        %v2842 = vmax.f32 %v2826, 0.0
        %v2843 = vmax.f32 %v2827, 0.0
        %v2844 = vmax.f32 %v2828, 0.0
        %v2845 = vmax.f32 %v2829, 0.0
        %v2846 = vmax.f32 %v2830, 0.0
        %v2847 = vmax.f32 %v2831, 0.0
        %v2848 = vmax.f32 %v2832, 0.0
        %v2849 = vmax.f32 %v2833, 0.0
        %v2850 = vmax.f32 %v2834, 0.0
        %v2851 = vmax.f32 %v2835, 0.0
        %v2852 = vmax.f32 %v2836, 0.0
        %v2853 = vmax.f32 %v2837, 0.0
        %v2854 = vmax.f32 %v2838, 0.0
        %2855 = vst.msk [vmem:[%s296] sm:$0xff] %vm370, %v2839
        %2856 = vst.msk [vmem:[%s296 + $0x8] sm:$0xff] %vm370, %v2840
        %2857 = vst.msk [vmem:[%s296 + $0x10] sm:$0xff] %vm370, %v2841
        %2858 = vst.msk [vmem:[%s296 + $0x18] sm:$0xff] %vm370, %v2842
        %2859 = vst.msk [vmem:[%s296 + $0x20] sm:$0xff] %vm370, %v2843
        %2860 = vst.msk [vmem:[%s296 + $0x28] sm:$0xff] %vm370, %v2844
        %2861 = vst.msk [vmem:[%s296 + $0x30] sm:$0xff] %vm370, %v2845
        %2862 = vst.msk [vmem:[%s296 + $0x38] sm:$0xff] %vm370, %v2846
        %2863 = vst.msk [vmem:[%s296 + $0x40] sm:$0xff] %vm370, %v2847
        %2864 = vst.msk [vmem:[%s296 + $0x48] sm:$0xff] %vm370, %v2848
        %2865 = vst.msk [vmem:[%s296 + $0x50] sm:$0xff] %vm370, %v2849
        %2866 = vst.msk [vmem:[%s296 + $0x58] sm:$0xff] %vm370, %v2850
        %2867 = vst.msk [vmem:[%s296 + $0x60] sm:$0xff] %vm370, %v2851
        %2868 = vst.msk [vmem:[%s296 + $0x68] sm:$0xff] %vm370, %v2852
        %2869 = vst.msk [vmem:[%s296 + $0x70] sm:$0xff] %vm370, %v2853
        %2870 = vst.msk [vmem:[%s296 + $0x78] sm:$0xff] %vm370, %v2854
        %s2871 = scalar_lea.vmem [#allocation2], 192
        %v2872 = vld [vmem:[%s2871] sm:$0xff]
        %v2873 = vld [vmem:[%s2871 + $0x8] sm:$0xff]
        %v2874 = vld [vmem:[%s2871 + $0x10] sm:$0x3]
        %v2875 = vld [vmem:[%s2871 + $0x18] sm:$0xff]
        %v2876 = vld [vmem:[%s2871 + $0x20] sm:$0xff]
        %v2877 = vld [vmem:[%s2871 + $0x28] sm:$0x3]
        %v2878 = vld [vmem:[%s2871 + $0x30] sm:$0xff]
        %v2879 = vld [vmem:[%s2871 + $0x38] sm:$0xff]
        %v2880 = vld [vmem:[%s2871 + $0x40] sm:$0x3]
        %v2881 = vld [vmem:[%s2871 + $0x48] sm:$0xff]
        %v2882 = vld [vmem:[%s2871 + $0x50] sm:$0xff]
        %v2883 = vld [vmem:[%s2871 + $0x58] sm:$0x3]
        %v2884 = vld [vmem:[%s2871 + $0x60] sm:$0xff]
        %v2885 = vld [vmem:[%s2871 + $0x68] sm:$0xff]
        %v2886 = vld [vmem:[%s2871 + $0x70] sm:$0x3]
        %v2887 = vld [vmem:[%s2871 + $0x78] sm:$0xff]
        %v2888 = vld [vmem:[%s2871 + $0x80] sm:$0xff]
        %v2889 = vld [vmem:[%s2871 + $0x88] sm:$0x3]
        %v2890 = vld [vmem:[%s2871 + $0x90] sm:$0xff]
        %v2891 = vld [vmem:[%s2871 + $0x98] sm:$0xff]
        %v2892 = vld [vmem:[%s2871 + $0xa0] sm:$0x3]
        %v2893 = vld [vmem:[%s2871 + $0xa8] sm:$0xff]
        %v2894 = vld [vmem:[%s2871 + $0xb0] sm:$0xff]
        %v2895 = vld [vmem:[%s2871 + $0xb8] sm:$0x3]
        %v2896 = vld [vmem:[%s2871 + $0xc0] sm:$0xff]
        %v2897 = vld [vmem:[%s2871 + $0xc8] sm:$0xff]
        %v2898 = vld [vmem:[%s2871 + $0xd0] sm:$0x3]
        %v2899 = vld [vmem:[%s2871 + $0xd8] sm:$0xff]
        %v2900 = vld [vmem:[%s2871 + $0xe0] sm:$0xff]
        %v2901 = vld [vmem:[%s2871 + $0xe8] sm:$0x3]
        %v2902 = vld [vmem:[%s3] sm:$0xff]
        %v2903 = vld [vmem:[%s882] sm:$0xff]
        %v2905 = vsel %vm297, %v2875, 0
        %v2908 = vsel %vm297, %v2876, 0
        %v2911 = vsel %vm297, %v2878, 0
        %v2914 = vsel %vm297, %v2879, 0
        %v2917 = vsel %vm297, %v2881, 0
        %v2920 = vsel %vm297, %v2882, 0
        %v2923 = vsel %vm297, %v2884, 0
        %v2926 = vsel %vm297, %v2885, 0
        %v2929 = vsel %vm297, %v2887, 0
        %v2932 = vsel %vm297, %v2888, 0
        %v2935 = vsel %vm297, %v2890, 0
        %v2938 = vsel %vm297, %v2891, 0
        %v2941 = vsel %vm297, %v2893, 0
        %v2944 = vsel %vm297, %v2894, 0
        %v2947 = vsel %vm297, %v2896, 0
        %v2950 = vsel %vm297, %v2897, 0
        %2952 = vmatprep.subr.mxu0 0.0
        %2953 = vmatpush1.msra.mxu0 0.0
        %2954 = vmatprep.subr.mxu0 0.0
        %2955 = vmatpush1.msra.mxu0 0.0
        %2956 = vmatprep.subr.mxu0 0.0
        %2957 = vmatpush1.msra.mxu0 0.0
        %2958 = vmatprep.subr.mxu0 0.0
        %2959 = vmatpush1.msra.mxu0 0.0
        %2960 = vmatprep.subr.mxu0 0.0
        %2961 = vmatpush1.msra.mxu0 0.0
        %2962 = vmatprep.subr.mxu0 0.0
        %2963 = vmatpush1.msra.mxu0 0.0
        %2964 = vmatprep.subr.mxu0 0.0
        %2965 = vmatpush1.msra.mxu0 0.0
        %2966 = vmatprep.subr.mxu0 0.0
        %2967 = vmatpush1.msra.mxu0 0.0
        %2968 = vmatprep.subr.mxu0 0.0
        %2969 = vmatpush1.msra.mxu0 0.0
        %2970 = vmatprep.subr.mxu0 0.0
        %2971 = vmatpush1.msra.mxu0 0.0
        %2972 = vmatprep.subr.mxu0 0.0
        %2973 = vmatpush1.msra.mxu0 0.0
        %2974 = vmatprep.subr.mxu0 0.0
        %2975 = vmatpush1.msra.mxu0 0.0
        %2976 = vmatprep.subr.mxu0 0.0
        %2977 = vmatpush1.msra.mxu0 0.0
        %2978 = vmatprep.subr.mxu0 0.0
        %2979 = vmatpush1.msra.mxu0 0.0
        %2980 = vmatprep.subr.mxu0 0.0
        %2981 = vmatpush1.msra.mxu0 0.0
        %2982 = vmatprep.subr.mxu0 0.0
        %2983 = vmatpush1.msra.mxu0 %v2903
        %2984 = vmatprep.subr.mxu0 0.0
        %2985 = vmatpush2.msra.mxu0 0.0
        %2986 = vmatprep.subr.mxu0 0.0
        %2987 = vmatpush2.msra.mxu0 0.0
        %2988 = vmatprep.subr.mxu0 0.0
        %2989 = vmatpush2.msra.mxu0 0.0
        %2990 = vmatprep.subr.mxu0 0.0
        %2991 = vmatpush2.msra.mxu0 0.0
        %2992 = vmatprep.subr.mxu0 0.0
        %2993 = vmatpush2.msra.mxu0 0.0
        %2994 = vmatprep.subr.mxu0 0.0
        %2995 = vmatpush2.msra.mxu0 0.0
        %2996 = vmatprep.subr.mxu0 0.0
        %2997 = vmatpush2.msra.mxu0 0.0
        %2998 = vmatprep.subr.mxu0 0.0
        %2999 = vmatpush2.msra.mxu0 0.0
        %3000 = vmatprep.subr.mxu0 0.0
        %3001 = vmatpush2.msra.mxu0 0.0
        %3002 = vmatprep.subr.mxu0 0.0
        %3003 = vmatpush2.msra.mxu0 0.0
        %3004 = vmatprep.subr.mxu0 0.0
        %3005 = vmatpush2.msra.mxu0 0.0
        %3006 = vmatprep.subr.mxu0 0.0
        %3007 = vmatpush2.msra.mxu0 0.0
        %3008 = vmatprep.subr.mxu0 0.0
        %3009 = vmatpush2.msra.mxu0 0.0
        %3010 = vmatprep.subr.mxu0 0.0
        %3011 = vmatpush2.msra.mxu0 0.0
        %3012 = vmatprep.subr.mxu0 0.0
        %3013 = vmatpush2.msra.mxu0 0.0
        %3014 = vmatprep.subr.mxu0 0.0
        %3015 = vmatpush2.msra.mxu0 0.0
        %3016 = vmatprep.mubr.f32.mxu0 0.0
        %3017 = vmatmul.mubr.f32.gmra.mxu0 %v2905
        %v3018 = vpop.f32.mrf.mxu0
        %v3019 = vadd.f32 0.0, %v3018
        %v3020 = vpop.f32.mrf.mxu0
        %3021 = vmatprep.mubr.f32.mxu0 0.0
        %3022 = vmatmul.mubr.f32.gmra.mxu0 %v2908
        %v3023 = vpop.f32.mrf.mxu0
        %v3024 = vadd.f32 0.0, %v3023
        %v3025 = vpop.f32.mrf.mxu0
        %3026 = vmatprep.mubr.f32.mxu0 0.0
        %3027 = vmatmul.mubr.f32.gmra.mxu0 %v2911
        %v3028 = vpop.f32.mrf.mxu0
        %v3029 = vadd.f32 0.0, %v3028
        %v3030 = vpop.f32.mrf.mxu0
        %3031 = vmatprep.mubr.f32.mxu0 0.0
        %3032 = vmatmul.mubr.f32.gmra.mxu0 %v2914
        %v3033 = vpop.f32.mrf.mxu0
        %v3034 = vadd.f32 0.0, %v3033
        %v3035 = vpop.f32.mrf.mxu0
        %3036 = vmatprep.mubr.f32.mxu0 0.0
        %3037 = vmatmul.mubr.f32.gmra.mxu0 %v2917
        %v3038 = vpop.f32.mrf.mxu0
        %v3039 = vadd.f32 0.0, %v3038
        %v3040 = vpop.f32.mrf.mxu0
        %3041 = vmatprep.mubr.f32.mxu0 0.0
        %3042 = vmatmul.mubr.f32.gmra.mxu0 %v2920
        %v3043 = vpop.f32.mrf.mxu0
        %v3044 = vadd.f32 0.0, %v3043
        %v3045 = vpop.f32.mrf.mxu0
        %3046 = vmatprep.mubr.f32.mxu0 0.0
        %3047 = vmatmul.mubr.f32.gmra.mxu0 %v2923
        %v3048 = vpop.f32.mrf.mxu0
        %v3049 = vadd.f32 0.0, %v3048
        %v3050 = vpop.f32.mrf.mxu0
        %3051 = vmatprep.mubr.f32.mxu0 0.0
        %3052 = vmatmul.mubr.f32.gmra.mxu0 %v2926
        %v3053 = vpop.f32.mrf.mxu0
        %v3054 = vadd.f32 0.0, %v3053
        %v3055 = vpop.f32.mrf.mxu0
        %3056 = vmatprep.mubr.f32.mxu0 0.0
        %3057 = vmatmul.mubr.f32.gmra.mxu0 %v2929
        %v3058 = vpop.f32.mrf.mxu0
        %v3059 = vadd.f32 0.0, %v3058
        %v3060 = vpop.f32.mrf.mxu0
        %3061 = vmatprep.mubr.f32.mxu0 0.0
        %3062 = vmatmul.mubr.f32.gmra.mxu0 %v2932
        %v3063 = vpop.f32.mrf.mxu0
        %v3064 = vadd.f32 0.0, %v3063
        %v3065 = vpop.f32.mrf.mxu0
        %3066 = vmatprep.mubr.f32.mxu0 0.0
        %3067 = vmatmul.mubr.f32.gmra.mxu0 %v2935
        %v3068 = vpop.f32.mrf.mxu0
        %v3069 = vadd.f32 0.0, %v3068
        %v3070 = vpop.f32.mrf.mxu0
        %3071 = vmatprep.mubr.f32.mxu0 0.0
        %3072 = vmatmul.mubr.f32.gmra.mxu0 %v2938
        %v3073 = vpop.f32.mrf.mxu0
        %v3074 = vadd.f32 0.0, %v3073
        %v3075 = vpop.f32.mrf.mxu0
        %3076 = vmatprep.mubr.f32.mxu0 0.0
        %3077 = vmatmul.mubr.f32.gmra.mxu0 %v2941
        %v3078 = vpop.f32.mrf.mxu0
        %v3079 = vadd.f32 0.0, %v3078
        %v3080 = vpop.f32.mrf.mxu0
        %3081 = vmatprep.mubr.f32.mxu0 0.0
        %3082 = vmatmul.mubr.f32.gmra.mxu0 %v2944
        %v3083 = vpop.f32.mrf.mxu0
        %v3084 = vadd.f32 0.0, %v3083
        %v3085 = vpop.f32.mrf.mxu0
        %3086 = vmatprep.mubr.f32.mxu0 0.0
        %3087 = vmatmul.mubr.f32.gmra.mxu0 %v2947
        %v3088 = vpop.f32.mrf.mxu0
        %v3089 = vadd.f32 0.0, %v3088
        %v3090 = vpop.f32.mrf.mxu0
        %3091 = vmatprep.mubr.f32.mxu0 0.0
        %3092 = vmatmul.mubr.f32.gmra.mxu0 %v2950
        %v3093 = vpop.f32.mrf.mxu0
        %v3094 = vadd.f32 0.0, %v3093
        %v3095 = vpop.f32.mrf.mxu0
        %3096 = vdwg.mxu0
        %v3098 = vsel %vm297, %v2872, 0
        %v3101 = vsel %vm297, %v2873, 0
        %3103 = vmatprep.subr.mxu0 0.0
        %3104 = vmatpush1.msra.mxu0 0.0
        %3105 = vmatprep.subr.mxu0 0.0
        %3106 = vmatpush1.msra.mxu0 0.0
        %3107 = vmatprep.subr.mxu0 0.0
        %3108 = vmatpush1.msra.mxu0 0.0
        %3109 = vmatprep.subr.mxu0 0.0
        %3110 = vmatpush1.msra.mxu0 0.0
        %3111 = vmatprep.subr.mxu0 0.0
        %3112 = vmatpush1.msra.mxu0 0.0
        %3113 = vmatprep.subr.mxu0 0.0
        %3114 = vmatpush1.msra.mxu0 0.0
        %3115 = vmatprep.subr.mxu0 0.0
        %3116 = vmatpush1.msra.mxu0 0.0
        %3117 = vmatprep.subr.mxu0 0.0
        %3118 = vmatpush1.msra.mxu0 0.0
        %3119 = vmatprep.subr.mxu0 0.0
        %3120 = vmatpush1.msra.mxu0 0.0
        %3121 = vmatprep.subr.mxu0 0.0
        %3122 = vmatpush1.msra.mxu0 0.0
        %3123 = vmatprep.subr.mxu0 0.0
        %3124 = vmatpush1.msra.mxu0 0.0
        %3125 = vmatprep.subr.mxu0 0.0
        %3126 = vmatpush1.msra.mxu0 0.0
        %3127 = vmatprep.subr.mxu0 0.0
        %3128 = vmatpush1.msra.mxu0 0.0
        %3129 = vmatprep.subr.mxu0 0.0
        %3130 = vmatpush1.msra.mxu0 0.0
        %3131 = vmatprep.subr.mxu0 0.0
        %3132 = vmatpush1.msra.mxu0 0.0
        %3133 = vmatprep.subr.mxu0 0.0
        %3134 = vmatpush1.msra.mxu0 %v2902
        %3135 = vmatprep.subr.mxu0 0.0
        %3136 = vmatpush2.msra.mxu0 0.0
        %3137 = vmatprep.subr.mxu0 0.0
        %3138 = vmatpush2.msra.mxu0 0.0
        %3139 = vmatprep.subr.mxu0 0.0
        %3140 = vmatpush2.msra.mxu0 0.0
        %3141 = vmatprep.subr.mxu0 0.0
        %3142 = vmatpush2.msra.mxu0 0.0
        %3143 = vmatprep.subr.mxu0 0.0
        %3144 = vmatpush2.msra.mxu0 0.0
        %3145 = vmatprep.subr.mxu0 0.0
        %3146 = vmatpush2.msra.mxu0 0.0
        %3147 = vmatprep.subr.mxu0 0.0
        %3148 = vmatpush2.msra.mxu0 0.0
        %3149 = vmatprep.subr.mxu0 0.0
        %3150 = vmatpush2.msra.mxu0 0.0
        %3151 = vmatprep.subr.mxu0 0.0
        %3152 = vmatpush2.msra.mxu0 0.0
        %3153 = vmatprep.subr.mxu0 0.0
        %3154 = vmatpush2.msra.mxu0 0.0
        %3155 = vmatprep.subr.mxu0 0.0
        %3156 = vmatpush2.msra.mxu0 0.0
        %3157 = vmatprep.subr.mxu0 0.0
        %3158 = vmatpush2.msra.mxu0 0.0
        %3159 = vmatprep.subr.mxu0 0.0
        %3160 = vmatpush2.msra.mxu0 0.0
        %3161 = vmatprep.subr.mxu0 0.0
        %3162 = vmatpush2.msra.mxu0 0.0
        %3163 = vmatprep.subr.mxu0 0.0
        %3164 = vmatpush2.msra.mxu0 0.0
        %3165 = vmatprep.subr.mxu0 0.0
        %3166 = vmatpush2.msra.mxu0 0.0
        %3167 = vmatprep.mubr.f32.mxu0 0.0
        %3168 = vmatmul.mubr.f32.gmra.mxu0 %v3098
        %v3169 = vpop.f32.mrf.mxu0
        %v3170 = vadd.f32 %v3019, %v3169
        %v3171 = vpop.f32.mrf.mxu0
        %3172 = vmatprep.mubr.f32.mxu0 0.0
        %3173 = vmatmul.mubr.f32.gmra.mxu0 %v3101
        %v3174 = vpop.f32.mrf.mxu0
        %v3175 = vadd.f32 %v3024, %v3174
        %v3176 = vpop.f32.mrf.mxu0
        %3177 = vmatprep.mubr.f32.mxu0 0.0
        %3178 = vmatmul.mubr.f32.gmra.mxu0 %v2905
        %v3179 = vpop.f32.mrf.mxu0
        %v3180 = vadd.f32 %v3029, %v3179
        %v3181 = vpop.f32.mrf.mxu0
        %3182 = vmatprep.mubr.f32.mxu0 0.0
        %3183 = vmatmul.mubr.f32.gmra.mxu0 %v2908
        %v3184 = vpop.f32.mrf.mxu0
        %v3185 = vadd.f32 %v3034, %v3184
        %v3186 = vpop.f32.mrf.mxu0
        %3187 = vmatprep.mubr.f32.mxu0 0.0
        %3188 = vmatmul.mubr.f32.gmra.mxu0 %v2911
        %v3189 = vpop.f32.mrf.mxu0
        %v3190 = vadd.f32 %v3039, %v3189
        %v3191 = vpop.f32.mrf.mxu0
        %3192 = vmatprep.mubr.f32.mxu0 0.0
        %3193 = vmatmul.mubr.f32.gmra.mxu0 %v2914
        %v3194 = vpop.f32.mrf.mxu0
        %v3195 = vadd.f32 %v3044, %v3194
        %v3196 = vpop.f32.mrf.mxu0
        %3197 = vmatprep.mubr.f32.mxu0 0.0
        %3198 = vmatmul.mubr.f32.gmra.mxu0 %v2917
        %v3199 = vpop.f32.mrf.mxu0
        %v3200 = vadd.f32 %v3049, %v3199
        %v3201 = vpop.f32.mrf.mxu0
        %3202 = vmatprep.mubr.f32.mxu0 0.0
        %3203 = vmatmul.mubr.f32.gmra.mxu0 %v2920
        %v3204 = vpop.f32.mrf.mxu0
        %v3205 = vadd.f32 %v3054, %v3204
        %v3206 = vpop.f32.mrf.mxu0
        %3207 = vmatprep.mubr.f32.mxu0 0.0
        %3208 = vmatmul.mubr.f32.gmra.mxu0 %v2923
        %v3209 = vpop.f32.mrf.mxu0
        %v3210 = vadd.f32 %v3059, %v3209
        %v3211 = vpop.f32.mrf.mxu0
        %3212 = vmatprep.mubr.f32.mxu0 0.0
        %3213 = vmatmul.mubr.f32.gmra.mxu0 %v2926
        %v3214 = vpop.f32.mrf.mxu0
        %v3215 = vadd.f32 %v3064, %v3214
        %v3216 = vpop.f32.mrf.mxu0
        %3217 = vmatprep.mubr.f32.mxu0 0.0
        %3218 = vmatmul.mubr.f32.gmra.mxu0 %v2929
        %v3219 = vpop.f32.mrf.mxu0
        %v3220 = vadd.f32 %v3069, %v3219
        %v3221 = vpop.f32.mrf.mxu0
        %3222 = vmatprep.mubr.f32.mxu0 0.0
        %3223 = vmatmul.mubr.f32.gmra.mxu0 %v2932
        %v3224 = vpop.f32.mrf.mxu0
        %v3225 = vadd.f32 %v3074, %v3224
        %v3226 = vpop.f32.mrf.mxu0
        %3227 = vmatprep.mubr.f32.mxu0 0.0
        %3228 = vmatmul.mubr.f32.gmra.mxu0 %v2935
        %v3229 = vpop.f32.mrf.mxu0
        %v3230 = vadd.f32 %v3079, %v3229
        %v3231 = vpop.f32.mrf.mxu0
        %3232 = vmatprep.mubr.f32.mxu0 0.0
        %3233 = vmatmul.mubr.f32.gmra.mxu0 %v2938
        %v3234 = vpop.f32.mrf.mxu0
        %v3235 = vadd.f32 %v3084, %v3234
        %v3236 = vpop.f32.mrf.mxu0
        %3237 = vmatprep.mubr.f32.mxu0 0.0
        %3238 = vmatmul.mubr.f32.gmra.mxu0 %v2941
        %v3239 = vpop.f32.mrf.mxu0
        %v3240 = vadd.f32 %v3089, %v3239
        %v3241 = vpop.f32.mrf.mxu0
        %3242 = vmatprep.mubr.f32.mxu0 0.0
        %3243 = vmatmul.mubr.f32.gmra.mxu0 %v2944
        %v3244 = vpop.f32.mrf.mxu0
        %v3245 = vadd.f32 %v3094, %v3244
        %v3246 = vpop.f32.mrf.mxu0
        %3247 = vdwg.mxu0
        %v3248 = vld [vmem:[%s1228] sm:$0xff]
        %v3250 = vsel %vm297, %v2899, 0
        %v3253 = vsel %vm297, %v2900, 0
        %3255 = vmatprep.subr.mxu0 0.0
        %3256 = vmatpush1.msra.mxu0 0.0
        %3257 = vmatprep.subr.mxu0 0.0
        %3258 = vmatpush1.msra.mxu0 0.0
        %3259 = vmatprep.subr.mxu0 0.0
        %3260 = vmatpush1.msra.mxu0 0.0
        %3261 = vmatprep.subr.mxu0 0.0
        %3262 = vmatpush1.msra.mxu0 0.0
        %3263 = vmatprep.subr.mxu0 0.0
        %3264 = vmatpush1.msra.mxu0 0.0
        %3265 = vmatprep.subr.mxu0 0.0
        %3266 = vmatpush1.msra.mxu0 0.0
        %3267 = vmatprep.subr.mxu0 0.0
        %3268 = vmatpush1.msra.mxu0 0.0
        %3269 = vmatprep.subr.mxu0 0.0
        %3270 = vmatpush1.msra.mxu0 0.0
        %3271 = vmatprep.subr.mxu0 0.0
        %3272 = vmatpush1.msra.mxu0 0.0
        %3273 = vmatprep.subr.mxu0 0.0
        %3274 = vmatpush1.msra.mxu0 0.0
        %3275 = vmatprep.subr.mxu0 0.0
        %3276 = vmatpush1.msra.mxu0 0.0
        %3277 = vmatprep.subr.mxu0 0.0
        %3278 = vmatpush1.msra.mxu0 0.0
        %3279 = vmatprep.subr.mxu0 0.0
        %3280 = vmatpush1.msra.mxu0 0.0
        %3281 = vmatprep.subr.mxu0 0.0
        %3282 = vmatpush1.msra.mxu0 0.0
        %3283 = vmatprep.subr.mxu0 0.0
        %3284 = vmatpush1.msra.mxu0 0.0
        %3285 = vmatprep.subr.mxu0 0.0
        %3286 = vmatpush1.msra.mxu0 %v3248
        %3287 = vmatprep.subr.mxu0 0.0
        %3288 = vmatpush2.msra.mxu0 0.0
        %3289 = vmatprep.subr.mxu0 0.0
        %3290 = vmatpush2.msra.mxu0 0.0
        %3291 = vmatprep.subr.mxu0 0.0
        %3292 = vmatpush2.msra.mxu0 0.0
        %3293 = vmatprep.subr.mxu0 0.0
        %3294 = vmatpush2.msra.mxu0 0.0
        %3295 = vmatprep.subr.mxu0 0.0
        %3296 = vmatpush2.msra.mxu0 0.0
        %3297 = vmatprep.subr.mxu0 0.0
        %3298 = vmatpush2.msra.mxu0 0.0
        %3299 = vmatprep.subr.mxu0 0.0
        %3300 = vmatpush2.msra.mxu0 0.0
        %3301 = vmatprep.subr.mxu0 0.0
        %3302 = vmatpush2.msra.mxu0 0.0
        %3303 = vmatprep.subr.mxu0 0.0
        %3304 = vmatpush2.msra.mxu0 0.0
        %3305 = vmatprep.subr.mxu0 0.0
        %3306 = vmatpush2.msra.mxu0 0.0
        %3307 = vmatprep.subr.mxu0 0.0
        %3308 = vmatpush2.msra.mxu0 0.0
        %3309 = vmatprep.subr.mxu0 0.0
        %3310 = vmatpush2.msra.mxu0 0.0
        %3311 = vmatprep.subr.mxu0 0.0
        %3312 = vmatpush2.msra.mxu0 0.0
        %3313 = vmatprep.subr.mxu0 0.0
        %3314 = vmatpush2.msra.mxu0 0.0
        %3315 = vmatprep.subr.mxu0 0.0
        %3316 = vmatpush2.msra.mxu0 0.0
        %3317 = vmatprep.subr.mxu0 0.0
        %3318 = vmatpush2.msra.mxu0 0.0
        %3319 = vmatprep.mubr.f32.mxu0 0.0
        %3320 = vmatmul.mubr.f32.gmra.mxu0 %v2911
        %v3321 = vpop.f32.mrf.mxu0
        %v3322 = vadd.f32 0.0, %v3321
        %v3323 = vpop.f32.mrf.mxu0
        %3324 = vmatprep.mubr.f32.mxu0 0.0
        %3325 = vmatmul.mubr.f32.gmra.mxu0 %v2914
        %v3326 = vpop.f32.mrf.mxu0
        %v3327 = vadd.f32 0.0, %v3326
        %v3328 = vpop.f32.mrf.mxu0
        %3329 = vmatprep.mubr.f32.mxu0 0.0
        %3330 = vmatmul.mubr.f32.gmra.mxu0 %v2917
        %v3331 = vpop.f32.mrf.mxu0
        %v3332 = vadd.f32 0.0, %v3331
        %v3333 = vpop.f32.mrf.mxu0
        %3334 = vmatprep.mubr.f32.mxu0 0.0
        %3335 = vmatmul.mubr.f32.gmra.mxu0 %v2920
        %v3336 = vpop.f32.mrf.mxu0
        %v3337 = vadd.f32 0.0, %v3336
        %v3338 = vpop.f32.mrf.mxu0
        %3339 = vmatprep.mubr.f32.mxu0 0.0
        %3340 = vmatmul.mubr.f32.gmra.mxu0 %v2923
        %v3341 = vpop.f32.mrf.mxu0
        %v3342 = vadd.f32 0.0, %v3341
        %v3343 = vpop.f32.mrf.mxu0
        %3344 = vmatprep.mubr.f32.mxu0 0.0
        %3345 = vmatmul.mubr.f32.gmra.mxu0 %v2926
        %v3346 = vpop.f32.mrf.mxu0
        %v3347 = vadd.f32 0.0, %v3346
        %v3348 = vpop.f32.mrf.mxu0
        %3349 = vmatprep.mubr.f32.mxu0 0.0
        %3350 = vmatmul.mubr.f32.gmra.mxu0 %v2929
        %v3351 = vpop.f32.mrf.mxu0
        %v3352 = vadd.f32 0.0, %v3351
        %v3353 = vpop.f32.mrf.mxu0
        %3354 = vmatprep.mubr.f32.mxu0 0.0
        %3355 = vmatmul.mubr.f32.gmra.mxu0 %v2932
        %v3356 = vpop.f32.mrf.mxu0
        %v3357 = vadd.f32 0.0, %v3356
        %v3358 = vpop.f32.mrf.mxu0
        %3359 = vmatprep.mubr.f32.mxu0 0.0
        %3360 = vmatmul.mubr.f32.gmra.mxu0 %v2935
        %v3361 = vpop.f32.mrf.mxu0
        %v3362 = vadd.f32 0.0, %v3361
        %v3363 = vpop.f32.mrf.mxu0
        %3364 = vmatprep.mubr.f32.mxu0 0.0
        %3365 = vmatmul.mubr.f32.gmra.mxu0 %v2938
        %v3366 = vpop.f32.mrf.mxu0
        %v3367 = vadd.f32 0.0, %v3366
        %v3368 = vpop.f32.mrf.mxu0
        %3369 = vmatprep.mubr.f32.mxu0 0.0
        %3370 = vmatmul.mubr.f32.gmra.mxu0 %v2941
        %v3371 = vpop.f32.mrf.mxu0
        %v3372 = vadd.f32 0.0, %v3371
        %v3373 = vpop.f32.mrf.mxu0
        %3374 = vmatprep.mubr.f32.mxu0 0.0
        %3375 = vmatmul.mubr.f32.gmra.mxu0 %v2944
        %v3376 = vpop.f32.mrf.mxu0
        %v3377 = vadd.f32 0.0, %v3376
        %v3378 = vpop.f32.mrf.mxu0
        %3379 = vmatprep.mubr.f32.mxu0 0.0
        %3380 = vmatmul.mubr.f32.gmra.mxu0 %v2947
        %v3381 = vpop.f32.mrf.mxu0
        %v3382 = vadd.f32 0.0, %v3381
        %v3383 = vpop.f32.mrf.mxu0
        %3384 = vmatprep.mubr.f32.mxu0 0.0
        %3385 = vmatmul.mubr.f32.gmra.mxu0 %v2950
        %v3386 = vpop.f32.mrf.mxu0
        %v3387 = vadd.f32 0.0, %v3386
        %v3388 = vpop.f32.mrf.mxu0
        %3389 = vmatprep.mubr.f32.mxu0 0.0
        %3390 = vmatmul.mubr.f32.gmra.mxu0 %v3250
        %v3391 = vpop.f32.mrf.mxu0
        %v3392 = vadd.f32 0.0, %v3391
        %v3393 = vpop.f32.mrf.mxu0
        %3394 = vmatprep.mubr.f32.mxu0 0.0
        %3395 = vmatmul.mubr.f32.gmra.mxu0 %v3253
        %v3396 = vpop.f32.mrf.mxu0
        %v3397 = vadd.f32 0.0, %v3396
        %v3398 = vpop.f32.mrf.mxu0
        %3399 = vdwg.mxu0
        %v3400 = vadd.f32 %v3170, %v3322
        %v3401 = vadd.f32 %v3175, %v3327
        %v3402 = vadd.f32 %v3180, %v3332
        %v3403 = vadd.f32 %v3185, %v3337
        %v3404 = vadd.f32 %v3190, %v3342
        %v3405 = vadd.f32 %v3195, %v3347
        %v3406 = vadd.f32 %v3200, %v3352
        %v3407 = vadd.f32 %v3205, %v3357
        %v3408 = vadd.f32 %v3210, %v3362
        %v3409 = vadd.f32 %v3215, %v3367
        %v3410 = vadd.f32 %v3220, %v3372
        %v3411 = vadd.f32 %v3225, %v3377
        %v3412 = vadd.f32 %v3230, %v3382
        %v3413 = vadd.f32 %v3235, %v3387
        %v3414 = vadd.f32 %v3240, %v3392
        %v3415 = vadd.f32 %v3245, %v3397
        %v3424 = vrot.slane %v2872, 1
        %v3425 = vrot.slane %v2873, 1
        %v3426 = vsel %vm1405, %v3424, %v3425
        %v3427 = vrot.slane %v2874, 1
        %v3428 = vsel %vm1405, %v3425, %v3427
        %v3429 = vrot.slane %v2875, 1
        %v3430 = vrot.slane %v2876, 1
        %v3431 = vsel %vm1405, %v3429, %v3430
        %v3432 = vrot.slane %v2877, 1
        %v3433 = vsel %vm1405, %v3430, %v3432
        %v3434 = vrot.slane %v2878, 1
        %v3435 = vrot.slane %v2879, 1
        %v3436 = vsel %vm1405, %v3434, %v3435
        %v3437 = vrot.slane %v2880, 1
        %v3438 = vsel %vm1405, %v3435, %v3437
        %v3439 = vrot.slane %v2881, 1
        %v3440 = vrot.slane %v2882, 1
        %v3441 = vsel %vm1405, %v3439, %v3440
        %v3442 = vrot.slane %v2883, 1
        %v3443 = vsel %vm1405, %v3440, %v3442
        %v3444 = vrot.slane %v2884, 1
        %v3445 = vrot.slane %v2885, 1
        %v3446 = vsel %vm1405, %v3444, %v3445
        %v3447 = vrot.slane %v2886, 1
        %v3448 = vsel %vm1405, %v3445, %v3447
        %v3449 = vrot.slane %v2887, 1
        %v3450 = vrot.slane %v2888, 1
        %v3451 = vsel %vm1405, %v3449, %v3450
        %v3452 = vrot.slane %v2889, 1
        %v3453 = vsel %vm1405, %v3450, %v3452
        %v3454 = vrot.slane %v2890, 1
        %v3455 = vrot.slane %v2891, 1
        %v3456 = vsel %vm1405, %v3454, %v3455
        %v3457 = vrot.slane %v2892, 1
        %v3458 = vsel %vm1405, %v3455, %v3457
        %v3459 = vrot.slane %v2893, 1
        %v3460 = vrot.slane %v2894, 1
        %v3461 = vsel %vm1405, %v3459, %v3460
        %v3462 = vrot.slane %v2895, 1
        %v3463 = vsel %vm1405, %v3460, %v3462
        %v3464 = vld [vmem:[%s1446] sm:$0xff]
        %v3465 = vsel %vm297, %v3426, 0
        %v3467 = vsel %vm297, %v3428, 0
        %v3469 = vsel %vm297, %v3431, 0
        %v3471 = vsel %vm297, %v3433, 0
        %v3473 = vsel %vm297, %v3436, 0
        %v3475 = vsel %vm297, %v3438, 0
        %v3477 = vsel %vm297, %v3441, 0
        %v3479 = vsel %vm297, %v3443, 0
        %v3481 = vsel %vm297, %v3446, 0
        %v3483 = vsel %vm297, %v3448, 0
        %v3485 = vsel %vm297, %v3451, 0
        %v3487 = vsel %vm297, %v3453, 0
        %v3489 = vsel %vm297, %v3456, 0
        %v3491 = vsel %vm297, %v3458, 0
        %v3493 = vsel %vm297, %v3461, 0
        %v3495 = vsel %vm297, %v3463, 0
        %3497 = vmatprep.subr.mxu0 0.0
        %3498 = vmatpush1.msra.mxu0 0.0
        %3499 = vmatprep.subr.mxu0 0.0
        %3500 = vmatpush1.msra.mxu0 0.0
        %3501 = vmatprep.subr.mxu0 0.0
        %3502 = vmatpush1.msra.mxu0 0.0
        %3503 = vmatprep.subr.mxu0 0.0
        %3504 = vmatpush1.msra.mxu0 0.0
        %3505 = vmatprep.subr.mxu0 0.0
        %3506 = vmatpush1.msra.mxu0 0.0
        %3507 = vmatprep.subr.mxu0 0.0
        %3508 = vmatpush1.msra.mxu0 0.0
        %3509 = vmatprep.subr.mxu0 0.0
        %3510 = vmatpush1.msra.mxu0 0.0
        %3511 = vmatprep.subr.mxu0 0.0
        %3512 = vmatpush1.msra.mxu0 0.0
        %3513 = vmatprep.subr.mxu0 0.0
        %3514 = vmatpush1.msra.mxu0 0.0
        %3515 = vmatprep.subr.mxu0 0.0
        %3516 = vmatpush1.msra.mxu0 0.0
        %3517 = vmatprep.subr.mxu0 0.0
        %3518 = vmatpush1.msra.mxu0 0.0
        %3519 = vmatprep.subr.mxu0 0.0
        %3520 = vmatpush1.msra.mxu0 0.0
        %3521 = vmatprep.subr.mxu0 0.0
        %3522 = vmatpush1.msra.mxu0 0.0
        %3523 = vmatprep.subr.mxu0 0.0
        %3524 = vmatpush1.msra.mxu0 0.0
        %3525 = vmatprep.subr.mxu0 0.0
        %3526 = vmatpush1.msra.mxu0 0.0
        %3527 = vmatprep.subr.mxu0 0.0
        %3528 = vmatpush1.msra.mxu0 %v3464
        %3529 = vmatprep.subr.mxu0 0.0
        %3530 = vmatpush2.msra.mxu0 0.0
        %3531 = vmatprep.subr.mxu0 0.0
        %3532 = vmatpush2.msra.mxu0 0.0
        %3533 = vmatprep.subr.mxu0 0.0
        %3534 = vmatpush2.msra.mxu0 0.0
        %3535 = vmatprep.subr.mxu0 0.0
        %3536 = vmatpush2.msra.mxu0 0.0
        %3537 = vmatprep.subr.mxu0 0.0
        %3538 = vmatpush2.msra.mxu0 0.0
        %3539 = vmatprep.subr.mxu0 0.0
        %3540 = vmatpush2.msra.mxu0 0.0
        %3541 = vmatprep.subr.mxu0 0.0
        %3542 = vmatpush2.msra.mxu0 0.0
        %3543 = vmatprep.subr.mxu0 0.0
        %3544 = vmatpush2.msra.mxu0 0.0
        %3545 = vmatprep.subr.mxu0 0.0
        %3546 = vmatpush2.msra.mxu0 0.0
        %3547 = vmatprep.subr.mxu0 0.0
        %3548 = vmatpush2.msra.mxu0 0.0
        %3549 = vmatprep.subr.mxu0 0.0
        %3550 = vmatpush2.msra.mxu0 0.0
        %3551 = vmatprep.subr.mxu0 0.0
        %3552 = vmatpush2.msra.mxu0 0.0
        %3553 = vmatprep.subr.mxu0 0.0
        %3554 = vmatpush2.msra.mxu0 0.0
        %3555 = vmatprep.subr.mxu0 0.0
        %3556 = vmatpush2.msra.mxu0 0.0
        %3557 = vmatprep.subr.mxu0 0.0
        %3558 = vmatpush2.msra.mxu0 0.0
        %3559 = vmatprep.subr.mxu0 0.0
        %3560 = vmatpush2.msra.mxu0 0.0
        %3561 = vmatprep.mubr.f32.mxu0 0.0
        %3562 = vmatmul.mubr.f32.gmra.mxu0 %v3465
        %v3563 = vpop.f32.mrf.mxu0
        %v3564 = vadd.f32 0.0, %v3563
        %v3565 = vpop.f32.mrf.mxu0
        %3566 = vmatprep.mubr.f32.mxu0 0.0
        %3567 = vmatmul.mubr.f32.gmra.mxu0 %v3467
        %v3568 = vpop.f32.mrf.mxu0
        %v3569 = vadd.f32 0.0, %v3568
        %v3570 = vpop.f32.mrf.mxu0
        %3571 = vmatprep.mubr.f32.mxu0 0.0
        %3572 = vmatmul.mubr.f32.gmra.mxu0 %v3469
        %v3573 = vpop.f32.mrf.mxu0
        %v3574 = vadd.f32 0.0, %v3573
        %v3575 = vpop.f32.mrf.mxu0
        %3576 = vmatprep.mubr.f32.mxu0 0.0
        %3577 = vmatmul.mubr.f32.gmra.mxu0 %v3471
        %v3578 = vpop.f32.mrf.mxu0
        %v3579 = vadd.f32 0.0, %v3578
        %v3580 = vpop.f32.mrf.mxu0
        %3581 = vmatprep.mubr.f32.mxu0 0.0
        %3582 = vmatmul.mubr.f32.gmra.mxu0 %v3473
        %v3583 = vpop.f32.mrf.mxu0
        %v3584 = vadd.f32 0.0, %v3583
        %v3585 = vpop.f32.mrf.mxu0
        %3586 = vmatprep.mubr.f32.mxu0 0.0
        %3587 = vmatmul.mubr.f32.gmra.mxu0 %v3475
        %v3588 = vpop.f32.mrf.mxu0
        %v3589 = vadd.f32 0.0, %v3588
        %v3590 = vpop.f32.mrf.mxu0
        %3591 = vmatprep.mubr.f32.mxu0 0.0
        %3592 = vmatmul.mubr.f32.gmra.mxu0 %v3477
        %v3593 = vpop.f32.mrf.mxu0
        %v3594 = vadd.f32 0.0, %v3593
        %v3595 = vpop.f32.mrf.mxu0
        %3596 = vmatprep.mubr.f32.mxu0 0.0
        %3597 = vmatmul.mubr.f32.gmra.mxu0 %v3479
        %v3598 = vpop.f32.mrf.mxu0
        %v3599 = vadd.f32 0.0, %v3598
        %v3600 = vpop.f32.mrf.mxu0
        %3601 = vmatprep.mubr.f32.mxu0 0.0
        %3602 = vmatmul.mubr.f32.gmra.mxu0 %v3481
        %v3603 = vpop.f32.mrf.mxu0
        %v3604 = vadd.f32 0.0, %v3603
        %v3605 = vpop.f32.mrf.mxu0
        %3606 = vmatprep.mubr.f32.mxu0 0.0
        %3607 = vmatmul.mubr.f32.gmra.mxu0 %v3483
        %v3608 = vpop.f32.mrf.mxu0
        %v3609 = vadd.f32 0.0, %v3608
        %v3610 = vpop.f32.mrf.mxu0
        %3611 = vmatprep.mubr.f32.mxu0 0.0
        %3612 = vmatmul.mubr.f32.gmra.mxu0 %v3485
        %v3613 = vpop.f32.mrf.mxu0
        %v3614 = vadd.f32 0.0, %v3613
        %v3615 = vpop.f32.mrf.mxu0
        %3616 = vmatprep.mubr.f32.mxu0 0.0
        %3617 = vmatmul.mubr.f32.gmra.mxu0 %v3487
        %v3618 = vpop.f32.mrf.mxu0
        %v3619 = vadd.f32 0.0, %v3618
        %v3620 = vpop.f32.mrf.mxu0
        %3621 = vmatprep.mubr.f32.mxu0 0.0
        %3622 = vmatmul.mubr.f32.gmra.mxu0 %v3489
        %v3623 = vpop.f32.mrf.mxu0
        %v3624 = vadd.f32 0.0, %v3623
        %v3625 = vpop.f32.mrf.mxu0
        %3626 = vmatprep.mubr.f32.mxu0 0.0
        %3627 = vmatmul.mubr.f32.gmra.mxu0 %v3491
        %v3628 = vpop.f32.mrf.mxu0
        %v3629 = vadd.f32 0.0, %v3628
        %v3630 = vpop.f32.mrf.mxu0
        %3631 = vmatprep.mubr.f32.mxu0 0.0
        %3632 = vmatmul.mubr.f32.gmra.mxu0 %v3493
        %v3633 = vpop.f32.mrf.mxu0
        %v3634 = vadd.f32 0.0, %v3633
        %v3635 = vpop.f32.mrf.mxu0
        %3636 = vmatprep.mubr.f32.mxu0 0.0
        %3637 = vmatmul.mubr.f32.gmra.mxu0 %v3495
        %v3638 = vpop.f32.mrf.mxu0
        %v3639 = vadd.f32 0.0, %v3638
        %v3640 = vpop.f32.mrf.mxu0
        %3641 = vdwg.mxu0
        %v3642 = vadd.f32 %v3400, %v3564
        %v3643 = vadd.f32 %v3401, %v3569
        %v3644 = vadd.f32 %v3402, %v3574
        %v3645 = vadd.f32 %v3403, %v3579
        %v3646 = vadd.f32 %v3404, %v3584
        %v3647 = vadd.f32 %v3405, %v3589
        %v3648 = vadd.f32 %v3406, %v3594
        %v3649 = vadd.f32 %v3407, %v3599
        %v3650 = vadd.f32 %v3408, %v3604
        %v3651 = vadd.f32 %v3409, %v3609
        %v3652 = vadd.f32 %v3410, %v3614
        %v3653 = vadd.f32 %v3411, %v3619
        %v3654 = vadd.f32 %v3412, %v3624
        %v3655 = vadd.f32 %v3413, %v3629
        %v3656 = vadd.f32 %v3414, %v3634
        %v3657 = vadd.f32 %v3415, %v3639
        %v3659 = vrot.slane %v2896, 1
        %v3660 = vrot.slane %v2897, 1
        %v3661 = vsel %vm1405, %v3659, %v3660
        %v3662 = vrot.slane %v2898, 1
        %v3663 = vsel %vm1405, %v3660, %v3662
        %v3664 = vld [vmem:[%s1647] sm:$0xff]
        %v3665 = vsel %vm297, %v3661, 0
        %v3667 = vsel %vm297, %v3663, 0
        %3669 = vmatprep.subr.mxu0 0.0
        %3670 = vmatpush1.msra.mxu0 0.0
        %3671 = vmatprep.subr.mxu0 0.0
        %3672 = vmatpush1.msra.mxu0 0.0
        %3673 = vmatprep.subr.mxu0 0.0
        %3674 = vmatpush1.msra.mxu0 0.0
        %3675 = vmatprep.subr.mxu0 0.0
        %3676 = vmatpush1.msra.mxu0 0.0
        %3677 = vmatprep.subr.mxu0 0.0
        %3678 = vmatpush1.msra.mxu0 0.0
        %3679 = vmatprep.subr.mxu0 0.0
        %3680 = vmatpush1.msra.mxu0 0.0
        %3681 = vmatprep.subr.mxu0 0.0
        %3682 = vmatpush1.msra.mxu0 0.0
        %3683 = vmatprep.subr.mxu0 0.0
        %3684 = vmatpush1.msra.mxu0 0.0
        %3685 = vmatprep.subr.mxu0 0.0
        %3686 = vmatpush1.msra.mxu0 0.0
        %3687 = vmatprep.subr.mxu0 0.0
        %3688 = vmatpush1.msra.mxu0 0.0
        %3689 = vmatprep.subr.mxu0 0.0
        %3690 = vmatpush1.msra.mxu0 0.0
        %3691 = vmatprep.subr.mxu0 0.0
        %3692 = vmatpush1.msra.mxu0 0.0
        %3693 = vmatprep.subr.mxu0 0.0
        %3694 = vmatpush1.msra.mxu0 0.0
        %3695 = vmatprep.subr.mxu0 0.0
        %3696 = vmatpush1.msra.mxu0 0.0
        %3697 = vmatprep.subr.mxu0 0.0
        %3698 = vmatpush1.msra.mxu0 0.0
        %3699 = vmatprep.subr.mxu0 0.0
        %3700 = vmatpush1.msra.mxu0 %v3664
        %3701 = vmatprep.subr.mxu0 0.0
        %3702 = vmatpush2.msra.mxu0 0.0
        %3703 = vmatprep.subr.mxu0 0.0
        %3704 = vmatpush2.msra.mxu0 0.0
        %3705 = vmatprep.subr.mxu0 0.0
        %3706 = vmatpush2.msra.mxu0 0.0
        %3707 = vmatprep.subr.mxu0 0.0
        %3708 = vmatpush2.msra.mxu0 0.0
        %3709 = vmatprep.subr.mxu0 0.0
        %3710 = vmatpush2.msra.mxu0 0.0
        %3711 = vmatprep.subr.mxu0 0.0
        %3712 = vmatpush2.msra.mxu0 0.0
        %3713 = vmatprep.subr.mxu0 0.0
        %3714 = vmatpush2.msra.mxu0 0.0
        %3715 = vmatprep.subr.mxu0 0.0
        %3716 = vmatpush2.msra.mxu0 0.0
        %3717 = vmatprep.subr.mxu0 0.0
        %3718 = vmatpush2.msra.mxu0 0.0
        %3719 = vmatprep.subr.mxu0 0.0
        %3720 = vmatpush2.msra.mxu0 0.0
        %3721 = vmatprep.subr.mxu0 0.0
        %3722 = vmatpush2.msra.mxu0 0.0
        %3723 = vmatprep.subr.mxu0 0.0
        %3724 = vmatpush2.msra.mxu0 0.0
        %3725 = vmatprep.subr.mxu0 0.0
        %3726 = vmatpush2.msra.mxu0 0.0
        %3727 = vmatprep.subr.mxu0 0.0
        %3728 = vmatpush2.msra.mxu0 0.0
        %3729 = vmatprep.subr.mxu0 0.0
        %3730 = vmatpush2.msra.mxu0 0.0
        %3731 = vmatprep.subr.mxu0 0.0
        %3732 = vmatpush2.msra.mxu0 0.0
        %3733 = vmatprep.mubr.f32.mxu0 0.0
        %3734 = vmatmul.mubr.f32.gmra.mxu0 %v3469
        %v3735 = vpop.f32.mrf.mxu0
        %v3736 = vadd.f32 0.0, %v3735
        %v3737 = vpop.f32.mrf.mxu0
        %3738 = vmatprep.mubr.f32.mxu0 0.0
        %3739 = vmatmul.mubr.f32.gmra.mxu0 %v3471
        %v3740 = vpop.f32.mrf.mxu0
        %v3741 = vadd.f32 0.0, %v3740
        %v3742 = vpop.f32.mrf.mxu0
        %3743 = vmatprep.mubr.f32.mxu0 0.0
        %3744 = vmatmul.mubr.f32.gmra.mxu0 %v3473
        %v3745 = vpop.f32.mrf.mxu0
        %v3746 = vadd.f32 0.0, %v3745
        %v3747 = vpop.f32.mrf.mxu0
        %3748 = vmatprep.mubr.f32.mxu0 0.0
        %3749 = vmatmul.mubr.f32.gmra.mxu0 %v3475
        %v3750 = vpop.f32.mrf.mxu0
        %v3751 = vadd.f32 0.0, %v3750
        %v3752 = vpop.f32.mrf.mxu0
        %3753 = vmatprep.mubr.f32.mxu0 0.0
        %3754 = vmatmul.mubr.f32.gmra.mxu0 %v3477
        %v3755 = vpop.f32.mrf.mxu0
        %v3756 = vadd.f32 0.0, %v3755
        %v3757 = vpop.f32.mrf.mxu0
        %3758 = vmatprep.mubr.f32.mxu0 0.0
        %3759 = vmatmul.mubr.f32.gmra.mxu0 %v3479
        %v3760 = vpop.f32.mrf.mxu0
        %v3761 = vadd.f32 0.0, %v3760
        %v3762 = vpop.f32.mrf.mxu0
        %3763 = vmatprep.mubr.f32.mxu0 0.0
        %3764 = vmatmul.mubr.f32.gmra.mxu0 %v3481
        %v3765 = vpop.f32.mrf.mxu0
        %v3766 = vadd.f32 0.0, %v3765
        %v3767 = vpop.f32.mrf.mxu0
        %3768 = vmatprep.mubr.f32.mxu0 0.0
        %3769 = vmatmul.mubr.f32.gmra.mxu0 %v3483
        %v3770 = vpop.f32.mrf.mxu0
        %v3771 = vadd.f32 0.0, %v3770
        %v3772 = vpop.f32.mrf.mxu0
        %3773 = vmatprep.mubr.f32.mxu0 0.0
        %3774 = vmatmul.mubr.f32.gmra.mxu0 %v3485
        %v3775 = vpop.f32.mrf.mxu0
        %v3776 = vadd.f32 0.0, %v3775
        %v3777 = vpop.f32.mrf.mxu0
        %3778 = vmatprep.mubr.f32.mxu0 0.0
        %3779 = vmatmul.mubr.f32.gmra.mxu0 %v3487
        %v3780 = vpop.f32.mrf.mxu0
        %v3781 = vadd.f32 0.0, %v3780
        %v3782 = vpop.f32.mrf.mxu0
        %3783 = vmatprep.mubr.f32.mxu0 0.0
        %3784 = vmatmul.mubr.f32.gmra.mxu0 %v3489
        %v3785 = vpop.f32.mrf.mxu0
        %v3786 = vadd.f32 0.0, %v3785
        %v3787 = vpop.f32.mrf.mxu0
        %3788 = vmatprep.mubr.f32.mxu0 0.0
        %3789 = vmatmul.mubr.f32.gmra.mxu0 %v3491
        %v3790 = vpop.f32.mrf.mxu0
        %v3791 = vadd.f32 0.0, %v3790
        %v3792 = vpop.f32.mrf.mxu0
        %3793 = vmatprep.mubr.f32.mxu0 0.0
        %3794 = vmatmul.mubr.f32.gmra.mxu0 %v3493
        %v3795 = vpop.f32.mrf.mxu0
        %v3796 = vadd.f32 0.0, %v3795
        %v3797 = vpop.f32.mrf.mxu0
        %3798 = vmatprep.mubr.f32.mxu0 0.0
        %3799 = vmatmul.mubr.f32.gmra.mxu0 %v3495
        %v3800 = vpop.f32.mrf.mxu0
        %v3801 = vadd.f32 0.0, %v3800
        %v3802 = vpop.f32.mrf.mxu0
        %3803 = vmatprep.mubr.f32.mxu0 0.0
        %3804 = vmatmul.mubr.f32.gmra.mxu0 %v3665
        %v3805 = vpop.f32.mrf.mxu0
        %v3806 = vadd.f32 0.0, %v3805
        %v3807 = vpop.f32.mrf.mxu0
        %3808 = vmatprep.mubr.f32.mxu0 0.0
        %3809 = vmatmul.mubr.f32.gmra.mxu0 %v3667
        %v3810 = vpop.f32.mrf.mxu0
        %v3811 = vadd.f32 0.0, %v3810
        %v3812 = vpop.f32.mrf.mxu0
        %3813 = vdwg.mxu0
        %v3814 = vadd.f32 %v3642, %v3736
        %v3815 = vadd.f32 %v3643, %v3741
        %v3816 = vadd.f32 %v3644, %v3746
        %v3817 = vadd.f32 %v3645, %v3751
        %v3818 = vadd.f32 %v3646, %v3756
        %v3819 = vadd.f32 %v3647, %v3761
        %v3820 = vadd.f32 %v3648, %v3766
        %v3821 = vadd.f32 %v3649, %v3771
        %v3822 = vadd.f32 %v3650, %v3776
        %v3823 = vadd.f32 %v3651, %v3781
        %v3824 = vadd.f32 %v3652, %v3786
        %v3825 = vadd.f32 %v3653, %v3791
        %v3826 = vadd.f32 %v3654, %v3796
        %v3827 = vadd.f32 %v3655, %v3801
        %v3828 = vadd.f32 %v3656, %v3806
        %v3829 = vadd.f32 %v3657, %v3811
        %v3831 = vrot.slane %v2899, 1
        %v3832 = vrot.slane %v2900, 1
        %v3833 = vsel %vm1405, %v3831, %v3832
        %v3834 = vrot.slane %v2901, 1
        %v3835 = vsel %vm1405, %v3832, %v3834
        %v3836 = vld [vmem:[%s1820] sm:$0xff]
        %v3837 = vsel %vm297, %v3833, 0
        %v3839 = vsel %vm297, %v3835, 0
        %3841 = vmatprep.subr.mxu0 0.0
        %3842 = vmatpush1.msra.mxu0 0.0
        %3843 = vmatprep.subr.mxu0 0.0
        %3844 = vmatpush1.msra.mxu0 0.0
        %3845 = vmatprep.subr.mxu0 0.0
        %3846 = vmatpush1.msra.mxu0 0.0
        %3847 = vmatprep.subr.mxu0 0.0
        %3848 = vmatpush1.msra.mxu0 0.0
        %3849 = vmatprep.subr.mxu0 0.0
        %3850 = vmatpush1.msra.mxu0 0.0
        %3851 = vmatprep.subr.mxu0 0.0
        %3852 = vmatpush1.msra.mxu0 0.0
        %3853 = vmatprep.subr.mxu0 0.0
        %3854 = vmatpush1.msra.mxu0 0.0
        %3855 = vmatprep.subr.mxu0 0.0
        %3856 = vmatpush1.msra.mxu0 0.0
        %3857 = vmatprep.subr.mxu0 0.0
        %3858 = vmatpush1.msra.mxu0 0.0
        %3859 = vmatprep.subr.mxu0 0.0
        %3860 = vmatpush1.msra.mxu0 0.0
        %3861 = vmatprep.subr.mxu0 0.0
        %3862 = vmatpush1.msra.mxu0 0.0
        %3863 = vmatprep.subr.mxu0 0.0
        %3864 = vmatpush1.msra.mxu0 0.0
        %3865 = vmatprep.subr.mxu0 0.0
        %3866 = vmatpush1.msra.mxu0 0.0
        %3867 = vmatprep.subr.mxu0 0.0
        %3868 = vmatpush1.msra.mxu0 0.0
        %3869 = vmatprep.subr.mxu0 0.0
        %3870 = vmatpush1.msra.mxu0 0.0
        %3871 = vmatprep.subr.mxu0 0.0
        %3872 = vmatpush1.msra.mxu0 %v3836
        %3873 = vmatprep.subr.mxu0 0.0
        %3874 = vmatpush2.msra.mxu0 0.0
        %3875 = vmatprep.subr.mxu0 0.0
        %3876 = vmatpush2.msra.mxu0 0.0
        %3877 = vmatprep.subr.mxu0 0.0
        %3878 = vmatpush2.msra.mxu0 0.0
        %3879 = vmatprep.subr.mxu0 0.0
        %3880 = vmatpush2.msra.mxu0 0.0
        %3881 = vmatprep.subr.mxu0 0.0
        %3882 = vmatpush2.msra.mxu0 0.0
        %3883 = vmatprep.subr.mxu0 0.0
        %3884 = vmatpush2.msra.mxu0 0.0
        %3885 = vmatprep.subr.mxu0 0.0
        %3886 = vmatpush2.msra.mxu0 0.0
        %3887 = vmatprep.subr.mxu0 0.0
        %3888 = vmatpush2.msra.mxu0 0.0
        %3889 = vmatprep.subr.mxu0 0.0
        %3890 = vmatpush2.msra.mxu0 0.0
        %3891 = vmatprep.subr.mxu0 0.0
        %3892 = vmatpush2.msra.mxu0 0.0
        %3893 = vmatprep.subr.mxu0 0.0
        %3894 = vmatpush2.msra.mxu0 0.0
        %3895 = vmatprep.subr.mxu0 0.0
        %3896 = vmatpush2.msra.mxu0 0.0
        %3897 = vmatprep.subr.mxu0 0.0
        %3898 = vmatpush2.msra.mxu0 0.0
        %3899 = vmatprep.subr.mxu0 0.0
        %3900 = vmatpush2.msra.mxu0 0.0
        %3901 = vmatprep.subr.mxu0 0.0
        %3902 = vmatpush2.msra.mxu0 0.0
        %3903 = vmatprep.subr.mxu0 0.0
        %3904 = vmatpush2.msra.mxu0 0.0
        %3905 = vmatprep.mubr.f32.mxu0 0.0
        %3906 = vmatmul.mubr.f32.gmra.mxu0 %v3473
        %v3907 = vpop.f32.mrf.mxu0
        %v3908 = vadd.f32 0.0, %v3907
        %v3909 = vpop.f32.mrf.mxu0
        %3910 = vmatprep.mubr.f32.mxu0 0.0
        %3911 = vmatmul.mubr.f32.gmra.mxu0 %v3475
        %v3912 = vpop.f32.mrf.mxu0
        %v3913 = vadd.f32 0.0, %v3912
        %v3914 = vpop.f32.mrf.mxu0
        %3915 = vmatprep.mubr.f32.mxu0 0.0
        %3916 = vmatmul.mubr.f32.gmra.mxu0 %v3477
        %v3917 = vpop.f32.mrf.mxu0
        %v3918 = vadd.f32 0.0, %v3917
        %v3919 = vpop.f32.mrf.mxu0
        %3920 = vmatprep.mubr.f32.mxu0 0.0
        %3921 = vmatmul.mubr.f32.gmra.mxu0 %v3479
        %v3922 = vpop.f32.mrf.mxu0
        %v3923 = vadd.f32 0.0, %v3922
        %v3924 = vpop.f32.mrf.mxu0
        %3925 = vmatprep.mubr.f32.mxu0 0.0
        %3926 = vmatmul.mubr.f32.gmra.mxu0 %v3481
        %v3927 = vpop.f32.mrf.mxu0
        %v3928 = vadd.f32 0.0, %v3927
        %v3929 = vpop.f32.mrf.mxu0
        %3930 = vmatprep.mubr.f32.mxu0 0.0
        %3931 = vmatmul.mubr.f32.gmra.mxu0 %v3483
        %v3932 = vpop.f32.mrf.mxu0
        %v3933 = vadd.f32 0.0, %v3932
        %v3934 = vpop.f32.mrf.mxu0
        %3935 = vmatprep.mubr.f32.mxu0 0.0
        %3936 = vmatmul.mubr.f32.gmra.mxu0 %v3485
        %v3937 = vpop.f32.mrf.mxu0
        %v3938 = vadd.f32 0.0, %v3937
        %v3939 = vpop.f32.mrf.mxu0
        %3940 = vmatprep.mubr.f32.mxu0 0.0
        %3941 = vmatmul.mubr.f32.gmra.mxu0 %v3487
        %v3942 = vpop.f32.mrf.mxu0
        %v3943 = vadd.f32 0.0, %v3942
        %v3944 = vpop.f32.mrf.mxu0
        %3945 = vmatprep.mubr.f32.mxu0 0.0
        %3946 = vmatmul.mubr.f32.gmra.mxu0 %v3489
        %v3947 = vpop.f32.mrf.mxu0
        %v3948 = vadd.f32 0.0, %v3947
        %v3949 = vpop.f32.mrf.mxu0
        %3950 = vmatprep.mubr.f32.mxu0 0.0
        %3951 = vmatmul.mubr.f32.gmra.mxu0 %v3491
        %v3952 = vpop.f32.mrf.mxu0
        %v3953 = vadd.f32 0.0, %v3952
        %v3954 = vpop.f32.mrf.mxu0
        %3955 = vmatprep.mubr.f32.mxu0 0.0
        %3956 = vmatmul.mubr.f32.gmra.mxu0 %v3493
        %v3957 = vpop.f32.mrf.mxu0
        %v3958 = vadd.f32 0.0, %v3957
        %v3959 = vpop.f32.mrf.mxu0
        %3960 = vmatprep.mubr.f32.mxu0 0.0
        %3961 = vmatmul.mubr.f32.gmra.mxu0 %v3495
        %v3962 = vpop.f32.mrf.mxu0
        %v3963 = vadd.f32 0.0, %v3962
        %v3964 = vpop.f32.mrf.mxu0
        %3965 = vmatprep.mubr.f32.mxu0 0.0
        %3966 = vmatmul.mubr.f32.gmra.mxu0 %v3665
        %v3967 = vpop.f32.mrf.mxu0
        %v3968 = vadd.f32 0.0, %v3967
        %v3969 = vpop.f32.mrf.mxu0
        %3970 = vmatprep.mubr.f32.mxu0 0.0
        %3971 = vmatmul.mubr.f32.gmra.mxu0 %v3667
        %v3972 = vpop.f32.mrf.mxu0
        %v3973 = vadd.f32 0.0, %v3972
        %v3974 = vpop.f32.mrf.mxu0
        %3975 = vmatprep.mubr.f32.mxu0 0.0
        %3976 = vmatmul.mubr.f32.gmra.mxu0 %v3837
        %v3977 = vpop.f32.mrf.mxu0
        %v3978 = vadd.f32 0.0, %v3977
        %v3979 = vpop.f32.mrf.mxu0
        %3980 = vmatprep.mubr.f32.mxu0 0.0
        %3981 = vmatmul.mubr.f32.gmra.mxu0 %v3839
        %v3982 = vpop.f32.mrf.mxu0
        %v3983 = vadd.f32 0.0, %v3982
        %v3984 = vpop.f32.mrf.mxu0
        %3985 = vdwg.mxu0
        %v3986 = vadd.f32 %v3814, %v3908
        %v3987 = vadd.f32 %v3815, %v3913
        %v3988 = vadd.f32 %v3816, %v3918
        %v3989 = vadd.f32 %v3817, %v3923
        %v3990 = vadd.f32 %v3818, %v3928
        %v3991 = vadd.f32 %v3819, %v3933
        %v3992 = vadd.f32 %v3820, %v3938
        %v3993 = vadd.f32 %v3821, %v3943
        %v3994 = vadd.f32 %v3822, %v3948
        %v3995 = vadd.f32 %v3823, %v3953
        %v3996 = vadd.f32 %v3824, %v3958
        %v3997 = vadd.f32 %v3825, %v3963
        %v3998 = vadd.f32 %v3826, %v3968
        %v3999 = vadd.f32 %v3827, %v3973
        %v4000 = vadd.f32 %v3828, %v3978
        %v4001 = vadd.f32 %v3829, %v3983
        %v4002 = vrot.slane %v2872, 2
        %v4003 = vrot.slane %v2873, 2
        %v4004 = vsel %vm1987, %v4002, %v4003
        %v4005 = vrot.slane %v2874, 2
        %v4006 = vsel %vm1987, %v4003, %v4005
        %v4007 = vrot.slane %v2875, 2
        %v4008 = vrot.slane %v2876, 2
        %v4009 = vsel %vm1987, %v4007, %v4008
        %v4010 = vrot.slane %v2877, 2
        %v4011 = vsel %vm1987, %v4008, %v4010
        %v4012 = vrot.slane %v2878, 2
        %v4013 = vrot.slane %v2879, 2
        %v4014 = vsel %vm1987, %v4012, %v4013
        %v4015 = vrot.slane %v2880, 2
        %v4016 = vsel %vm1987, %v4013, %v4015
        %v4017 = vrot.slane %v2881, 2
        %v4018 = vrot.slane %v2882, 2
        %v4019 = vsel %vm1987, %v4017, %v4018
        %v4020 = vrot.slane %v2883, 2
        %v4021 = vsel %vm1987, %v4018, %v4020
        %v4022 = vrot.slane %v2884, 2
        %v4023 = vrot.slane %v2885, 2
        %v4024 = vsel %vm1987, %v4022, %v4023
        %v4025 = vrot.slane %v2886, 2
        %v4026 = vsel %vm1987, %v4023, %v4025
        %v4027 = vrot.slane %v2887, 2
        %v4028 = vrot.slane %v2888, 2
        %v4029 = vsel %vm1987, %v4027, %v4028
        %v4030 = vrot.slane %v2889, 2
        %v4031 = vsel %vm1987, %v4028, %v4030
        %v4032 = vrot.slane %v2890, 2
        %v4033 = vrot.slane %v2891, 2
        %v4034 = vsel %vm1987, %v4032, %v4033
        %v4035 = vrot.slane %v2892, 2
        %v4036 = vsel %vm1987, %v4033, %v4035
        %v4037 = vrot.slane %v2893, 2
        %v4038 = vrot.slane %v2894, 2
        %v4039 = vsel %vm1987, %v4037, %v4038
        %v4040 = vrot.slane %v2895, 2
        %v4041 = vsel %vm1987, %v4038, %v4040
        %v4042 = vld [vmem:[%s2028] sm:$0xff]
        %v4043 = vsel %vm297, %v4004, 0
        %v4045 = vsel %vm297, %v4006, 0
        %v4047 = vsel %vm297, %v4009, 0
        %v4049 = vsel %vm297, %v4011, 0
        %v4051 = vsel %vm297, %v4014, 0
        %v4053 = vsel %vm297, %v4016, 0
        %v4055 = vsel %vm297, %v4019, 0
        %v4057 = vsel %vm297, %v4021, 0
        %v4059 = vsel %vm297, %v4024, 0
        %v4061 = vsel %vm297, %v4026, 0
        %v4063 = vsel %vm297, %v4029, 0
        %v4065 = vsel %vm297, %v4031, 0
        %v4067 = vsel %vm297, %v4034, 0
        %v4069 = vsel %vm297, %v4036, 0
        %v4071 = vsel %vm297, %v4039, 0
        %v4073 = vsel %vm297, %v4041, 0
        %4075 = vmatprep.subr.mxu0 0.0
        %4076 = vmatpush1.msra.mxu0 0.0
        %4077 = vmatprep.subr.mxu0 0.0
        %4078 = vmatpush1.msra.mxu0 0.0
        %4079 = vmatprep.subr.mxu0 0.0
        %4080 = vmatpush1.msra.mxu0 0.0
        %4081 = vmatprep.subr.mxu0 0.0
        %4082 = vmatpush1.msra.mxu0 0.0
        %4083 = vmatprep.subr.mxu0 0.0
        %4084 = vmatpush1.msra.mxu0 0.0
        %4085 = vmatprep.subr.mxu0 0.0
        %4086 = vmatpush1.msra.mxu0 0.0
        %4087 = vmatprep.subr.mxu0 0.0
        %4088 = vmatpush1.msra.mxu0 0.0
        %4089 = vmatprep.subr.mxu0 0.0
        %4090 = vmatpush1.msra.mxu0 0.0
        %4091 = vmatprep.subr.mxu0 0.0
        %4092 = vmatpush1.msra.mxu0 0.0
        %4093 = vmatprep.subr.mxu0 0.0
        %4094 = vmatpush1.msra.mxu0 0.0
        %4095 = vmatprep.subr.mxu0 0.0
        %4096 = vmatpush1.msra.mxu0 0.0
        %4097 = vmatprep.subr.mxu0 0.0
        %4098 = vmatpush1.msra.mxu0 0.0
        %4099 = vmatprep.subr.mxu0 0.0
        %4100 = vmatpush1.msra.mxu0 0.0
        %4101 = vmatprep.subr.mxu0 0.0
        %4102 = vmatpush1.msra.mxu0 0.0
        %4103 = vmatprep.subr.mxu0 0.0
        %4104 = vmatpush1.msra.mxu0 0.0
        %4105 = vmatprep.subr.mxu0 0.0
        %4106 = vmatpush1.msra.mxu0 %v4042
        %4107 = vmatprep.subr.mxu0 0.0
        %4108 = vmatpush2.msra.mxu0 0.0
        %4109 = vmatprep.subr.mxu0 0.0
        %4110 = vmatpush2.msra.mxu0 0.0
        %4111 = vmatprep.subr.mxu0 0.0
        %4112 = vmatpush2.msra.mxu0 0.0
        %4113 = vmatprep.subr.mxu0 0.0
        %4114 = vmatpush2.msra.mxu0 0.0
        %4115 = vmatprep.subr.mxu0 0.0
        %4116 = vmatpush2.msra.mxu0 0.0
        %4117 = vmatprep.subr.mxu0 0.0
        %4118 = vmatpush2.msra.mxu0 0.0
        %4119 = vmatprep.subr.mxu0 0.0
        %4120 = vmatpush2.msra.mxu0 0.0
        %4121 = vmatprep.subr.mxu0 0.0
        %4122 = vmatpush2.msra.mxu0 0.0
        %4123 = vmatprep.subr.mxu0 0.0
        %4124 = vmatpush2.msra.mxu0 0.0
        %4125 = vmatprep.subr.mxu0 0.0
        %4126 = vmatpush2.msra.mxu0 0.0
        %4127 = vmatprep.subr.mxu0 0.0
        %4128 = vmatpush2.msra.mxu0 0.0
        %4129 = vmatprep.subr.mxu0 0.0
        %4130 = vmatpush2.msra.mxu0 0.0
        %4131 = vmatprep.subr.mxu0 0.0
        %4132 = vmatpush2.msra.mxu0 0.0
        %4133 = vmatprep.subr.mxu0 0.0
        %4134 = vmatpush2.msra.mxu0 0.0
        %4135 = vmatprep.subr.mxu0 0.0
        %4136 = vmatpush2.msra.mxu0 0.0
        %4137 = vmatprep.subr.mxu0 0.0
        %4138 = vmatpush2.msra.mxu0 0.0
        %4139 = vmatprep.mubr.f32.mxu0 0.0
        %4140 = vmatmul.mubr.f32.gmra.mxu0 %v4043
        %v4141 = vpop.f32.mrf.mxu0
        %v4142 = vadd.f32 0.0, %v4141
        %v4143 = vpop.f32.mrf.mxu0
        %4144 = vmatprep.mubr.f32.mxu0 0.0
        %4145 = vmatmul.mubr.f32.gmra.mxu0 %v4045
        %v4146 = vpop.f32.mrf.mxu0
        %v4147 = vadd.f32 0.0, %v4146
        %v4148 = vpop.f32.mrf.mxu0
        %4149 = vmatprep.mubr.f32.mxu0 0.0
        %4150 = vmatmul.mubr.f32.gmra.mxu0 %v4047
        %v4151 = vpop.f32.mrf.mxu0
        %v4152 = vadd.f32 0.0, %v4151
        %v4153 = vpop.f32.mrf.mxu0
        %4154 = vmatprep.mubr.f32.mxu0 0.0
        %4155 = vmatmul.mubr.f32.gmra.mxu0 %v4049
        %v4156 = vpop.f32.mrf.mxu0
        %v4157 = vadd.f32 0.0, %v4156
        %v4158 = vpop.f32.mrf.mxu0
        %4159 = vmatprep.mubr.f32.mxu0 0.0
        %4160 = vmatmul.mubr.f32.gmra.mxu0 %v4051
        %v4161 = vpop.f32.mrf.mxu0
        %v4162 = vadd.f32 0.0, %v4161
        %v4163 = vpop.f32.mrf.mxu0
        %4164 = vmatprep.mubr.f32.mxu0 0.0
        %4165 = vmatmul.mubr.f32.gmra.mxu0 %v4053
        %v4166 = vpop.f32.mrf.mxu0
        %v4167 = vadd.f32 0.0, %v4166
        %v4168 = vpop.f32.mrf.mxu0
        %4169 = vmatprep.mubr.f32.mxu0 0.0
        %4170 = vmatmul.mubr.f32.gmra.mxu0 %v4055
        %v4171 = vpop.f32.mrf.mxu0
        %v4172 = vadd.f32 0.0, %v4171
        %v4173 = vpop.f32.mrf.mxu0
        %4174 = vmatprep.mubr.f32.mxu0 0.0
        %4175 = vmatmul.mubr.f32.gmra.mxu0 %v4057
        %v4176 = vpop.f32.mrf.mxu0
        %v4177 = vadd.f32 0.0, %v4176
        %v4178 = vpop.f32.mrf.mxu0
        %4179 = vmatprep.mubr.f32.mxu0 0.0
        %4180 = vmatmul.mubr.f32.gmra.mxu0 %v4059
        %v4181 = vpop.f32.mrf.mxu0
        %v4182 = vadd.f32 0.0, %v4181
        %v4183 = vpop.f32.mrf.mxu0
        %4184 = vmatprep.mubr.f32.mxu0 0.0
        %4185 = vmatmul.mubr.f32.gmra.mxu0 %v4061
        %v4186 = vpop.f32.mrf.mxu0
        %v4187 = vadd.f32 0.0, %v4186
        %v4188 = vpop.f32.mrf.mxu0
        %4189 = vmatprep.mubr.f32.mxu0 0.0
        %4190 = vmatmul.mubr.f32.gmra.mxu0 %v4063
        %v4191 = vpop.f32.mrf.mxu0
        %v4192 = vadd.f32 0.0, %v4191
        %v4193 = vpop.f32.mrf.mxu0
        %4194 = vmatprep.mubr.f32.mxu0 0.0
        %4195 = vmatmul.mubr.f32.gmra.mxu0 %v4065
        %v4196 = vpop.f32.mrf.mxu0
        %v4197 = vadd.f32 0.0, %v4196
        %v4198 = vpop.f32.mrf.mxu0
        %4199 = vmatprep.mubr.f32.mxu0 0.0
        %4200 = vmatmul.mubr.f32.gmra.mxu0 %v4067
        %v4201 = vpop.f32.mrf.mxu0
        %v4202 = vadd.f32 0.0, %v4201
        %v4203 = vpop.f32.mrf.mxu0
        %4204 = vmatprep.mubr.f32.mxu0 0.0
        %4205 = vmatmul.mubr.f32.gmra.mxu0 %v4069
        %v4206 = vpop.f32.mrf.mxu0
        %v4207 = vadd.f32 0.0, %v4206
        %v4208 = vpop.f32.mrf.mxu0
        %4209 = vmatprep.mubr.f32.mxu0 0.0
        %4210 = vmatmul.mubr.f32.gmra.mxu0 %v4071
        %v4211 = vpop.f32.mrf.mxu0
        %v4212 = vadd.f32 0.0, %v4211
        %v4213 = vpop.f32.mrf.mxu0
        %4214 = vmatprep.mubr.f32.mxu0 0.0
        %4215 = vmatmul.mubr.f32.gmra.mxu0 %v4073
        %v4216 = vpop.f32.mrf.mxu0
        %v4217 = vadd.f32 0.0, %v4216
        %v4218 = vpop.f32.mrf.mxu0
        %4219 = vdwg.mxu0
        %v4220 = vadd.f32 %v3986, %v4142
        %v4221 = vadd.f32 %v3987, %v4147
        %v4222 = vadd.f32 %v3988, %v4152
        %v4223 = vadd.f32 %v3989, %v4157
        %v4224 = vadd.f32 %v3990, %v4162
        %v4225 = vadd.f32 %v3991, %v4167
        %v4226 = vadd.f32 %v3992, %v4172
        %v4227 = vadd.f32 %v3993, %v4177
        %v4228 = vadd.f32 %v3994, %v4182
        %v4229 = vadd.f32 %v3995, %v4187
        %v4230 = vadd.f32 %v3996, %v4192
        %v4231 = vadd.f32 %v3997, %v4197
        %v4232 = vadd.f32 %v3998, %v4202
        %v4233 = vadd.f32 %v3999, %v4207
        %v4234 = vadd.f32 %v4000, %v4212
        %v4235 = vadd.f32 %v4001, %v4217
        %v4236 = vrot.slane %v2896, 2
        %v4237 = vrot.slane %v2897, 2
        %v4238 = vsel %vm1987, %v4236, %v4237
        %v4239 = vrot.slane %v2898, 2
        %v4240 = vsel %vm1987, %v4237, %v4239
        %v4241 = vld [vmem:[%s2228] sm:$0xff]
        %v4242 = vsel %vm297, %v4238, 0
        %v4244 = vsel %vm297, %v4240, 0
        %4246 = vmatprep.subr.mxu0 0.0
        %4247 = vmatpush1.msra.mxu0 0.0
        %4248 = vmatprep.subr.mxu0 0.0
        %4249 = vmatpush1.msra.mxu0 0.0
        %4250 = vmatprep.subr.mxu0 0.0
        %4251 = vmatpush1.msra.mxu0 0.0
        %4252 = vmatprep.subr.mxu0 0.0
        %4253 = vmatpush1.msra.mxu0 0.0
        %4254 = vmatprep.subr.mxu0 0.0
        %4255 = vmatpush1.msra.mxu0 0.0
        %4256 = vmatprep.subr.mxu0 0.0
        %4257 = vmatpush1.msra.mxu0 0.0
        %4258 = vmatprep.subr.mxu0 0.0
        %4259 = vmatpush1.msra.mxu0 0.0
        %4260 = vmatprep.subr.mxu0 0.0
        %4261 = vmatpush1.msra.mxu0 0.0
        %4262 = vmatprep.subr.mxu0 0.0
        %4263 = vmatpush1.msra.mxu0 0.0
        %4264 = vmatprep.subr.mxu0 0.0
        %4265 = vmatpush1.msra.mxu0 0.0
        %4266 = vmatprep.subr.mxu0 0.0
        %4267 = vmatpush1.msra.mxu0 0.0
        %4268 = vmatprep.subr.mxu0 0.0
        %4269 = vmatpush1.msra.mxu0 0.0
        %4270 = vmatprep.subr.mxu0 0.0
        %4271 = vmatpush1.msra.mxu0 0.0
        %4272 = vmatprep.subr.mxu0 0.0
        %4273 = vmatpush1.msra.mxu0 0.0
        %4274 = vmatprep.subr.mxu0 0.0
        %4275 = vmatpush1.msra.mxu0 0.0
        %4276 = vmatprep.subr.mxu0 0.0
        %4277 = vmatpush1.msra.mxu0 %v4241
        %4278 = vmatprep.subr.mxu0 0.0
        %4279 = vmatpush2.msra.mxu0 0.0
        %4280 = vmatprep.subr.mxu0 0.0
        %4281 = vmatpush2.msra.mxu0 0.0
        %4282 = vmatprep.subr.mxu0 0.0
        %4283 = vmatpush2.msra.mxu0 0.0
        %4284 = vmatprep.subr.mxu0 0.0
        %4285 = vmatpush2.msra.mxu0 0.0
        %4286 = vmatprep.subr.mxu0 0.0
        %4287 = vmatpush2.msra.mxu0 0.0
        %4288 = vmatprep.subr.mxu0 0.0
        %4289 = vmatpush2.msra.mxu0 0.0
        %4290 = vmatprep.subr.mxu0 0.0
        %4291 = vmatpush2.msra.mxu0 0.0
        %4292 = vmatprep.subr.mxu0 0.0
        %4293 = vmatpush2.msra.mxu0 0.0
        %4294 = vmatprep.subr.mxu0 0.0
        %4295 = vmatpush2.msra.mxu0 0.0
        %4296 = vmatprep.subr.mxu0 0.0
        %4297 = vmatpush2.msra.mxu0 0.0
        %4298 = vmatprep.subr.mxu0 0.0
        %4299 = vmatpush2.msra.mxu0 0.0
        %4300 = vmatprep.subr.mxu0 0.0
        %4301 = vmatpush2.msra.mxu0 0.0
        %4302 = vmatprep.subr.mxu0 0.0
        %4303 = vmatpush2.msra.mxu0 0.0
        %4304 = vmatprep.subr.mxu0 0.0
        %4305 = vmatpush2.msra.mxu0 0.0
        %4306 = vmatprep.subr.mxu0 0.0
        %4307 = vmatpush2.msra.mxu0 0.0
        %4308 = vmatprep.subr.mxu0 0.0
        %4309 = vmatpush2.msra.mxu0 0.0
        %4310 = vmatprep.mubr.f32.mxu0 0.0
        %4311 = vmatmul.mubr.f32.gmra.mxu0 %v4047
        %v4312 = vpop.f32.mrf.mxu0
        %v4313 = vadd.f32 0.0, %v4312
        %v4314 = vpop.f32.mrf.mxu0
        %4315 = vmatprep.mubr.f32.mxu0 0.0
        %4316 = vmatmul.mubr.f32.gmra.mxu0 %v4049
        %v4317 = vpop.f32.mrf.mxu0
        %v4318 = vadd.f32 0.0, %v4317
        %v4319 = vpop.f32.mrf.mxu0
        %4320 = vmatprep.mubr.f32.mxu0 0.0
        %4321 = vmatmul.mubr.f32.gmra.mxu0 %v4051
        %v4322 = vpop.f32.mrf.mxu0
        %v4323 = vadd.f32 0.0, %v4322
        %v4324 = vpop.f32.mrf.mxu0
        %4325 = vmatprep.mubr.f32.mxu0 0.0
        %4326 = vmatmul.mubr.f32.gmra.mxu0 %v4053
        %v4327 = vpop.f32.mrf.mxu0
        %v4328 = vadd.f32 0.0, %v4327
        %v4329 = vpop.f32.mrf.mxu0
        %4330 = vmatprep.mubr.f32.mxu0 0.0
        %4331 = vmatmul.mubr.f32.gmra.mxu0 %v4055
        %v4332 = vpop.f32.mrf.mxu0
        %v4333 = vadd.f32 0.0, %v4332
        %v4334 = vpop.f32.mrf.mxu0
        %4335 = vmatprep.mubr.f32.mxu0 0.0
        %4336 = vmatmul.mubr.f32.gmra.mxu0 %v4057
        %v4337 = vpop.f32.mrf.mxu0
        %v4338 = vadd.f32 0.0, %v4337
        %v4339 = vpop.f32.mrf.mxu0
        %4340 = vmatprep.mubr.f32.mxu0 0.0
        %4341 = vmatmul.mubr.f32.gmra.mxu0 %v4059
        %v4342 = vpop.f32.mrf.mxu0
        %v4343 = vadd.f32 0.0, %v4342
        %v4344 = vpop.f32.mrf.mxu0
        %4345 = vmatprep.mubr.f32.mxu0 0.0
        %4346 = vmatmul.mubr.f32.gmra.mxu0 %v4061
        %v4347 = vpop.f32.mrf.mxu0
        %v4348 = vadd.f32 0.0, %v4347
        %v4349 = vpop.f32.mrf.mxu0
        %4350 = vmatprep.mubr.f32.mxu0 0.0
        %4351 = vmatmul.mubr.f32.gmra.mxu0 %v4063
        %v4352 = vpop.f32.mrf.mxu0
        %v4353 = vadd.f32 0.0, %v4352
        %v4354 = vpop.f32.mrf.mxu0
        %4355 = vmatprep.mubr.f32.mxu0 0.0
        %4356 = vmatmul.mubr.f32.gmra.mxu0 %v4065
        %v4357 = vpop.f32.mrf.mxu0
        %v4358 = vadd.f32 0.0, %v4357
        %v4359 = vpop.f32.mrf.mxu0
        %4360 = vmatprep.mubr.f32.mxu0 0.0
        %4361 = vmatmul.mubr.f32.gmra.mxu0 %v4067
        %v4362 = vpop.f32.mrf.mxu0
        %v4363 = vadd.f32 0.0, %v4362
        %v4364 = vpop.f32.mrf.mxu0
        %4365 = vmatprep.mubr.f32.mxu0 0.0
        %4366 = vmatmul.mubr.f32.gmra.mxu0 %v4069
        %v4367 = vpop.f32.mrf.mxu0
        %v4368 = vadd.f32 0.0, %v4367
        %v4369 = vpop.f32.mrf.mxu0
        %4370 = vmatprep.mubr.f32.mxu0 0.0
        %4371 = vmatmul.mubr.f32.gmra.mxu0 %v4071
        %v4372 = vpop.f32.mrf.mxu0
        %v4373 = vadd.f32 0.0, %v4372
        %v4374 = vpop.f32.mrf.mxu0
        %4375 = vmatprep.mubr.f32.mxu0 0.0
        %4376 = vmatmul.mubr.f32.gmra.mxu0 %v4073
        %v4377 = vpop.f32.mrf.mxu0
        %v4378 = vadd.f32 0.0, %v4377
        %v4379 = vpop.f32.mrf.mxu0
        %4380 = vmatprep.mubr.f32.mxu0 0.0
        %4381 = vmatmul.mubr.f32.gmra.mxu0 %v4242
        %v4382 = vpop.f32.mrf.mxu0
        %v4383 = vadd.f32 0.0, %v4382
        %v4384 = vpop.f32.mrf.mxu0
        %4385 = vmatprep.mubr.f32.mxu0 0.0
        %4386 = vmatmul.mubr.f32.gmra.mxu0 %v4244
        %v4387 = vpop.f32.mrf.mxu0
        %v4388 = vadd.f32 0.0, %v4387
        %v4389 = vpop.f32.mrf.mxu0
        %4390 = vdwg.mxu0
        %v4391 = vadd.f32 %v4220, %v4313
        %v4392 = vadd.f32 %v4221, %v4318
        %v4393 = vadd.f32 %v4222, %v4323
        %v4394 = vadd.f32 %v4223, %v4328
        %v4395 = vadd.f32 %v4224, %v4333
        %v4396 = vadd.f32 %v4225, %v4338
        %v4397 = vadd.f32 %v4226, %v4343
        %v4398 = vadd.f32 %v4227, %v4348
        %v4399 = vadd.f32 %v4228, %v4353
        %v4400 = vadd.f32 %v4229, %v4358
        %v4401 = vadd.f32 %v4230, %v4363
        %v4402 = vadd.f32 %v4231, %v4368
        %v4403 = vadd.f32 %v4232, %v4373
        %v4404 = vadd.f32 %v4233, %v4378
        %v4405 = vadd.f32 %v4234, %v4383
        %v4406 = vadd.f32 %v4235, %v4388
        %v4407 = vrot.slane %v2899, 2
        %v4408 = vrot.slane %v2900, 2
        %v4409 = vsel %vm1987, %v4407, %v4408
        %v4410 = vrot.slane %v2901, 2
        %v4411 = vsel %vm1987, %v4408, %v4410
        %v4412 = vld [vmem:[%s2400] sm:$0xff]
        %v4413 = vsel %vm297, %v4409, 0
        %v4415 = vsel %vm297, %v4411, 0
        %4417 = vmatprep.subr.mxu0 0.0
        %4418 = vmatpush1.msra.mxu0 0.0
        %4419 = vmatprep.subr.mxu0 0.0
        %4420 = vmatpush1.msra.mxu0 0.0
        %4421 = vmatprep.subr.mxu0 0.0
        %4422 = vmatpush1.msra.mxu0 0.0
        %4423 = vmatprep.subr.mxu0 0.0
        %4424 = vmatpush1.msra.mxu0 0.0
        %4425 = vmatprep.subr.mxu0 0.0
        %4426 = vmatpush1.msra.mxu0 0.0
        %4427 = vmatprep.subr.mxu0 0.0
        %4428 = vmatpush1.msra.mxu0 0.0
        %4429 = vmatprep.subr.mxu0 0.0
        %4430 = vmatpush1.msra.mxu0 0.0
        %4431 = vmatprep.subr.mxu0 0.0
        %4432 = vmatpush1.msra.mxu0 0.0
        %4433 = vmatprep.subr.mxu0 0.0
        %4434 = vmatpush1.msra.mxu0 0.0
        %4435 = vmatprep.subr.mxu0 0.0
        %4436 = vmatpush1.msra.mxu0 0.0
        %4437 = vmatprep.subr.mxu0 0.0
        %4438 = vmatpush1.msra.mxu0 0.0
        %4439 = vmatprep.subr.mxu0 0.0
        %4440 = vmatpush1.msra.mxu0 0.0
        %4441 = vmatprep.subr.mxu0 0.0
        %4442 = vmatpush1.msra.mxu0 0.0
        %4443 = vmatprep.subr.mxu0 0.0
        %4444 = vmatpush1.msra.mxu0 0.0
        %4445 = vmatprep.subr.mxu0 0.0
        %4446 = vmatpush1.msra.mxu0 0.0
        %4447 = vmatprep.subr.mxu0 0.0
        %4448 = vmatpush1.msra.mxu0 %v4412
        %4449 = vmatprep.subr.mxu0 0.0
        %4450 = vmatpush2.msra.mxu0 0.0
        %4451 = vmatprep.subr.mxu0 0.0
        %4452 = vmatpush2.msra.mxu0 0.0
        %4453 = vmatprep.subr.mxu0 0.0
        %4454 = vmatpush2.msra.mxu0 0.0
        %4455 = vmatprep.subr.mxu0 0.0
        %4456 = vmatpush2.msra.mxu0 0.0
        %4457 = vmatprep.subr.mxu0 0.0
        %4458 = vmatpush2.msra.mxu0 0.0
        %4459 = vmatprep.subr.mxu0 0.0
        %4460 = vmatpush2.msra.mxu0 0.0
        %4461 = vmatprep.subr.mxu0 0.0
        %4462 = vmatpush2.msra.mxu0 0.0
        %4463 = vmatprep.subr.mxu0 0.0
        %4464 = vmatpush2.msra.mxu0 0.0
        %4465 = vmatprep.subr.mxu0 0.0
        %4466 = vmatpush2.msra.mxu0 0.0
        %4467 = vmatprep.subr.mxu0 0.0
        %4468 = vmatpush2.msra.mxu0 0.0
        %4469 = vmatprep.subr.mxu0 0.0
        %4470 = vmatpush2.msra.mxu0 0.0
        %4471 = vmatprep.subr.mxu0 0.0
        %4472 = vmatpush2.msra.mxu0 0.0
        %4473 = vmatprep.subr.mxu0 0.0
        %4474 = vmatpush2.msra.mxu0 0.0
        %4475 = vmatprep.subr.mxu0 0.0
        %4476 = vmatpush2.msra.mxu0 0.0
        %4477 = vmatprep.subr.mxu0 0.0
        %4478 = vmatpush2.msra.mxu0 0.0
        %4479 = vmatprep.subr.mxu0 0.0
        %4480 = vmatpush2.msra.mxu0 0.0
        %4481 = vmatprep.mubr.f32.mxu0 0.0
        %4482 = vmatmul.mubr.f32.gmra.mxu0 %v4051
        %v4483 = vpop.f32.mrf.mxu0
        %v4484 = vadd.f32 0.0, %v4483
        %v4485 = vpop.f32.mrf.mxu0
        %4486 = vmatprep.mubr.f32.mxu0 0.0
        %4487 = vmatmul.mubr.f32.gmra.mxu0 %v4053
        %v4488 = vpop.f32.mrf.mxu0
        %v4489 = vadd.f32 0.0, %v4488
        %v4490 = vpop.f32.mrf.mxu0
        %4491 = vmatprep.mubr.f32.mxu0 0.0
        %4492 = vmatmul.mubr.f32.gmra.mxu0 %v4055
        %v4493 = vpop.f32.mrf.mxu0
        %v4494 = vadd.f32 0.0, %v4493
        %v4495 = vpop.f32.mrf.mxu0
        %4496 = vmatprep.mubr.f32.mxu0 0.0
        %4497 = vmatmul.mubr.f32.gmra.mxu0 %v4057
        %v4498 = vpop.f32.mrf.mxu0
        %v4499 = vadd.f32 0.0, %v4498
        %v4500 = vpop.f32.mrf.mxu0
        %4501 = vmatprep.mubr.f32.mxu0 0.0
        %4502 = vmatmul.mubr.f32.gmra.mxu0 %v4059
        %v4503 = vpop.f32.mrf.mxu0
        %v4504 = vadd.f32 0.0, %v4503
        %v4505 = vpop.f32.mrf.mxu0
        %4506 = vmatprep.mubr.f32.mxu0 0.0
        %4507 = vmatmul.mubr.f32.gmra.mxu0 %v4061
        %v4508 = vpop.f32.mrf.mxu0
        %v4509 = vadd.f32 0.0, %v4508
        %v4510 = vpop.f32.mrf.mxu0
        %4511 = vmatprep.mubr.f32.mxu0 0.0
        %4512 = vmatmul.mubr.f32.gmra.mxu0 %v4063
        %v4513 = vpop.f32.mrf.mxu0
        %v4514 = vadd.f32 0.0, %v4513
        %v4515 = vpop.f32.mrf.mxu0
        %4516 = vmatprep.mubr.f32.mxu0 0.0
        %4517 = vmatmul.mubr.f32.gmra.mxu0 %v4065
        %v4518 = vpop.f32.mrf.mxu0
        %v4519 = vadd.f32 0.0, %v4518
        %v4520 = vpop.f32.mrf.mxu0
        %4521 = vmatprep.mubr.f32.mxu0 0.0
        %4522 = vmatmul.mubr.f32.gmra.mxu0 %v4067
        %v4523 = vpop.f32.mrf.mxu0
        %v4524 = vadd.f32 0.0, %v4523
        %v4525 = vpop.f32.mrf.mxu0
        %4526 = vmatprep.mubr.f32.mxu0 0.0
        %4527 = vmatmul.mubr.f32.gmra.mxu0 %v4069
        %v4528 = vpop.f32.mrf.mxu0
        %v4529 = vadd.f32 0.0, %v4528
        %v4530 = vpop.f32.mrf.mxu0
        %4531 = vmatprep.mubr.f32.mxu0 0.0
        %4532 = vmatmul.mubr.f32.gmra.mxu0 %v4071
        %v4533 = vpop.f32.mrf.mxu0
        %v4534 = vadd.f32 0.0, %v4533
        %v4535 = vpop.f32.mrf.mxu0
        %4536 = vmatprep.mubr.f32.mxu0 0.0
        %4537 = vmatmul.mubr.f32.gmra.mxu0 %v4073
        %v4538 = vpop.f32.mrf.mxu0
        %v4539 = vadd.f32 0.0, %v4538
        %v4540 = vpop.f32.mrf.mxu0
        %4541 = vmatprep.mubr.f32.mxu0 0.0
        %4542 = vmatmul.mubr.f32.gmra.mxu0 %v4242
        %v4543 = vpop.f32.mrf.mxu0
        %v4544 = vadd.f32 0.0, %v4543
        %v4545 = vpop.f32.mrf.mxu0
        %4546 = vmatprep.mubr.f32.mxu0 0.0
        %4547 = vmatmul.mubr.f32.gmra.mxu0 %v4244
        %v4548 = vpop.f32.mrf.mxu0
        %v4549 = vadd.f32 0.0, %v4548
        %v4550 = vpop.f32.mrf.mxu0
        %4551 = vmatprep.mubr.f32.mxu0 0.0
        %4552 = vmatmul.mubr.f32.gmra.mxu0 %v4413
        %v4553 = vpop.f32.mrf.mxu0
        %v4554 = vadd.f32 0.0, %v4553
        %v4555 = vpop.f32.mrf.mxu0
        %4556 = vmatprep.mubr.f32.mxu0 0.0
        %4557 = vmatmul.mubr.f32.gmra.mxu0 %v4415
        %v4558 = vpop.f32.mrf.mxu0
        %v4559 = vadd.f32 0.0, %v4558
        %v4560 = vpop.f32.mrf.mxu0
        %4561 = vdwg.mxu0
        %v4562 = vadd.f32 %v4391, %v4484
        %v4563 = vadd.f32 %v4392, %v4489
        %v4564 = vadd.f32 %v4393, %v4494
        %v4565 = vadd.f32 %v4394, %v4499
        %v4566 = vadd.f32 %v4395, %v4504
        %v4567 = vadd.f32 %v4396, %v4509
        %v4568 = vadd.f32 %v4397, %v4514
        %v4569 = vadd.f32 %v4398, %v4519
        %v4570 = vadd.f32 %v4399, %v4524
        %v4571 = vadd.f32 %v4400, %v4529
        %v4572 = vadd.f32 %v4401, %v4534
        %v4573 = vadd.f32 %v4402, %v4539
        %v4574 = vadd.f32 %v4403, %v4544
        %v4575 = vadd.f32 %v4404, %v4549
        %v4576 = vadd.f32 %v4405, %v4554
        %v4577 = vadd.f32 %v4406, %v4559
        %v4578 = vld [vmem:[%s4] sm:$0x1]
        %v4580 = vlaneseq
        %v4581 = vshrl.u32 %v4580, 7
        %v4582 = vsub.s32 0, %v4581
        %v4583 = vrot.slane %v4578, %v4582
        %v4585 = vadd.f32 %v4562, %v4583
        %v4586 = vadd.f32 %v4563, %v4583
        %v4587 = vadd.f32 %v4564, %v4583
        %v4588 = vadd.f32 %v4565, %v4583
        %v4589 = vadd.f32 %v4566, %v4583
        %v4590 = vadd.f32 %v4567, %v4583
        %v4591 = vadd.f32 %v4568, %v4583
        %v4592 = vadd.f32 %v4569, %v4583
        %v4593 = vadd.f32 %v4570, %v4583
        %v4594 = vadd.f32 %v4571, %v4583
        %v4595 = vadd.f32 %v4572, %v4583
        %v4596 = vadd.f32 %v4573, %v4583
        %v4597 = vadd.f32 %v4574, %v4583
        %v4598 = vadd.f32 %v4575, %v4583
        %v4599 = vadd.f32 %v4576, %v4583
        %v4600 = vadd.f32 %v4577, %v4583
        %v4601 = vmax.f32 %v4585, 0.0
        %v4602 = vmax.f32 %v4586, 0.0
        %v4603 = vmax.f32 %v4587, 0.0
        %v4604 = vmax.f32 %v4588, 0.0
        %v4605 = vmax.f32 %v4589, 0.0
        %v4606 = vmax.f32 %v4590, 0.0
        %v4607 = vmax.f32 %v4591, 0.0
        %v4608 = vmax.f32 %v4592, 0.0
        %v4609 = vmax.f32 %v4593, 0.0
        %v4610 = vmax.f32 %v4594, 0.0
        %v4611 = vmax.f32 %v4595, 0.0
        %v4612 = vmax.f32 %v4596, 0.0
        %v4613 = vmax.f32 %v4597, 0.0
        %v4614 = vmax.f32 %v4598, 0.0
        %v4615 = vmax.f32 %v4599, 0.0
        %v4616 = vmax.f32 %v4600, 0.0
        %v4617 = vld [vmem:[%s5] sm:$0xff]
        %v4618 = vld [vmem:[%s597] sm:$0xff]
        %v4619 = vld [vmem:[%s597 + $0x8] sm:$0xff]
        %v4620 = vld [vmem:[%s597 + $0x10] sm:$0xff]
        %v4621 = vld [vmem:[%s597 + $0x18] sm:$0xff]
        %v4622 = vld [vmem:[%s597 + $0x20] sm:$0xff]
        %v4623 = vld [vmem:[%s597 + $0x28] sm:$0xff]
        %v4624 = vld [vmem:[%s597 + $0x30] sm:$0xff]
        %v4625 = vld [vmem:[%s597 + $0x38] sm:$0xff]
        %v4626 = vld [vmem:[%s597 + $0x40] sm:$0xff]
        %v4627 = vld [vmem:[%s597 + $0x48] sm:$0xff]
        %v4628 = vld [vmem:[%s597 + $0x50] sm:$0xff]
        %v4629 = vld [vmem:[%s597 + $0x58] sm:$0xff]
        %v4630 = vld [vmem:[%s597 + $0x60] sm:$0xff]
        %v4631 = vld [vmem:[%s597 + $0x68] sm:$0xff]
        %v4632 = vld [vmem:[%s597 + $0x70] sm:$0xff]
        %v4633 = vld [vmem:[%s597 + $0x78] sm:$0xff]
        %v4634 = vld [vmem:[%s6] sm:$0x1]
        %v4636 = vlaneseq
        %v4637 = vshrl.u32 %v4636, 7
        %v4638 = vsub.s32 0, %v4637
        %v4639 = vrot.slane %v4634, %v4638
        %v4642 = vsel %vm297, %v4601, 0
        %v4645 = vsel %vm297, %v4602, 0
        %v4648 = vsel %vm297, %v4603, 0
        %v4651 = vsel %vm297, %v4604, 0
        %v4654 = vsel %vm297, %v4605, 0
        %v4657 = vsel %vm297, %v4606, 0
        %v4660 = vsel %vm297, %v4607, 0
        %v4663 = vsel %vm297, %v4608, 0
        %v4666 = vsel %vm297, %v4609, 0
        %v4669 = vsel %vm297, %v4610, 0
        %v4672 = vsel %vm297, %v4611, 0
        %v4675 = vsel %vm297, %v4612, 0
        %v4678 = vsel %vm297, %v4613, 0
        %v4681 = vsel %vm297, %v4614, 0
        %v4684 = vsel %vm297, %v4615, 0
        %v4687 = vsel %vm297, %v4616, 0
        %4689 = vmatprep.subr.mxu0 0.0
        %4690 = vmatpush1.msra.mxu0 0.0
        %4691 = vmatprep.subr.mxu0 0.0
        %4692 = vmatpush1.msra.mxu0 0.0
        %4693 = vmatprep.subr.mxu0 0.0
        %4694 = vmatpush1.msra.mxu0 0.0
        %4695 = vmatprep.subr.mxu0 0.0
        %4696 = vmatpush1.msra.mxu0 0.0
        %4697 = vmatprep.subr.mxu0 0.0
        %4698 = vmatpush1.msra.mxu0 0.0
        %4699 = vmatprep.subr.mxu0 0.0
        %4700 = vmatpush1.msra.mxu0 0.0
        %4701 = vmatprep.subr.mxu0 0.0
        %4702 = vmatpush1.msra.mxu0 0.0
        %4703 = vmatprep.subr.mxu0 0.0
        %4704 = vmatpush1.msra.mxu0 0.0
        %4705 = vmatprep.subr.mxu0 0.0
        %4706 = vmatpush1.msra.mxu0 0.0
        %4707 = vmatprep.subr.mxu0 0.0
        %4708 = vmatpush1.msra.mxu0 0.0
        %4709 = vmatprep.subr.mxu0 0.0
        %4710 = vmatpush1.msra.mxu0 0.0
        %4711 = vmatprep.subr.mxu0 0.0
        %4712 = vmatpush1.msra.mxu0 0.0
        %4713 = vmatprep.subr.mxu0 0.0
        %4714 = vmatpush1.msra.mxu0 0.0
        %4715 = vmatprep.subr.mxu0 0.0
        %4716 = vmatpush1.msra.mxu0 0.0
        %4717 = vmatprep.subr.mxu0 0.0
        %4718 = vmatpush1.msra.mxu0 0.0
        %4719 = vmatprep.subr.mxu0 0.0
        %4720 = vmatpush1.msra.mxu0 %v4617
        %4721 = vmatprep.subr.mxu0 0.0
        %4722 = vmatpush2.msra.mxu0 0.0
        %4723 = vmatprep.subr.mxu0 0.0
        %4724 = vmatpush2.msra.mxu0 0.0
        %4725 = vmatprep.subr.mxu0 0.0
        %4726 = vmatpush2.msra.mxu0 0.0
        %4727 = vmatprep.subr.mxu0 0.0
        %4728 = vmatpush2.msra.mxu0 0.0
        %4729 = vmatprep.subr.mxu0 0.0
        %4730 = vmatpush2.msra.mxu0 0.0
        %4731 = vmatprep.subr.mxu0 0.0
        %4732 = vmatpush2.msra.mxu0 0.0
        %4733 = vmatprep.subr.mxu0 0.0
        %4734 = vmatpush2.msra.mxu0 0.0
        %4735 = vmatprep.subr.mxu0 0.0
        %4736 = vmatpush2.msra.mxu0 0.0
        %4737 = vmatprep.subr.mxu0 0.0
        %4738 = vmatpush2.msra.mxu0 0.0
        %4739 = vmatprep.subr.mxu0 0.0
        %4740 = vmatpush2.msra.mxu0 0.0
        %4741 = vmatprep.subr.mxu0 0.0
        %4742 = vmatpush2.msra.mxu0 0.0
        %4743 = vmatprep.subr.mxu0 0.0
        %4744 = vmatpush2.msra.mxu0 0.0
        %4745 = vmatprep.subr.mxu0 0.0
        %4746 = vmatpush2.msra.mxu0 0.0
        %4747 = vmatprep.subr.mxu0 0.0
        %4748 = vmatpush2.msra.mxu0 0.0
        %4749 = vmatprep.subr.mxu0 0.0
        %4750 = vmatpush2.msra.mxu0 0.0
        %4751 = vmatprep.subr.mxu0 0.0
        %4752 = vmatpush2.msra.mxu0 0.0
        %4753 = vmatprep.mubr.f32.mxu0 0.0
        %4754 = vmatmul.mubr.f32.gmra.mxu0 %v4642
        %v4755 = vpop.f32.mrf.mxu0
        %v4756 = vadd.f32 %v4639, %v4755
        %v4757 = vpop.f32.mrf.mxu0
        %4758 = vmatprep.mubr.f32.mxu0 0.0
        %4759 = vmatmul.mubr.f32.gmra.mxu0 %v4645
        %v4760 = vpop.f32.mrf.mxu0
        %v4761 = vadd.f32 %v4639, %v4760
        %v4762 = vpop.f32.mrf.mxu0
        %4763 = vmatprep.mubr.f32.mxu0 0.0
        %4764 = vmatmul.mubr.f32.gmra.mxu0 %v4648
        %v4765 = vpop.f32.mrf.mxu0
        %v4766 = vadd.f32 %v4639, %v4765
        %v4767 = vpop.f32.mrf.mxu0
        %4768 = vmatprep.mubr.f32.mxu0 0.0
        %4769 = vmatmul.mubr.f32.gmra.mxu0 %v4651
        %v4770 = vpop.f32.mrf.mxu0
        %v4771 = vadd.f32 %v4639, %v4770
        %v4772 = vpop.f32.mrf.mxu0
        %4773 = vmatprep.mubr.f32.mxu0 0.0
        %4774 = vmatmul.mubr.f32.gmra.mxu0 %v4654
        %v4775 = vpop.f32.mrf.mxu0
        %v4776 = vadd.f32 %v4639, %v4775
        %v4777 = vpop.f32.mrf.mxu0
        %4778 = vmatprep.mubr.f32.mxu0 0.0
        %4779 = vmatmul.mubr.f32.gmra.mxu0 %v4657
        %v4780 = vpop.f32.mrf.mxu0
        %v4781 = vadd.f32 %v4639, %v4780
        %v4782 = vpop.f32.mrf.mxu0
        %4783 = vmatprep.mubr.f32.mxu0 0.0
        %4784 = vmatmul.mubr.f32.gmra.mxu0 %v4660
        %v4785 = vpop.f32.mrf.mxu0
        %v4786 = vadd.f32 %v4639, %v4785
        %v4787 = vpop.f32.mrf.mxu0
        %4788 = vmatprep.mubr.f32.mxu0 0.0
        %4789 = vmatmul.mubr.f32.gmra.mxu0 %v4663
        %v4790 = vpop.f32.mrf.mxu0
        %v4791 = vadd.f32 %v4639, %v4790
        %v4792 = vpop.f32.mrf.mxu0
        %4793 = vmatprep.mubr.f32.mxu0 0.0
        %4794 = vmatmul.mubr.f32.gmra.mxu0 %v4666
        %v4795 = vpop.f32.mrf.mxu0
        %v4796 = vadd.f32 %v4639, %v4795
        %v4797 = vpop.f32.mrf.mxu0
        %4798 = vmatprep.mubr.f32.mxu0 0.0
        %4799 = vmatmul.mubr.f32.gmra.mxu0 %v4669
        %v4800 = vpop.f32.mrf.mxu0
        %v4801 = vadd.f32 %v4639, %v4800
        %v4802 = vpop.f32.mrf.mxu0
        %4803 = vmatprep.mubr.f32.mxu0 0.0
        %4804 = vmatmul.mubr.f32.gmra.mxu0 %v4672
        %v4805 = vpop.f32.mrf.mxu0
        %v4806 = vadd.f32 %v4639, %v4805
        %v4807 = vpop.f32.mrf.mxu0
        %4808 = vmatprep.mubr.f32.mxu0 0.0
        %4809 = vmatmul.mubr.f32.gmra.mxu0 %v4675
        %v4810 = vpop.f32.mrf.mxu0
        %v4811 = vadd.f32 %v4639, %v4810
        %v4812 = vpop.f32.mrf.mxu0
        %4813 = vmatprep.mubr.f32.mxu0 0.0
        %4814 = vmatmul.mubr.f32.gmra.mxu0 %v4678
        %v4815 = vpop.f32.mrf.mxu0
        %v4816 = vadd.f32 %v4639, %v4815
        %v4817 = vpop.f32.mrf.mxu0
        %4818 = vmatprep.mubr.f32.mxu0 0.0
        %4819 = vmatmul.mubr.f32.gmra.mxu0 %v4681
        %v4820 = vpop.f32.mrf.mxu0
        %v4821 = vadd.f32 %v4639, %v4820
        %v4822 = vpop.f32.mrf.mxu0
        %4823 = vmatprep.mubr.f32.mxu0 0.0
        %4824 = vmatmul.mubr.f32.gmra.mxu0 %v4684
        %v4825 = vpop.f32.mrf.mxu0
        %v4826 = vadd.f32 %v4639, %v4825
        %v4827 = vpop.f32.mrf.mxu0
        %4828 = vmatprep.mubr.f32.mxu0 0.0
        %4829 = vmatmul.mubr.f32.gmra.mxu0 %v4687
        %v4830 = vpop.f32.mrf.mxu0
        %v4831 = vadd.f32 %v4639, %v4830
        %v4832 = vpop.f32.mrf.mxu0
        %4833 = vdwg.mxu0
        %v4834 = vadd.f32 %v4756, %v4618
        %v4835 = vadd.f32 %v4761, %v4619
        %v4836 = vadd.f32 %v4766, %v4620
        %v4837 = vadd.f32 %v4771, %v4621
        %v4838 = vadd.f32 %v4776, %v4622
        %v4839 = vadd.f32 %v4781, %v4623
        %v4840 = vadd.f32 %v4786, %v4624
        %v4841 = vadd.f32 %v4791, %v4625
        %v4842 = vadd.f32 %v4796, %v4626
        %v4843 = vadd.f32 %v4801, %v4627
        %v4844 = vadd.f32 %v4806, %v4628
        %v4845 = vadd.f32 %v4811, %v4629
        %v4846 = vadd.f32 %v4816, %v4630
        %v4847 = vadd.f32 %v4821, %v4631
        %v4848 = vadd.f32 %v4826, %v4632
        %v4849 = vadd.f32 %v4831, %v4633
        %v4850 = vmax.f32 %v4834, 0.0
        %v4851 = vmax.f32 %v4835, 0.0
        %v4852 = vmax.f32 %v4836, 0.0
        %v4853 = vmax.f32 %v4837, 0.0
        %v4854 = vmax.f32 %v4838, 0.0
        %v4855 = vmax.f32 %v4839, 0.0
        %v4856 = vmax.f32 %v4840, 0.0
        %v4857 = vmax.f32 %v4841, 0.0
        %v4858 = vmax.f32 %v4842, 0.0
        %v4859 = vmax.f32 %v4843, 0.0
        %v4860 = vmax.f32 %v4844, 0.0
        %v4861 = vmax.f32 %v4845, 0.0
        %v4862 = vmax.f32 %v4846, 0.0
        %v4863 = vmax.f32 %v4847, 0.0
        %v4864 = vmax.f32 %v4848, 0.0
        %v4865 = vmax.f32 %v4849, 0.0
        %s4866 = scalar_lea.vmem %s296, 128 [#allocation6]
        %4867 = vst.msk [vmem:[%s4866] sm:$0xff] %vm370, %v4850
        %4868 = vst.msk [vmem:[%s4866 + $0x8] sm:$0xff] %vm370, %v4851
        %4869 = vst.msk [vmem:[%s4866 + $0x10] sm:$0xff] %vm370, %v4852
        %4870 = vst.msk [vmem:[%s4866 + $0x18] sm:$0xff] %vm370, %v4853
        %4871 = vst.msk [vmem:[%s4866 + $0x20] sm:$0xff] %vm370, %v4854
        %4872 = vst.msk [vmem:[%s4866 + $0x28] sm:$0xff] %vm370, %v4855
        %4873 = vst.msk [vmem:[%s4866 + $0x30] sm:$0xff] %vm370, %v4856
        %4874 = vst.msk [vmem:[%s4866 + $0x38] sm:$0xff] %vm370, %v4857
        %4875 = vst.msk [vmem:[%s4866 + $0x40] sm:$0xff] %vm370, %v4858
        %4876 = vst.msk [vmem:[%s4866 + $0x48] sm:$0xff] %vm370, %v4859
        %4877 = vst.msk [vmem:[%s4866 + $0x50] sm:$0xff] %vm370, %v4860
        %4878 = vst.msk [vmem:[%s4866 + $0x58] sm:$0xff] %vm370, %v4861
        %4879 = vst.msk [vmem:[%s4866 + $0x60] sm:$0xff] %vm370, %v4862
        %4880 = vst.msk [vmem:[%s4866 + $0x68] sm:$0xff] %vm370, %v4863
        %4881 = vst.msk [vmem:[%s4866 + $0x70] sm:$0xff] %vm370, %v4864
        %4882 = vst.msk [vmem:[%s4866 + $0x78] sm:$0xff] %vm370, %v4865
        %s4883 = sand.u32 %s184, 1
        %s4884 = scalar_lea.sflag [#allocation5], %s4883
        %s4885 = sand.u32 %s184, 1
        %s4886 = smul.addr %s4885, 256
        %s4887 = scalar_lea.vmem [#allocation6], %s4886
        // Predicated region
        $region53: #{tpu_custom_call.1} parent=47 // pred_check
          %p4888 = pneg %p194
        $region54: #{tpu_custom_call.1} parent=47 // pred_check_branch
          %4890 = sbr.rel (%p4888) target = $region56
        $region55: #{tpu_custom_call.1} parent=47 // pred_region
          %s4892 = ssub.s32 4096, 4096
          %4893 = vsyncadd %s4884, %s4892
          %s4894 = smul.addr %s24, 32
          %s4895 = smul.addr %s4894, 128
          %s4896 = scalar_lea.hbm %s7, %s4895
          %s4897 = sshll.u32 %s4887, 4
          %s4898 = int_to_ptr.vmem [resolvable:$true] %s4897
          %4903 = dma.vmem_to_hbm [thread:$0]  %s4898, 4096, %s4896, %s4884, 128, 128, 8
        $region56: #{tpu_custom_call.1} parent=47 // pred_fallthru
          _
      $region48: #{tpu_custom_call.1} parent=5 // pred_fallthru
        _
      %p4904 = scmp.le.s32.totalorder 2, %s19
      // Predicated region
      $region57: #{tpu_custom_call.1} parent=5 // pred_check
        %p4905 = pneg %p4904
      $region58: #{tpu_custom_call.1} parent=5 // pred_check_branch
        %4907 = sbr.rel (%p4905) target = $region60
      $region59: #{tpu_custom_call.1} parent=5 // pred_region
        %s4908 = ssub.s32 %s19, 2
        // Predicated region
        $region61: #{tpu_custom_call.1} parent=59 // pred_check
          %p4909 = pneg %p200
        $region62: #{tpu_custom_call.1} parent=59 // pred_check_branch
          %4911 = sbr.rel (%p4909) target = $region64
        $region63: #{tpu_custom_call.1} parent=59 // pred_region
          %s4912 = sand.u32 %s185, 1
          %s4913 = scalar_lea.sflag [#allocation5], %s4912
          %s4914 = sand.u32 %s185, 1
          %s4915 = smul.addr %s4914, 256
          %s4916 = scalar_lea.vmem [#allocation6], %s4915
          %4917 = dma.done %s4913, 4096
        $region64: #{tpu_custom_call.1} parent=59 // pred_fallthru
          _
      $region60: #{tpu_custom_call.1} parent=5 // pred_fallthru
        _
    $region6: #{tpu_custom_call.1} parent=1 // loop_footer
      %s23 = sadd.s32 1, %s19
    $region7: #{tpu_custom_call.1} parent=1 // loop_footer_branch
      %18 = sbr.rel target = $region3
    $region8: #{tpu_custom_call.1} parent=1 // loop_exit
      _
    %4918 = vsyncpa [#allocation4], 1
    %s4919 = scalar_lea.sflag [#allocation4], 1
    %4920 = vsyncpa %s4919, 1
    %4921 = vsyncpa [#allocation5], 1
    %s4922 = scalar_lea.sflag [#allocation5], 1
    %4923 = vsyncpa %s4922, 1

</llo_original>
